<compile_context>
chip_gen: v7x
topology: tpu7x:2x2x1
jax: 0.10.0
libtpu: 0.0.40
codegen_flags: <defaults>
</compile_context>

<pallas_src>
import jax
import jax.numpy as jnp
import numpy as np
from jax import lax
from jax.experimental import pallas as pl
from jax.experimental.pallas import tpu as pltpu

BN_EPS = 1e-5
LRELU_SLOPE = 0.2
CPAD = 128  # lane-dense channel padding (one full vreg of lanes)


# ----------------------------- Pallas kernel --------------------------------

def _make_fused_kernel(n_layers):
    """Build the fused kernel body for an `n_layers`-deep conv stack.

    Positional refs:
      refs[0]                  p0   [M0, K0p]             bf16  layer-0 im2col patches
      refs[1]                  w0   [K0p, CPAD]           bf16
      refs[2*l], refs[2*l+1]   g_l  [k*k, M_l, M_{l-1}]   bf16  0/1 tap-gather matrices
                               w_l  [k*k, CPAD, CPAD]     bf16  per-tap weights (l>=1)
      refs[-2]                 aux  [rows, CPAD]          f32   gamma/beta per BN layer,
                                                                 final conv bias
      refs[-1]                 out  [M_last, CPAD]        f32   lane-dense output
    """
    n_bn = n_layers - 1

    def kernel(*refs):
        aux_ref = refs[2 + 2 * (n_layers - 1)]
        o_ref = refs[3 + 2 * (n_layers - 1)]

        def bn_leaky(y, l):
            # torch BatchNorm2d (training-mode batch stats) over all N*OH*OW rows,
            # folded into a single FMA, then LeakyReLU(0.2).
            # Padded channels have gamma = beta = 0, so they stay exactly 0.
            gamma = aux_ref[2 * l:2 * l + 1, :]
            beta = aux_ref[2 * l + 1:2 * l + 2, :]
            mean = jnp.mean(y, axis=0, keepdims=True)
            var = jnp.mean((y - mean) * (y - mean), axis=0, keepdims=True)
            s = gamma * lax.rsqrt(var + BN_EPS)
            t = beta - mean * s
            y = y * s + t
            return jnp.where(y > 0, y, LRELU_SLOPE * y)

        # ---- layer 0: conv as one MXU matmul over the host-built im2col patches.
        y = jnp.dot(refs[0][...], refs[1][...], preferred_element_type=jnp.float32)
        if n_layers == 1:
            o_ref[...] = jax.nn.sigmoid(y + aux_ref[0:1, :])
            return
        act = bn_leaky(y, 0).astype(jnp.bfloat16)

        # ---- layers 1..n-1: in-kernel im2col = per-tap exact row-gather + weight matmul.
        for l in range(1, n_layers):
            g_ref = refs[2 * l]
            w_ref = refs[2 * l + 1]
            n_taps, m_out = g_ref.shape[0], g_ref.shape[1]
            acc = jnp.zeros((m_out, CPAD), jnp.float32)
            for t in range(n_taps):
                # 0/1 row gather of the previous activation (exact in bf16).
                xt = jnp.dot(g_ref[t], act, preferred_element_type=jnp.float32)
                acc = acc + jnp.dot(xt.astype(jnp.bfloat16), w_ref[t],
                                    preferred_element_type=jnp.float32)
            if l < n_layers - 1:
                act = bn_leaky(acc, l).astype(jnp.bfloat16)
            else:
                bias = aux_ref[2 * n_bn:2 * n_bn + 1, :]
                o_ref[...] = jax.nn.sigmoid(acc + bias)

    return kernel


def _full_spec(shape):
    """Whole-array BlockSpec for grid=(1,).  Rank captured via default arg
    (fixes the late-binding closure bug flagged in review)."""
    rank = len(shape)
    return pl.BlockSpec(tuple(int(d) for d in shape),
                        lambda i, _rank=rank: (0,) * _rank)


# ------------------------------- host glue ----------------------------------

def _conv_out(size, k, s, p):
    return (size + 2 * p - k) // s + 1


def _im2col(x_nhwc, k, stride, pad):
    """[N,H,W,C] -> patches [N*OH*OW, C*k*k]; columns ordered (c, ki, kj) to match
    torch's [OC, C, KH, KW].reshape(OC, -1).  Host-side, used for layer 0 only
    (its input is read exactly once and is tiny)."""
    n, h, w, c = x_nhwc.shape
    xp = jnp.pad(x_nhwc, ((0, 0), (pad, pad), (pad, pad), (0, 0)))
    oh = _conv_out(h, k, stride, pad)
    ow = _conv_out(w, k, stride, pad)
    cols = []
    for i in range(k):
        for j in range(k):
            cols.append(xp[:, i:i + stride * oh:stride, j:j + stride * ow:stride, :])
    p = jnp.stack(cols, axis=0).reshape(k, k, n, oh, ow, c)
    p = p.transpose(2, 3, 4, 5, 0, 1)                  # [N, OH, OW, C, KH, KW]
    return p.reshape(n * oh * ow, c * k * k), oh, ow


def _tap_gather_matrices(n, h_in, w_in, oh, ow, k, s, p):
    """g[t, m_out, m_in] = 1 iff output row m_out's kernel tap t reads input row m_in
    (rows in (n, h, w) order).  Taps landing in the zero-padding border give an
    all-zero row (== reading a zero)."""
    g = np.zeros((k * k, n * oh * ow, n * h_in * w_in), np.float32)
    for ki in range(k):
        for kj in range(k):
            t = ki * k + kj
            for b in range(n):
                for yy in range(oh):
                    for xx in range(ow):
                        ih = yy * s + ki - p
                        iw = xx * s + kj - p
                        if 0 <= ih < h_in and 0 <= iw < w_in:
                            g[t, (b * oh + yy) * ow + xx,
                              (b * h_in + ih) * w_in + iw] = 1.0
    return jnp.asarray(g, jnp.bfloat16)


def _tap_weights(w_oihw):
    """[OC, IC, k, k] -> [k*k, CPAD, CPAD] bf16 per-tap (in_ch, out_ch) matrices."""
    oc, ic, k, _ = w_oihw.shape
    wt = jnp.transpose(w_oihw, (2, 3, 1, 0)).reshape(k * k, ic, oc)
    out = jnp.zeros((k * k, CPAD, CPAD), jnp.float32).at[:, :ic, :oc].set(wt)
    return out.astype(jnp.bfloat16)


def init_discriminator_params(key, in_channels, out_channels, kernel_size):
    """Synthetic init matching Discriminator.__init__ shapes: conv / BN weights
    ~ N(0, 0.02) (per init_weights).  Conv weights are rounded to bf16-representable
    values so the in-kernel bf16 cast is lossless."""
    params = []
    n_layers = len(in_channels)
    for li in range(n_layers):
        key, kw = jax.random.split(key)
        ic, oc, k = in_channels[li], out_channels[li], kernel_size[li]
        w = 0.02 * jax.random.normal(kw, (oc, ic, k, k), dtype=jnp.float32)
        layer = {"w": w.astype(jnp.bfloat16).astype(jnp.float32)}
        if li < n_layers - 1:
            layer["b"] = jnp.zeros((oc,), jnp.float32)  # cancels exactly under BN
            key, kg = jax.random.split(key)
            layer["gamma"] = 0.02 * jax.random.normal(kg, (oc,), dtype=jnp.float32)
            layer["beta"] = jnp.zeros((oc,), jnp.float32)
        else:
            key, kb = jax.random.split(key)
            layer["b"] = 0.1 * jax.random.normal(kb, (oc,), dtype=jnp.float32)
        params.append(layer)
    return params


def discriminator_forward(x_nchw, params, kernel_size, stride, padding):
    """sigmoid(flatten(conv/BN/LeakyReLU stack(x))) via one fused Pallas kernel."""
    n_layers = len(kernel_size)
    n = x_nchw.shape[0]
    assert max(int(p["w"].shape[0]) for p in params) <= CPAD

    x_nhwc = jnp.transpose(x_nchw, (0, 2, 3, 1))

    # ---- layer 0 operands: host im2col of the (tiny, read-once) network input.
    k0, s0, pd0 = kernel_size[0], stride[0], padding[0]
    oc0 = int(params[0]["w"].shape[0])
    patches, oh, ow = _im2col(x_nhwc, k0, s0, pd0)
    m0 = n * oh * ow
    k0p = int(pl.cdiv(patches.shape[1], 128)) * 128
    p0 = jnp.zeros((m0, k0p), jnp.float32).at[:, :patches.shape[1]].set(patches)
    w0 = params[0]["w"].reshape(oc0, -1).T            # [C*k*k, OC], (c, ki, kj) order
    w0p = jnp.zeros((k0p, CPAD), jnp.float32).at[:w0.shape[0], :oc0].set(w0)
    operands = [p0.astype(jnp.bfloat16), w0p.astype(jnp.bfloat16)]

    # ---- layers 1..: geometry-derived 0/1 gather matrices + padded per-tap weights.
    h_in, w_in = oh, ow
    for li in range(1, n_layers):
        k, s, p = kernel_size[li], stride[li], padding[li]
        oh = _conv_out(h_in, k, s, p)
        ow = _conv_out(w_in, k, s, p)
        operands.append(_tap_gather_matrices(n, h_in, w_in, oh, ow, k, s, p))
        operands.append(_tap_weights(params[li]["w"]))
        h_in, w_in = oh, ow
    m_last = n * oh * ow
    oc_last = int(params[-1]["w"].shape[0])

    # ---- single packed aux operand: gamma/beta per BN layer + final conv bias.
    aux_rows = max(8, ((2 * (n_layers - 1) + 1 + 7) // 8) * 8)
    aux = jnp.zeros((aux_rows, CPAD), jnp.float32)
    for li in range(n_layers - 1):
        oc = int(params[li]["w"].shape[0])
        aux = aux.at[2 * li, :oc].set(params[li]["gamma"])
        aux = aux.at[2 * li + 1, :oc].set(params[li]["beta"])
    aux = aux.at[2 * (n_layers - 1), :oc_last].set(params[-1]["b"])
    operands.append(aux)

    out_shape = jax.ShapeDtypeStruct((m_last, CPAD), jnp.float32)
    fused = pl.pallas_call(
        _make_fused_kernel(n_layers),
        out_shape=out_shape,
        grid=(1,),
        in_specs=[_full_spec(op.shape) for op in operands],
        out_specs=_full_spec(out_shape.shape),
        compiler_params=pltpu.CompilerParams(dimension_semantics=("arbitrary",)),
    )
    o = fused(*operands)                               # [M_last, 128], lane-dense store

    # Drop channel padding and reorder to torch flatten(start_dim=1) (N, C, H, W) order.
    y = o[:, :oc_last].reshape(n, oh, ow, oc_last)
    return jnp.transpose(y, (0, 3, 1, 2)).reshape(n, -1)


# -------------------------------- reference ---------------------------------

def _reference_forward(x_nchw, params, kernel_size, stride, padding):
    n_layers = len(kernel_size)
    out = x_nchw
    for li in range(n_layers):
        s, p = stride[li], padding[li]
        w, b = params[li]["w"], params[li]["b"]
        out = lax.conv_general_dilated(
            out, w, (s, s), [(p, p), (p, p)],
            dimension_numbers=("NCHW", "OIHW", "NCHW"),
            precision=lax.Precision.HIGHEST)
        out = out + b[None, :, None, None]
        if li < n_layers - 1:
            mean = out.mean(axis=(0, 2, 3), keepdims=True)
            var = ((out - mean) ** 2).mean(axis=(0, 2, 3), keepdims=True)
            out = (out - mean) / jnp.sqrt(var + BN_EPS)
            out = out * params[li]["gamma"][None, :, None, None] + \
                  params[li]["beta"][None, :, None, None]
            out = jnp.where(out > 0, out, LRELU_SLOPE * out)
    out = out.reshape(out.shape[0], -1)
    return jax.nn.sigmoid(out)


# ---------------------------------- main -------------------------------------

if __name__ == "__main__":
    in_channels = [4, 8, 16]
    out_channels = [8, 16, 1]
    kernel_size = [3, 3, 3]
    stride = [2, 2, 1]
    padding = [1, 1, 1]

    key = jax.random.PRNGKey(0)
    key, kx = jax.random.split(key)
    x = jax.random.normal(kx, (2, 4, 16, 16), dtype=jnp.float32)  # NCHW, like torch
    x = x.astype(jnp.bfloat16).astype(jnp.float32)  # bf16-representable input

    params = init_discriminator_params(key, in_channels, out_channels, kernel_size)

    out = jax.block_until_ready(
        discriminator_forward(x, params, kernel_size, stride, padding))
    ref = jax.block_until_ready(
        _reference_forward(x, params, kernel_size, stride, padding))

    assert out.shape == ref.shape == (2, 16), out.shape
    max_err = float(jnp.max(jnp.abs(out - ref)))
    assert jnp.allclose(out, ref, atol=2e-4, rtol=2e-4), max_err
    print("KERNEL_OK")
</pallas_src>

<mosaic_0001>
module attributes {stable_mosaic.version = 11 : i64} {
  func.func @kernel(%arg0: i32, %arg1: memref<128x128xbf16, #tpu.memory_space<vmem>>, %arg2: memref<128x128xbf16, #tpu.memory_space<vmem>>, %arg3: memref<9x32x128xbf16, #tpu.memory_space<vmem>>, %arg4: memref<9x128x128xbf16, #tpu.memory_space<vmem>>, %arg5: memref<9x32x32xbf16, #tpu.memory_space<vmem>>, %arg6: memref<9x128x128xbf16, #tpu.memory_space<vmem>>, %arg7: memref<8x128xf32, #tpu.memory_space<vmem>>, %arg8: memref<32x128xf32, #tpu.memory_space<vmem>>) attributes {dimension_semantics = [#tpu.dimension_semantics<arbitrary>], iteration_bounds = array<i64: 1>, scalar_prefetch = 0 : i64, scratch_operands = 0 : i64, tpu.core_type = #tpu.core_type<tc>, window_params = [{pipeline_mode = #tpu.pipeline_mode<synchronous>, transform_indices = @transform_0, window_bounds = array<i64: 128, 128>}, {pipeline_mode = #tpu.pipeline_mode<synchronous>, transform_indices = @transform_1, window_bounds = array<i64: 128, 128>}, {pipeline_mode = #tpu.pipeline_mode<synchronous>, transform_indices = @transform_2, window_bounds = array<i64: 9, 32, 128>}, {pipeline_mode = #tpu.pipeline_mode<synchronous>, transform_indices = @transform_3, window_bounds = array<i64: 9, 128, 128>}, {pipeline_mode = #tpu.pipeline_mode<synchronous>, transform_indices = @transform_4, window_bounds = array<i64: 9, 32, 32>}, {pipeline_mode = #tpu.pipeline_mode<synchronous>, transform_indices = @transform_5, window_bounds = array<i64: 9, 128, 128>}, {pipeline_mode = #tpu.pipeline_mode<synchronous>, transform_indices = @transform_6, window_bounds = array<i64: 8, 128>}, {pipeline_mode = #tpu.pipeline_mode<synchronous>, transform_indices = @transform_7, window_bounds = array<i64: 32, 128>}]} {
    %c0 = arith.constant 0 : index
    %c0_0 = arith.constant 0 : index
    %0 = vector.load %arg1[%c0, %c0_0] : memref<128x128xbf16, #tpu.memory_space<vmem>>, vector<128x128xbf16>
    %c0_1 = arith.constant 0 : index
    %c0_2 = arith.constant 0 : index
    %1 = vector.load %arg2[%c0_1, %c0_2] : memref<128x128xbf16, #tpu.memory_space<vmem>>, vector<128x128xbf16>
    %cst = arith.constant dense<0.000000e+00> : vector<128x128xf32>
    %2 = tpu.matmul %0, %1, %cst {dimension_numbers = #tpu.dot_dimension_numbers<[1], [0], [0], [1], [0, 0, 1, 1], [], []>} : vector<128x128xbf16>, vector<128x128xbf16>, vector<128x128xf32> -> vector<128x128xf32>
    %c0_3 = arith.constant 0 : index
    %c0_4 = arith.constant 0 : index
    %3 = vector.load %arg7[%c0_3, %c0_4] : memref<8x128xf32, #tpu.memory_space<vmem>>, vector<1x128xf32>
    %c1 = arith.constant 1 : index
    %c0_5 = arith.constant 0 : index
    %4 = vector.load %arg7[%c1, %c0_5] : memref<8x128xf32, #tpu.memory_space<vmem>>, vector<1x128xf32>
    %cst_6 = arith.constant dense<0.000000e+00> : vector<128xf32>
    %5 = vector.multi_reduction <add>, %2, %cst_6 [0] : vector<128x128xf32> to vector<128xf32>
    %6 = vector.shape_cast %5 : vector<128xf32> to vector<1x128xf32>
    %cst_7 = arith.constant 1.280000e+02 : f32
    %7 = vector.broadcast %cst_7 : f32 to vector<1x128xf32>
    %8 = arith.divf %6, %7 : vector<1x128xf32>
    %9 = vector.broadcast %8 : vector<1x128xf32> to vector<128x128xf32>
    %10 = arith.subf %2, %9 : vector<128x128xf32>
    %11 = vector.broadcast %8 : vector<1x128xf32> to vector<128x128xf32>
    %12 = arith.subf %2, %11 : vector<128x128xf32>
    %13 = arith.mulf %10, %12 : vector<128x128xf32>
    %cst_8 = arith.constant dense<0.000000e+00> : vector<128xf32>
    %14 = vector.multi_reduction <add>, %13, %cst_8 [0] : vector<128x128xf32> to vector<128xf32>
    %15 = vector.shape_cast %14 : vector<128xf32> to vector<1x128xf32>
    %cst_9 = arith.constant 1.280000e+02 : f32
    %16 = vector.broadcast %cst_9 : f32 to vector<1x128xf32>
    %17 = arith.divf %15, %16 : vector<1x128xf32>
    %cst_10 = arith.constant 9.99999974E-6 : f32
    %18 = vector.broadcast %cst_10 : f32 to vector<1x128xf32>
    %19 = arith.addf %17, %18 : vector<1x128xf32>
    %20 = math.rsqrt %19 : vector<1x128xf32>
    %21 = arith.mulf %3, %20 : vector<1x128xf32>
    %22 = arith.mulf %8, %21 : vector<1x128xf32>
    %23 = arith.subf %4, %22 : vector<1x128xf32>
    %24 = vector.broadcast %21 : vector<1x128xf32> to vector<128x128xf32>
    %25 = arith.mulf %2, %24 : vector<128x128xf32>
    %26 = vector.broadcast %23 : vector<1x128xf32> to vector<128x128xf32>
    %27 = arith.addf %25, %26 : vector<128x128xf32>
    %cst_11 = arith.constant 0.000000e+00 : f32
    %28 = vector.broadcast %cst_11 : f32 to vector<128x128xf32>
    %29 = arith.cmpf ogt, %27, %28 : vector<128x128xf32>
    %cst_12 = arith.constant 2.000000e-01 : f32
    %30 = vector.broadcast %cst_12 : f32 to vector<128x128xf32>
    %31 = arith.mulf %30, %27 : vector<128x128xf32>
    %32 = arith.select %29, %27, %31 : vector<128x128xi1>, vector<128x128xf32>
    %33 = arith.truncf %32 : vector<128x128xf32> to vector<128x128xbf16>
    %cst_13 = arith.constant 0.000000e+00 : f32
    %34 = vector.broadcast %cst_13 : f32 to vector<32x128xf32>
    %c0_14 = arith.constant 0 : index
    %c0_15 = arith.constant 0 : index
    %c0_16 = arith.constant 0 : index
    %35 = vector.load %arg3[%c0_14, %c0_15, %c0_16] : memref<9x32x128xbf16, #tpu.memory_space<vmem>>, vector<1x32x128xbf16>
    %36 = vector.shape_cast %35 : vector<1x32x128xbf16> to vector<32x128xbf16>
    %cst_17 = arith.constant dense<0.000000e+00> : vector<32x128xf32>
    %37 = tpu.matmul %36, %33, %cst_17 {dimension_numbers = #tpu.dot_dimension_numbers<[1], [0], [0], [1], [0, 0, 1, 1], [], []>} : vector<32x128xbf16>, vector<128x128xbf16>, vector<32x128xf32> -> vector<32x128xf32>
    %38 = arith.truncf %37 : vector<32x128xf32> to vector<32x128xbf16>
    %c0_18 = arith.constant 0 : index
    %c0_19 = arith.constant 0 : index
    %c0_20 = arith.constant 0 : index
    %39 = vector.load %arg4[%c0_18, %c0_19, %c0_20] : memref<9x128x128xbf16, #tpu.memory_space<vmem>>, vector<1x128x128xbf16>
    %40 = vector.shape_cast %39 : vector<1x128x128xbf16> to vector<128x128xbf16>
    %cst_21 = arith.constant dense<0.000000e+00> : vector<32x128xf32>
    %41 = tpu.matmul %38, %40, %cst_21 {dimension_numbers = #tpu.dot_dimension_numbers<[1], [0], [0], [1], [0, 0, 1, 1], [], []>} : vector<32x128xbf16>, vector<128x128xbf16>, vector<32x128xf32> -> vector<32x128xf32>
    %42 = arith.addf %34, %41 : vector<32x128xf32>
    %c1_22 = arith.constant 1 : index
    %c0_23 = arith.constant 0 : index
    %c0_24 = arith.constant 0 : index
    %43 = vector.load %arg3[%c1_22, %c0_23, %c0_24] : memref<9x32x128xbf16, #tpu.memory_space<vmem>>, vector<1x32x128xbf16>
    %44 = vector.shape_cast %43 : vector<1x32x128xbf16> to vector<32x128xbf16>
    %cst_25 = arith.constant dense<0.000000e+00> : vector<32x128xf32>
    %45 = tpu.matmul %44, %33, %cst_25 {dimension_numbers = #tpu.dot_dimension_numbers<[1], [0], [0], [1], [0, 0, 1, 1], [], []>} : vector<32x128xbf16>, vector<128x128xbf16>, vector<32x128xf32> -> vector<32x128xf32>
    %46 = arith.truncf %45 : vector<32x128xf32> to vector<32x128xbf16>
    %c1_26 = arith.constant 1 : index
    %c0_27 = arith.constant 0 : index
    %c0_28 = arith.constant 0 : index
    %47 = vector.load %arg4[%c1_26, %c0_27, %c0_28] : memref<9x128x128xbf16, #tpu.memory_space<vmem>>, vector<1x128x128xbf16>
    %48 = vector.shape_cast %47 : vector<1x128x128xbf16> to vector<128x128xbf16>
    %cst_29 = arith.constant dense<0.000000e+00> : vector<32x128xf32>
    %49 = tpu.matmul %46, %48, %cst_29 {dimension_numbers = #tpu.dot_dimension_numbers<[1], [0], [0], [1], [0, 0, 1, 1], [], []>} : vector<32x128xbf16>, vector<128x128xbf16>, vector<32x128xf32> -> vector<32x128xf32>
    %50 = arith.addf %42, %49 : vector<32x128xf32>
    %c2 = arith.constant 2 : index
    %c0_30 = arith.constant 0 : index
    %c0_31 = arith.constant 0 : index
    %51 = vector.load %arg3[%c2, %c0_30, %c0_31] : memref<9x32x128xbf16, #tpu.memory_space<vmem>>, vector<1x32x128xbf16>
    %52 = vector.shape_cast %51 : vector<1x32x128xbf16> to vector<32x128xbf16>
    %cst_32 = arith.constant dense<0.000000e+00> : vector<32x128xf32>
    %53 = tpu.matmul %52, %33, %cst_32 {dimension_numbers = #tpu.dot_dimension_numbers<[1], [0], [0], [1], [0, 0, 1, 1], [], []>} : vector<32x128xbf16>, vector<128x128xbf16>, vector<32x128xf32> -> vector<32x128xf32>
    %54 = arith.truncf %53 : vector<32x128xf32> to vector<32x128xbf16>
    %c2_33 = arith.constant 2 : index
    %c0_34 = arith.constant 0 : index
    %c0_35 = arith.constant 0 : index
    %55 = vector.load %arg4[%c2_33, %c0_34, %c0_35] : memref<9x128x128xbf16, #tpu.memory_space<vmem>>, vector<1x128x128xbf16>
    %56 = vector.shape_cast %55 : vector<1x128x128xbf16> to vector<128x128xbf16>
    %cst_36 = arith.constant dense<0.000000e+00> : vector<32x128xf32>
    %57 = tpu.matmul %54, %56, %cst_36 {dimension_numbers = #tpu.dot_dimension_numbers<[1], [0], [0], [1], [0, 0, 1, 1], [], []>} : vector<32x128xbf16>, vector<128x128xbf16>, vector<32x128xf32> -> vector<32x128xf32>
    %58 = arith.addf %50, %57 : vector<32x128xf32>
    %c3 = arith.constant 3 : index
    %c0_37 = arith.constant 0 : index
    %c0_38 = arith.constant 0 : index
    %59 = vector.load %arg3[%c3, %c0_37, %c0_38] : memref<9x32x128xbf16, #tpu.memory_space<vmem>>, vector<1x32x128xbf16>
    %60 = vector.shape_cast %59 : vector<1x32x128xbf16> to vector<32x128xbf16>
    %cst_39 = arith.constant dense<0.000000e+00> : vector<32x128xf32>
    %61 = tpu.matmul %60, %33, %cst_39 {dimension_numbers = #tpu.dot_dimension_numbers<[1], [0], [0], [1], [0, 0, 1, 1], [], []>} : vector<32x128xbf16>, vector<128x128xbf16>, vector<32x128xf32> -> vector<32x128xf32>
    %62 = arith.truncf %61 : vector<32x128xf32> to vector<32x128xbf16>
    %c3_40 = arith.constant 3 : index
    %c0_41 = arith.constant 0 : index
    %c0_42 = arith.constant 0 : index
    %63 = vector.load %arg4[%c3_40, %c0_41, %c0_42] : memref<9x128x128xbf16, #tpu.memory_space<vmem>>, vector<1x128x128xbf16>
    %64 = vector.shape_cast %63 : vector<1x128x128xbf16> to vector<128x128xbf16>
    %cst_43 = arith.constant dense<0.000000e+00> : vector<32x128xf32>
    %65 = tpu.matmul %62, %64, %cst_43 {dimension_numbers = #tpu.dot_dimension_numbers<[1], [0], [0], [1], [0, 0, 1, 1], [], []>} : vector<32x128xbf16>, vector<128x128xbf16>, vector<32x128xf32> -> vector<32x128xf32>
    %66 = arith.addf %58, %65 : vector<32x128xf32>
    %c4 = arith.constant 4 : index
    %c0_44 = arith.constant 0 : index
    %c0_45 = arith.constant 0 : index
    %67 = vector.load %arg3[%c4, %c0_44, %c0_45] : memref<9x32x128xbf16, #tpu.memory_space<vmem>>, vector<1x32x128xbf16>
    %68 = vector.shape_cast %67 : vector<1x32x128xbf16> to vector<32x128xbf16>
    %cst_46 = arith.constant dense<0.000000e+00> : vector<32x128xf32>
    %69 = tpu.matmul %68, %33, %cst_46 {dimension_numbers = #tpu.dot_dimension_numbers<[1], [0], [0], [1], [0, 0, 1, 1], [], []>} : vector<32x128xbf16>, vector<128x128xbf16>, vector<32x128xf32> -> vector<32x128xf32>
    %70 = arith.truncf %69 : vector<32x128xf32> to vector<32x128xbf16>
    %c4_47 = arith.constant 4 : index
    %c0_48 = arith.constant 0 : index
    %c0_49 = arith.constant 0 : index
    %71 = vector.load %arg4[%c4_47, %c0_48, %c0_49] : memref<9x128x128xbf16, #tpu.memory_space<vmem>>, vector<1x128x128xbf16>
    %72 = vector.shape_cast %71 : vector<1x128x128xbf16> to vector<128x128xbf16>
    %cst_50 = arith.constant dense<0.000000e+00> : vector<32x128xf32>
    %73 = tpu.matmul %70, %72, %cst_50 {dimension_numbers = #tpu.dot_dimension_numbers<[1], [0], [0], [1], [0, 0, 1, 1], [], []>} : vector<32x128xbf16>, vector<128x128xbf16>, vector<32x128xf32> -> vector<32x128xf32>
    %74 = arith.addf %66, %73 : vector<32x128xf32>
    %c5 = arith.constant 5 : index
    %c0_51 = arith.constant 0 : index
    %c0_52 = arith.constant 0 : index
    %75 = vector.load %arg3[%c5, %c0_51, %c0_52] : memref<9x32x128xbf16, #tpu.memory_space<vmem>>, vector<1x32x128xbf16>
    %76 = vector.shape_cast %75 : vector<1x32x128xbf16> to vector<32x128xbf16>
    %cst_53 = arith.constant dense<0.000000e+00> : vector<32x128xf32>
    %77 = tpu.matmul %76, %33, %cst_53 {dimension_numbers = #tpu.dot_dimension_numbers<[1], [0], [0], [1], [0, 0, 1, 1], [], []>} : vector<32x128xbf16>, vector<128x128xbf16>, vector<32x128xf32> -> vector<32x128xf32>
    %78 = arith.truncf %77 : vector<32x128xf32> to vector<32x128xbf16>
    %c5_54 = arith.constant 5 : index
    %c0_55 = arith.constant 0 : index
    %c0_56 = arith.constant 0 : index
    %79 = vector.load %arg4[%c5_54, %c0_55, %c0_56] : memref<9x128x128xbf16, #tpu.memory_space<vmem>>, vector<1x128x128xbf16>
    %80 = vector.shape_cast %79 : vector<1x128x128xbf16> to vector<128x128xbf16>
    %cst_57 = arith.constant dense<0.000000e+00> : vector<32x128xf32>
    %81 = tpu.matmul %78, %80, %cst_57 {dimension_numbers = #tpu.dot_dimension_numbers<[1], [0], [0], [1], [0, 0, 1, 1], [], []>} : vector<32x128xbf16>, vector<128x128xbf16>, vector<32x128xf32> -> vector<32x128xf32>
    %82 = arith.addf %74, %81 : vector<32x128xf32>
    %c6 = arith.constant 6 : index
    %c0_58 = arith.constant 0 : index
    %c0_59 = arith.constant 0 : index
    %83 = vector.load %arg3[%c6, %c0_58, %c0_59] : memref<9x32x128xbf16, #tpu.memory_space<vmem>>, vector<1x32x128xbf16>
    %84 = vector.shape_cast %83 : vector<1x32x128xbf16> to vector<32x128xbf16>
    %cst_60 = arith.constant dense<0.000000e+00> : vector<32x128xf32>
    %85 = tpu.matmul %84, %33, %cst_60 {dimension_numbers = #tpu.dot_dimension_numbers<[1], [0], [0], [1], [0, 0, 1, 1], [], []>} : vector<32x128xbf16>, vector<128x128xbf16>, vector<32x128xf32> -> vector<32x128xf32>
    %86 = arith.truncf %85 : vector<32x128xf32> to vector<32x128xbf16>
    %c6_61 = arith.constant 6 : index
    %c0_62 = arith.constant 0 : index
    %c0_63 = arith.constant 0 : index
    %87 = vector.load %arg4[%c6_61, %c0_62, %c0_63] : memref<9x128x128xbf16, #tpu.memory_space<vmem>>, vector<1x128x128xbf16>
    %88 = vector.shape_cast %87 : vector<1x128x128xbf16> to vector<128x128xbf16>
    %cst_64 = arith.constant dense<0.000000e+00> : vector<32x128xf32>
    %89 = tpu.matmul %86, %88, %cst_64 {dimension_numbers = #tpu.dot_dimension_numbers<[1], [0], [0], [1], [0, 0, 1, 1], [], []>} : vector<32x128xbf16>, vector<128x128xbf16>, vector<32x128xf32> -> vector<32x128xf32>
    %90 = arith.addf %82, %89 : vector<32x128xf32>
    %c7 = arith.constant 7 : index
    %c0_65 = arith.constant 0 : index
    %c0_66 = arith.constant 0 : index
    %91 = vector.load %arg3[%c7, %c0_65, %c0_66] : memref<9x32x128xbf16, #tpu.memory_space<vmem>>, vector<1x32x128xbf16>
    %92 = vector.shape_cast %91 : vector<1x32x128xbf16> to vector<32x128xbf16>
    %cst_67 = arith.constant dense<0.000000e+00> : vector<32x128xf32>
    %93 = tpu.matmul %92, %33, %cst_67 {dimension_numbers = #tpu.dot_dimension_numbers<[1], [0], [0], [1], [0, 0, 1, 1], [], []>} : vector<32x128xbf16>, vector<128x128xbf16>, vector<32x128xf32> -> vector<32x128xf32>
    %94 = arith.truncf %93 : vector<32x128xf32> to vector<32x128xbf16>
    %c7_68 = arith.constant 7 : index
    %c0_69 = arith.constant 0 : index
    %c0_70 = arith.constant 0 : index
    %95 = vector.load %arg4[%c7_68, %c0_69, %c0_70] : memref<9x128x128xbf16, #tpu.memory_space<vmem>>, vector<1x128x128xbf16>
    %96 = vector.shape_cast %95 : vector<1x128x128xbf16> to vector<128x128xbf16>
    %cst_71 = arith.constant dense<0.000000e+00> : vector<32x128xf32>
    %97 = tpu.matmul %94, %96, %cst_71 {dimension_numbers = #tpu.dot_dimension_numbers<[1], [0], [0], [1], [0, 0, 1, 1], [], []>} : vector<32x128xbf16>, vector<128x128xbf16>, vector<32x128xf32> -> vector<32x128xf32>
    %98 = arith.addf %90, %97 : vector<32x128xf32>
    %c8 = arith.constant 8 : index
    %c0_72 = arith.constant 0 : index
    %c0_73 = arith.constant 0 : index
    %99 = vector.load %arg3[%c8, %c0_72, %c0_73] : memref<9x32x128xbf16, #tpu.memory_space<vmem>>, vector<1x32x128xbf16>
    %100 = vector.shape_cast %99 : vector<1x32x128xbf16> to vector<32x128xbf16>
    %cst_74 = arith.constant dense<0.000000e+00> : vector<32x128xf32>
    %101 = tpu.matmul %100, %33, %cst_74 {dimension_numbers = #tpu.dot_dimension_numbers<[1], [0], [0], [1], [0, 0, 1, 1], [], []>} : vector<32x128xbf16>, vector<128x128xbf16>, vector<32x128xf32> -> vector<32x128xf32>
    %102 = arith.truncf %101 : vector<32x128xf32> to vector<32x128xbf16>
    %c8_75 = arith.constant 8 : index
    %c0_76 = arith.constant 0 : index
    %c0_77 = arith.constant 0 : index
    %103 = vector.load %arg4[%c8_75, %c0_76, %c0_77] : memref<9x128x128xbf16, #tpu.memory_space<vmem>>, vector<1x128x128xbf16>
    %104 = vector.shape_cast %103 : vector<1x128x128xbf16> to vector<128x128xbf16>
    %cst_78 = arith.constant dense<0.000000e+00> : vector<32x128xf32>
    %105 = tpu.matmul %102, %104, %cst_78 {dimension_numbers = #tpu.dot_dimension_numbers<[1], [0], [0], [1], [0, 0, 1, 1], [], []>} : vector<32x128xbf16>, vector<128x128xbf16>, vector<32x128xf32> -> vector<32x128xf32>
    %106 = arith.addf %98, %105 : vector<32x128xf32>
    %c2_79 = arith.constant 2 : index
    %c0_80 = arith.constant 0 : index
    %107 = vector.load %arg7[%c2_79, %c0_80] : memref<8x128xf32, #tpu.memory_space<vmem>>, vector<1x128xf32>
    %c3_81 = arith.constant 3 : index
    %c0_82 = arith.constant 0 : index
    %108 = vector.load %arg7[%c3_81, %c0_82] : memref<8x128xf32, #tpu.memory_space<vmem>>, vector<1x128xf32>
    %cst_83 = arith.constant dense<0.000000e+00> : vector<128xf32>
    %109 = vector.multi_reduction <add>, %106, %cst_83 [0] : vector<32x128xf32> to vector<128xf32>
    %110 = vector.shape_cast %109 : vector<128xf32> to vector<1x128xf32>
    %cst_84 = arith.constant 3.200000e+01 : f32
    %111 = vector.broadcast %cst_84 : f32 to vector<1x128xf32>
    %112 = arith.divf %110, %111 : vector<1x128xf32>
    %113 = vector.broadcast %112 : vector<1x128xf32> to vector<32x128xf32>
    %114 = arith.subf %106, %113 : vector<32x128xf32>
    %115 = vector.broadcast %112 : vector<1x128xf32> to vector<32x128xf32>
    %116 = arith.subf %106, %115 : vector<32x128xf32>
    %117 = arith.mulf %114, %116 : vector<32x128xf32>
    %cst_85 = arith.constant dense<0.000000e+00> : vector<128xf32>
    %118 = vector.multi_reduction <add>, %117, %cst_85 [0] : vector<32x128xf32> to vector<128xf32>
    %119 = vector.shape_cast %118 : vector<128xf32> to vector<1x128xf32>
    %cst_86 = arith.constant 3.200000e+01 : f32
    %120 = vector.broadcast %cst_86 : f32 to vector<1x128xf32>
    %121 = arith.divf %119, %120 : vector<1x128xf32>
    %cst_87 = arith.constant 9.99999974E-6 : f32
    %122 = vector.broadcast %cst_87 : f32 to vector<1x128xf32>
    %123 = arith.addf %121, %122 : vector<1x128xf32>
    %124 = math.rsqrt %123 : vector<1x128xf32>
    %125 = arith.mulf %107, %124 : vector<1x128xf32>
    %126 = arith.mulf %112, %125 : vector<1x128xf32>
    %127 = arith.subf %108, %126 : vector<1x128xf32>
    %128 = vector.broadcast %125 : vector<1x128xf32> to vector<32x128xf32>
    %129 = arith.mulf %106, %128 : vector<32x128xf32>
    %130 = vector.broadcast %127 : vector<1x128xf32> to vector<32x128xf32>
    %131 = arith.addf %129, %130 : vector<32x128xf32>
    %cst_88 = arith.constant 0.000000e+00 : f32
    %132 = vector.broadcast %cst_88 : f32 to vector<32x128xf32>
    %133 = arith.cmpf ogt, %131, %132 : vector<32x128xf32>
    %cst_89 = arith.constant 2.000000e-01 : f32
    %134 = vector.broadcast %cst_89 : f32 to vector<32x128xf32>
    %135 = arith.mulf %134, %131 : vector<32x128xf32>
    %136 = arith.select %133, %131, %135 : vector<32x128xi1>, vector<32x128xf32>
    %137 = arith.truncf %136 : vector<32x128xf32> to vector<32x128xbf16>
    %cst_90 = arith.constant 0.000000e+00 : f32
    %138 = vector.broadcast %cst_90 : f32 to vector<32x128xf32>
    %c0_91 = arith.constant 0 : index
    %c0_92 = arith.constant 0 : index
    %c0_93 = arith.constant 0 : index
    %139 = vector.load %arg5[%c0_91, %c0_92, %c0_93] : memref<9x32x32xbf16, #tpu.memory_space<vmem>>, vector<1x32x32xbf16>
    %140 = vector.shape_cast %139 : vector<1x32x32xbf16> to vector<32x32xbf16>
    %cst_94 = arith.constant dense<0.000000e+00> : vector<32x128xf32>
    %141 = tpu.matmul %140, %137, %cst_94 {dimension_numbers = #tpu.dot_dimension_numbers<[1], [0], [0], [1], [0, 0, 1, 1], [], []>} : vector<32x32xbf16>, vector<32x128xbf16>, vector<32x128xf32> -> vector<32x128xf32>
    %142 = arith.truncf %141 : vector<32x128xf32> to vector<32x128xbf16>
    %c0_95 = arith.constant 0 : index
    %c0_96 = arith.constant 0 : index
    %c0_97 = arith.constant 0 : index
    %143 = vector.load %arg6[%c0_95, %c0_96, %c0_97] : memref<9x128x128xbf16, #tpu.memory_space<vmem>>, vector<1x128x128xbf16>
    %144 = vector.shape_cast %143 : vector<1x128x128xbf16> to vector<128x128xbf16>
    %cst_98 = arith.constant dense<0.000000e+00> : vector<32x128xf32>
    %145 = tpu.matmul %142, %144, %cst_98 {dimension_numbers = #tpu.dot_dimension_numbers<[1], [0], [0], [1], [0, 0, 1, 1], [], []>} : vector<32x128xbf16>, vector<128x128xbf16>, vector<32x128xf32> -> vector<32x128xf32>
    %146 = arith.addf %138, %145 : vector<32x128xf32>
    %c1_99 = arith.constant 1 : index
    %c0_100 = arith.constant 0 : index
    %c0_101 = arith.constant 0 : index
    %147 = vector.load %arg5[%c1_99, %c0_100, %c0_101] : memref<9x32x32xbf16, #tpu.memory_space<vmem>>, vector<1x32x32xbf16>
    %148 = vector.shape_cast %147 : vector<1x32x32xbf16> to vector<32x32xbf16>
    %cst_102 = arith.constant dense<0.000000e+00> : vector<32x128xf32>
    %149 = tpu.matmul %148, %137, %cst_102 {dimension_numbers = #tpu.dot_dimension_numbers<[1], [0], [0], [1], [0, 0, 1, 1], [], []>} : vector<32x32xbf16>, vector<32x128xbf16>, vector<32x128xf32> -> vector<32x128xf32>
    %150 = arith.truncf %149 : vector<32x128xf32> to vector<32x128xbf16>
    %c1_103 = arith.constant 1 : index
    %c0_104 = arith.constant 0 : index
    %c0_105 = arith.constant 0 : index
    %151 = vector.load %arg6[%c1_103, %c0_104, %c0_105] : memref<9x128x128xbf16, #tpu.memory_space<vmem>>, vector<1x128x128xbf16>
    %152 = vector.shape_cast %151 : vector<1x128x128xbf16> to vector<128x128xbf16>
    %cst_106 = arith.constant dense<0.000000e+00> : vector<32x128xf32>
    %153 = tpu.matmul %150, %152, %cst_106 {dimension_numbers = #tpu.dot_dimension_numbers<[1], [0], [0], [1], [0, 0, 1, 1], [], []>} : vector<32x128xbf16>, vector<128x128xbf16>, vector<32x128xf32> -> vector<32x128xf32>
    %154 = arith.addf %146, %153 : vector<32x128xf32>
    %c2_107 = arith.constant 2 : index
    %c0_108 = arith.constant 0 : index
    %c0_109 = arith.constant 0 : index
    %155 = vector.load %arg5[%c2_107, %c0_108, %c0_109] : memref<9x32x32xbf16, #tpu.memory_space<vmem>>, vector<1x32x32xbf16>
    %156 = vector.shape_cast %155 : vector<1x32x32xbf16> to vector<32x32xbf16>
    %cst_110 = arith.constant dense<0.000000e+00> : vector<32x128xf32>
    %157 = tpu.matmul %156, %137, %cst_110 {dimension_numbers = #tpu.dot_dimension_numbers<[1], [0], [0], [1], [0, 0, 1, 1], [], []>} : vector<32x32xbf16>, vector<32x128xbf16>, vector<32x128xf32> -> vector<32x128xf32>
    %158 = arith.truncf %157 : vector<32x128xf32> to vector<32x128xbf16>
    %c2_111 = arith.constant 2 : index
    %c0_112 = arith.constant 0 : index
    %c0_113 = arith.constant 0 : index
    %159 = vector.load %arg6[%c2_111, %c0_112, %c0_113] : memref<9x128x128xbf16, #tpu.memory_space<vmem>>, vector<1x128x128xbf16>
    %160 = vector.shape_cast %159 : vector<1x128x128xbf16> to vector<128x128xbf16>
    %cst_114 = arith.constant dense<0.000000e+00> : vector<32x128xf32>
    %161 = tpu.matmul %158, %160, %cst_114 {dimension_numbers = #tpu.dot_dimension_numbers<[1], [0], [0], [1], [0, 0, 1, 1], [], []>} : vector<32x128xbf16>, vector<128x128xbf16>, vector<32x128xf32> -> vector<32x128xf32>
    %162 = arith.addf %154, %161 : vector<32x128xf32>
    %c3_115 = arith.constant 3 : index
    %c0_116 = arith.constant 0 : index
    %c0_117 = arith.constant 0 : index
    %163 = vector.load %arg5[%c3_115, %c0_116, %c0_117] : memref<9x32x32xbf16, #tpu.memory_space<vmem>>, vector<1x32x32xbf16>
    %164 = vector.shape_cast %163 : vector<1x32x32xbf16> to vector<32x32xbf16>
    %cst_118 = arith.constant dense<0.000000e+00> : vector<32x128xf32>
    %165 = tpu.matmul %164, %137, %cst_118 {dimension_numbers = #tpu.dot_dimension_numbers<[1], [0], [0], [1], [0, 0, 1, 1], [], []>} : vector<32x32xbf16>, vector<32x128xbf16>, vector<32x128xf32> -> vector<32x128xf32>
    %166 = arith.truncf %165 : vector<32x128xf32> to vector<32x128xbf16>
    %c3_119 = arith.constant 3 : index
    %c0_120 = arith.constant 0 : index
    %c0_121 = arith.constant 0 : index
    %167 = vector.load %arg6[%c3_119, %c0_120, %c0_121] : memref<9x128x128xbf16, #tpu.memory_space<vmem>>, vector<1x128x128xbf16>
    %168 = vector.shape_cast %167 : vector<1x128x128xbf16> to vector<128x128xbf16>
    %cst_122 = arith.constant dense<0.000000e+00> : vector<32x128xf32>
    %169 = tpu.matmul %166, %168, %cst_122 {dimension_numbers = #tpu.dot_dimension_numbers<[1], [0], [0], [1], [0, 0, 1, 1], [], []>} : vector<32x128xbf16>, vector<128x128xbf16>, vector<32x128xf32> -> vector<32x128xf32>
    %170 = arith.addf %162, %169 : vector<32x128xf32>
    %c4_123 = arith.constant 4 : index
    %c0_124 = arith.constant 0 : index
    %c0_125 = arith.constant 0 : index
    %171 = vector.load %arg5[%c4_123, %c0_124, %c0_125] : memref<9x32x32xbf16, #tpu.memory_space<vmem>>, vector<1x32x32xbf16>
    %172 = vector.shape_cast %171 : vector<1x32x32xbf16> to vector<32x32xbf16>
    %cst_126 = arith.constant dense<0.000000e+00> : vector<32x128xf32>
    %173 = tpu.matmul %172, %137, %cst_126 {dimension_numbers = #tpu.dot_dimension_numbers<[1], [0], [0], [1], [0, 0, 1, 1], [], []>} : vector<32x32xbf16>, vector<32x128xbf16>, vector<32x128xf32> -> vector<32x128xf32>
    %174 = arith.truncf %173 : vector<32x128xf32> to vector<32x128xbf16>
    %c4_127 = arith.constant 4 : index
    %c0_128 = arith.constant 0 : index
    %c0_129 = arith.constant 0 : index
    %175 = vector.load %arg6[%c4_127, %c0_128, %c0_129] : memref<9x128x128xbf16, #tpu.memory_space<vmem>>, vector<1x128x128xbf16>
    %176 = vector.shape_cast %175 : vector<1x128x128xbf16> to vector<128x128xbf16>
    %cst_130 = arith.constant dense<0.000000e+00> : vector<32x128xf32>
    %177 = tpu.matmul %174, %176, %cst_130 {dimension_numbers = #tpu.dot_dimension_numbers<[1], [0], [0], [1], [0, 0, 1, 1], [], []>} : vector<32x128xbf16>, vector<128x128xbf16>, vector<32x128xf32> -> vector<32x128xf32>
    %178 = arith.addf %170, %177 : vector<32x128xf32>
    %c5_131 = arith.constant 5 : index
    %c0_132 = arith.constant 0 : index
    %c0_133 = arith.constant 0 : index
    %179 = vector.load %arg5[%c5_131, %c0_132, %c0_133] : memref<9x32x32xbf16, #tpu.memory_space<vmem>>, vector<1x32x32xbf16>
    %180 = vector.shape_cast %179 : vector<1x32x32xbf16> to vector<32x32xbf16>
    %cst_134 = arith.constant dense<0.000000e+00> : vector<32x128xf32>
    %181 = tpu.matmul %180, %137, %cst_134 {dimension_numbers = #tpu.dot_dimension_numbers<[1], [0], [0], [1], [0, 0, 1, 1], [], []>} : vector<32x32xbf16>, vector<32x128xbf16>, vector<32x128xf32> -> vector<32x128xf32>
    %182 = arith.truncf %181 : vector<32x128xf32> to vector<32x128xbf16>
    %c5_135 = arith.constant 5 : index
    %c0_136 = arith.constant 0 : index
    %c0_137 = arith.constant 0 : index
    %183 = vector.load %arg6[%c5_135, %c0_136, %c0_137] : memref<9x128x128xbf16, #tpu.memory_space<vmem>>, vector<1x128x128xbf16>
    %184 = vector.shape_cast %183 : vector<1x128x128xbf16> to vector<128x128xbf16>
    %cst_138 = arith.constant dense<0.000000e+00> : vector<32x128xf32>
    %185 = tpu.matmul %182, %184, %cst_138 {dimension_numbers = #tpu.dot_dimension_numbers<[1], [0], [0], [1], [0, 0, 1, 1], [], []>} : vector<32x128xbf16>, vector<128x128xbf16>, vector<32x128xf32> -> vector<32x128xf32>
    %186 = arith.addf %178, %185 : vector<32x128xf32>
    %c6_139 = arith.constant 6 : index
    %c0_140 = arith.constant 0 : index
    %c0_141 = arith.constant 0 : index
    %187 = vector.load %arg5[%c6_139, %c0_140, %c0_141] : memref<9x32x32xbf16, #tpu.memory_space<vmem>>, vector<1x32x32xbf16>
    %188 = vector.shape_cast %187 : vector<1x32x32xbf16> to vector<32x32xbf16>
    %cst_142 = arith.constant dense<0.000000e+00> : vector<32x128xf32>
    %189 = tpu.matmul %188, %137, %cst_142 {dimension_numbers = #tpu.dot_dimension_numbers<[1], [0], [0], [1], [0, 0, 1, 1], [], []>} : vector<32x32xbf16>, vector<32x128xbf16>, vector<32x128xf32> -> vector<32x128xf32>
    %190 = arith.truncf %189 : vector<32x128xf32> to vector<32x128xbf16>
    %c6_143 = arith.constant 6 : index
    %c0_144 = arith.constant 0 : index
    %c0_145 = arith.constant 0 : index
    %191 = vector.load %arg6[%c6_143, %c0_144, %c0_145] : memref<9x128x128xbf16, #tpu.memory_space<vmem>>, vector<1x128x128xbf16>
    %192 = vector.shape_cast %191 : vector<1x128x128xbf16> to vector<128x128xbf16>
    %cst_146 = arith.constant dense<0.000000e+00> : vector<32x128xf32>
    %193 = tpu.matmul %190, %192, %cst_146 {dimension_numbers = #tpu.dot_dimension_numbers<[1], [0], [0], [1], [0, 0, 1, 1], [], []>} : vector<32x128xbf16>, vector<128x128xbf16>, vector<32x128xf32> -> vector<32x128xf32>
    %194 = arith.addf %186, %193 : vector<32x128xf32>
    %c7_147 = arith.constant 7 : index
    %c0_148 = arith.constant 0 : index
    %c0_149 = arith.constant 0 : index
    %195 = vector.load %arg5[%c7_147, %c0_148, %c0_149] : memref<9x32x32xbf16, #tpu.memory_space<vmem>>, vector<1x32x32xbf16>
    %196 = vector.shape_cast %195 : vector<1x32x32xbf16> to vector<32x32xbf16>
    %cst_150 = arith.constant dense<0.000000e+00> : vector<32x128xf32>
    %197 = tpu.matmul %196, %137, %cst_150 {dimension_numbers = #tpu.dot_dimension_numbers<[1], [0], [0], [1], [0, 0, 1, 1], [], []>} : vector<32x32xbf16>, vector<32x128xbf16>, vector<32x128xf32> -> vector<32x128xf32>
    %198 = arith.truncf %197 : vector<32x128xf32> to vector<32x128xbf16>
    %c7_151 = arith.constant 7 : index
    %c0_152 = arith.constant 0 : index
    %c0_153 = arith.constant 0 : index
    %199 = vector.load %arg6[%c7_151, %c0_152, %c0_153] : memref<9x128x128xbf16, #tpu.memory_space<vmem>>, vector<1x128x128xbf16>
    %200 = vector.shape_cast %199 : vector<1x128x128xbf16> to vector<128x128xbf16>
    %cst_154 = arith.constant dense<0.000000e+00> : vector<32x128xf32>
    %201 = tpu.matmul %198, %200, %cst_154 {dimension_numbers = #tpu.dot_dimension_numbers<[1], [0], [0], [1], [0, 0, 1, 1], [], []>} : vector<32x128xbf16>, vector<128x128xbf16>, vector<32x128xf32> -> vector<32x128xf32>
    %202 = arith.addf %194, %201 : vector<32x128xf32>
    %c8_155 = arith.constant 8 : index
    %c0_156 = arith.constant 0 : index
    %c0_157 = arith.constant 0 : index
    %203 = vector.load %arg5[%c8_155, %c0_156, %c0_157] : memref<9x32x32xbf16, #tpu.memory_space<vmem>>, vector<1x32x32xbf16>
    %204 = vector.shape_cast %203 : vector<1x32x32xbf16> to vector<32x32xbf16>
    %cst_158 = arith.constant dense<0.000000e+00> : vector<32x128xf32>
    %205 = tpu.matmul %204, %137, %cst_158 {dimension_numbers = #tpu.dot_dimension_numbers<[1], [0], [0], [1], [0, 0, 1, 1], [], []>} : vector<32x32xbf16>, vector<32x128xbf16>, vector<32x128xf32> -> vector<32x128xf32>
    %206 = arith.truncf %205 : vector<32x128xf32> to vector<32x128xbf16>
    %c8_159 = arith.constant 8 : index
    %c0_160 = arith.constant 0 : index
    %c0_161 = arith.constant 0 : index
    %207 = vector.load %arg6[%c8_159, %c0_160, %c0_161] : memref<9x128x128xbf16, #tpu.memory_space<vmem>>, vector<1x128x128xbf16>
    %208 = vector.shape_cast %207 : vector<1x128x128xbf16> to vector<128x128xbf16>
    %cst_162 = arith.constant dense<0.000000e+00> : vector<32x128xf32>
    %209 = tpu.matmul %206, %208, %cst_162 {dimension_numbers = #tpu.dot_dimension_numbers<[1], [0], [0], [1], [0, 0, 1, 1], [], []>} : vector<32x128xbf16>, vector<128x128xbf16>, vector<32x128xf32> -> vector<32x128xf32>
    %210 = arith.addf %202, %209 : vector<32x128xf32>
    %c4_163 = arith.constant 4 : index
    %c0_164 = arith.constant 0 : index
    %211 = vector.load %arg7[%c4_163, %c0_164] : memref<8x128xf32, #tpu.memory_space<vmem>>, vector<1x128xf32>
    %212 = vector.broadcast %211 : vector<1x128xf32> to vector<32x128xf32>
    %213 = arith.addf %210, %212 : vector<32x128xf32>
    %214 = arith.negf %213 : vector<32x128xf32>
    %215 = math.exp %214 : vector<32x128xf32>
    %cst_165 = arith.constant 1.000000e+00 : f32
    %216 = vector.broadcast %cst_165 : f32 to vector<32x128xf32>
    %217 = arith.addf %216, %215 : vector<32x128xf32>
    %218 = arith.divf %216, %217 : vector<32x128xf32>
    %c0_166 = arith.constant 0 : index
    %c0_167 = arith.constant 0 : index
    %219 = vector.load %arg8[%c0_166, %c0_167] : memref<32x128xf32, #tpu.memory_space<vmem>>, vector<32x128xf32>
    tpu.vector_store %arg8[%c0_166, %c0_167], %218 {strides = array<i32>} : memref<32x128xf32, #tpu.memory_space<vmem>>, vector<32x128xf32>,
    return
  }
  func.func @transform_0(%arg0: i32) -> (i32, i32) {
    %c0_i32 = arith.constant 0 : i32
    %c0_i32_0 = arith.constant 0 : i32
    %c0_i32_1 = arith.constant 0 : i32
    return %c0_i32, %c0_i32_0 : i32, i32
  }
  func.func @transform_1(%arg0: i32) -> (i32, i32) {
    %c0_i32 = arith.constant 0 : i32
    %c0_i32_0 = arith.constant 0 : i32
    %c0_i32_1 = arith.constant 0 : i32
    return %c0_i32, %c0_i32_0 : i32, i32
  }
  func.func @transform_2(%arg0: i32) -> (i32, i32, i32) {
    %c0_i32 = arith.constant 0 : i32
    %c0_i32_0 = arith.constant 0 : i32
    %c0_i32_1 = arith.constant 0 : i32
    %c0_i32_2 = arith.constant 0 : i32
    return %c0_i32, %c0_i32_0, %c0_i32_1 : i32, i32, i32
  }
  func.func @transform_3(%arg0: i32) -> (i32, i32, i32) {
    %c0_i32 = arith.constant 0 : i32
    %c0_i32_0 = arith.constant 0 : i32
    %c0_i32_1 = arith.constant 0 : i32
    %c0_i32_2 = arith.constant 0 : i32
    return %c0_i32, %c0_i32_0, %c0_i32_1 : i32, i32, i32
  }
  func.func @transform_4(%arg0: i32) -> (i32, i32, i32) {
    %c0_i32 = arith.constant 0 : i32
    %c0_i32_0 = arith.constant 0 : i32
    %c0_i32_1 = arith.constant 0 : i32
    %c0_i32_2 = arith.constant 0 : i32
    return %c0_i32, %c0_i32_0, %c0_i32_1 : i32, i32, i32
  }
  func.func @transform_5(%arg0: i32) -> (i32, i32, i32) {
    %c0_i32 = arith.constant 0 : i32
    %c0_i32_0 = arith.constant 0 : i32
    %c0_i32_1 = arith.constant 0 : i32
    %c0_i32_2 = arith.constant 0 : i32
    return %c0_i32, %c0_i32_0, %c0_i32_1 : i32, i32, i32
  }
  func.func @transform_6(%arg0: i32) -> (i32, i32) {
    %c0_i32 = arith.constant 0 : i32
    %c0_i32_0 = arith.constant 0 : i32
    %c0_i32_1 = arith.constant 0 : i32
    return %c0_i32, %c0_i32_0 : i32, i32
  }
  func.func @transform_7(%arg0: i32) -> (i32, i32) {
    %c0_i32 = arith.constant 0 : i32
    %c0_i32_0 = arith.constant 0 : i32
    %c0_i32_1 = arith.constant 0 : i32
    return %c0_i32, %c0_i32_0 : i32, i32
  }
}

</mosaic_0001>

<llo_original>
// kernel: tpu_custom_call.1
$region0: #{tpu_custom_call.1}
  #allocation0 [shape = 'u32[]', space=smem, size = 0x4, offset = 0x4, fixed_abs, tag = 'smem constant byte address 0x4 - core index']
  #allocation1 [shape = 'u32[144,128]{1,0:T(1,128)}', space=vmem, size = 0x12000, scoped, tag = 'internal scratch']
  %s0 = inlined_call_operand.hbm [shape: bf16[128,128], index: 0, kind: input, shape index: {}]
  %s1 = inlined_call_operand.hbm [shape: bf16[128,128], index: 1, kind: input, shape index: {}]
  %s2 = inlined_call_operand.hbm [shape: bf16[9,32,128], index: 2, kind: input, shape index: {}]
  %s3 = inlined_call_operand.hbm [shape: bf16[9,128,128], index: 3, kind: input, shape index: {}]
  %s4 = inlined_call_operand.hbm [shape: bf16[9,32,32], index: 4, kind: input, shape index: {}]
  %s5 = inlined_call_operand.hbm [shape: bf16[9,128,128], index: 5, kind: input, shape index: {}]
  %s6 = inlined_call_operand.vmem [shape: f32[8,128], index: 6, kind: input, shape index: {}]
  %s7 = inlined_call_operand.hbm [shape: f32[32,128], index: 7, kind: output, shape index: {}]
  %s8 = sld [smem:[#allocation0]]
  $region62: #{tpu_custom_call.1} parent=0
    _
  %s10 = ssub.s32 1, %s8
  %s11 = scalar_select 0, %s10, %s8
  $region1: #{tpu_custom_call.1} parent=0
    #allocation2 [shape = 'u8[32768]{0}', space=vmem, size = 0x8000, scoped, tag = 'input window, operand 0, single buffered']
    #allocation3 [shape = 's32[1]{0}', space=sflag, size = 0x4, scoped, tag = 'scoped memory for tpu_custom_call.1']
    #allocation4 [shape = 's32[1]{0}', space=sflag, size = 0x4, scoped, tag = 'scoped memory for tpu_custom_call.1']
    #allocation5 [shape = 'u8[32768]{0}', space=vmem, size = 0x8000, scoped, tag = 'input window, operand 1, single buffered']
    #allocation6 [shape = 's32[1]{0}', space=sflag, size = 0x4, scoped, tag = 'scoped memory for tpu_custom_call.1']
    #allocation7 [shape = 'u8[73728]{0}', space=vmem, size = 0x12000, scoped, tag = 'input window, operand 2, single buffered']
    #allocation8 [shape = 'u8[294912]{0}', space=vmem, size = 0x48000, scoped, tag = 'input window, operand 3, single buffered']
    #allocation9 [shape = 's32[1]{0}', space=sflag, size = 0x4, scoped, tag = 'scoped memory for tpu_custom_call.1']
    #allocation10 [shape = 'u8[73728]{0}', space=vmem, size = 0x12000, scoped, tag = 'input window, operand 4, single buffered']
    #allocation11 [shape = 'u8[294912]{0}', space=vmem, size = 0x48000, scoped, tag = 'input window, operand 5, single buffered']
    #allocation12 [shape = 's32[1]{0}', space=sflag, size = 0x4, scoped, tag = 'scoped memory for tpu_custom_call.1']
    #allocation13 [shape = 'u8[16384]{0}', space=vmem, size = 0x4000, scoped, tag = 'output window, operand 0, single buffered']
    %12 = vsyncpa [#allocation3], 0
    %13 = vsyncpa [#allocation6], 0
    %14 = vsyncpa [#allocation9], 0
    %15 = vsyncpa [#allocation12], 0
    %16 = vsyncpa [#allocation4], 0
    // Predicated region
    $region2: #{tpu_custom_call.1} parent=1 // pred_check
      _
    $region3: #{tpu_custom_call.1} parent=1 // pred_check_branch
      %18 = sbr.rel (0) target = $region5
    $region4: #{tpu_custom_call.1} parent=1 // pred_region
      %s20 = ssub.s32 1024, 1024
      %21 = vsyncadd [#allocation3], %s20
      %s22 = sshll.u32 [#allocation2], 4
      %s23 = int_to_ptr.vmem [resolvable:$true] %s22
      %28 = dma.hbm_to_vmem [thread:$0]  %s0, 1024, %s23, [#allocation3], 64, 64, 4
    $region5: #{tpu_custom_call.1} parent=1 // pred_fallthru
      _
    // Predicated region
    $region6: #{tpu_custom_call.1} parent=1 // pred_check
      _
    $region7: #{tpu_custom_call.1} parent=1 // pred_check_branch
      %30 = sbr.rel (0) target = $region9
    $region8: #{tpu_custom_call.1} parent=1 // pred_region
      %s32 = ssub.s32 1024, 1024
      %33 = vsyncadd [#allocation6], %s32
      %s34 = sshll.u32 [#allocation5], 4
      %s35 = int_to_ptr.vmem [resolvable:$true] %s34
      %40 = dma.hbm_to_vmem [thread:$0]  %s1, 1024, %s35, [#allocation6], 64, 64, 4
    $region9: #{tpu_custom_call.1} parent=1 // pred_fallthru
      _
    // Predicated region
    $region10: #{tpu_custom_call.1} parent=1 // pred_check
      _
    $region11: #{tpu_custom_call.1} parent=1 // pred_check_branch
      %42 = sbr.rel (0) target = $region13
    $region12: #{tpu_custom_call.1} parent=1 // pred_region
      %s44 = ssub.s32 2304, 2304
      %45 = vsyncadd [#allocation6], %s44
      %s46 = sshll.u32 [#allocation7], 4
      %s47 = int_to_ptr.vmem [resolvable:$true] %s46
      %52 = dma.hbm_to_vmem [thread:$0]  %s2, 2304, %s47, [#allocation6], 64, 64, 4
    $region13: #{tpu_custom_call.1} parent=1 // pred_fallthru
      _
    // Predicated region
    $region14: #{tpu_custom_call.1} parent=1 // pred_check
      _
    $region15: #{tpu_custom_call.1} parent=1 // pred_check_branch
      %54 = sbr.rel (0) target = $region17
    $region16: #{tpu_custom_call.1} parent=1 // pred_region
      %s56 = ssub.s32 9216, 9216
      %57 = vsyncadd [#allocation9], %s56
      %s58 = sshll.u32 [#allocation8], 4
      %s59 = int_to_ptr.vmem [resolvable:$true] %s58
      %64 = dma.hbm_to_vmem [thread:$0]  %s3, 9216, %s59, [#allocation9], 64, 64, 4
    $region17: #{tpu_custom_call.1} parent=1 // pred_fallthru
      _
    // Predicated region
    $region18: #{tpu_custom_call.1} parent=1 // pred_check
      _
    $region19: #{tpu_custom_call.1} parent=1 // pred_check_branch
      %66 = sbr.rel (0) target = $region21
    $region20: #{tpu_custom_call.1} parent=1 // pred_region
      %s68 = ssub.s32 2304, 2304
      %69 = vsyncadd [#allocation9], %s68
      %s70 = sshll.u32 [#allocation10], 4
      %s71 = int_to_ptr.vmem [resolvable:$true] %s70
      %76 = dma.hbm_to_vmem [thread:$0]  %s4, 2304, %s71, [#allocation9], 64, 64, 4
    $region21: #{tpu_custom_call.1} parent=1 // pred_fallthru
      _
    // Predicated region
    $region22: #{tpu_custom_call.1} parent=1 // pred_check
      _
    $region23: #{tpu_custom_call.1} parent=1 // pred_check_branch
      %78 = sbr.rel (0) target = $region25
    $region24: #{tpu_custom_call.1} parent=1 // pred_region
      %s80 = ssub.s32 9216, 9216
      %81 = vsyncadd [#allocation12], %s80
      %s82 = sshll.u32 [#allocation11], 4
      %s83 = int_to_ptr.vmem [resolvable:$true] %s82
      %88 = dma.hbm_to_vmem [thread:$0]  %s5, 9216, %s83, [#allocation12], 64, 64, 4
    $region25: #{tpu_custom_call.1} parent=1 // pred_fallthru
      _
    // Predicated region
    $region26: #{tpu_custom_call.1} parent=1 // pred_check
      _
    $region27: #{tpu_custom_call.1} parent=1 // pred_check_branch
      %90 = sbr.rel (0) target = $region29
    $region28: #{tpu_custom_call.1} parent=1 // pred_region
      _
    $region29: #{tpu_custom_call.1} parent=1 // pred_fallthru
      _
    // Predicated region
    $region30: #{tpu_custom_call.1} parent=1 // pred_check
      _
    $region31: #{tpu_custom_call.1} parent=1 // pred_check_branch
      %92 = sbr.rel (0) target = $region33
    $region32: #{tpu_custom_call.1} parent=1 // pred_region
      %93 = dma.done [#allocation3], 1024
    $region33: #{tpu_custom_call.1} parent=1 // pred_fallthru
      _
    // Predicated region
    $region34: #{tpu_custom_call.1} parent=1 // pred_check
      _
    $region35: #{tpu_custom_call.1} parent=1 // pred_check_branch
      %95 = sbr.rel (0) target = $region37
    $region36: #{tpu_custom_call.1} parent=1 // pred_region
      %96 = dma.done [#allocation6], 1024
    $region37: #{tpu_custom_call.1} parent=1 // pred_fallthru
      _
    // Predicated region
    $region38: #{tpu_custom_call.1} parent=1 // pred_check
      _
    $region39: #{tpu_custom_call.1} parent=1 // pred_check_branch
      %98 = sbr.rel (0) target = $region41
    $region40: #{tpu_custom_call.1} parent=1 // pred_region
      %99 = dma.done [#allocation6], 2304
    $region41: #{tpu_custom_call.1} parent=1 // pred_fallthru
      _
    // Predicated region
    $region42: #{tpu_custom_call.1} parent=1 // pred_check
      _
    $region43: #{tpu_custom_call.1} parent=1 // pred_check_branch
      %101 = sbr.rel (0) target = $region45
    $region44: #{tpu_custom_call.1} parent=1 // pred_region
      %102 = dma.done [#allocation9], 9216
    $region45: #{tpu_custom_call.1} parent=1 // pred_fallthru
      _
    // Predicated region
    $region46: #{tpu_custom_call.1} parent=1 // pred_check
      _
    $region47: #{tpu_custom_call.1} parent=1 // pred_check_branch
      %104 = sbr.rel (0) target = $region49
    $region48: #{tpu_custom_call.1} parent=1 // pred_region
      %105 = dma.done [#allocation9], 2304
    $region49: #{tpu_custom_call.1} parent=1 // pred_fallthru
      _
    // Predicated region
    $region50: #{tpu_custom_call.1} parent=1 // pred_check
      _
    $region51: #{tpu_custom_call.1} parent=1 // pred_check_branch
      %107 = sbr.rel (0) target = $region53
    $region52: #{tpu_custom_call.1} parent=1 // pred_region
      %108 = dma.done [#allocation12], 9216
    $region53: #{tpu_custom_call.1} parent=1 // pred_fallthru
      _
    %v110 = vld [vmem:[#allocation2] sm:$0xf]
    %v111 = vld [vmem:[#allocation2 + $0x4] sm:$0xf]
    %v112 = vld [vmem:[#allocation2 + $0x8] sm:$0xf]
    %v113 = vld [vmem:[#allocation2 + $0xc] sm:$0xf]
    %v114 = vld [vmem:[#allocation2 + $0x10] sm:$0xf]
    %v115 = vld [vmem:[#allocation2 + $0x14] sm:$0xf]
    %v116 = vld [vmem:[#allocation2 + $0x18] sm:$0xf]
    %v117 = vld [vmem:[#allocation2 + $0x1c] sm:$0xf]
    %v118 = vld [vmem:[#allocation2 + $0x20] sm:$0xf]
    %v119 = vld [vmem:[#allocation2 + $0x24] sm:$0xf]
    %v120 = vld [vmem:[#allocation2 + $0x28] sm:$0xf]
    %v121 = vld [vmem:[#allocation2 + $0x2c] sm:$0xf]
    %v122 = vld [vmem:[#allocation2 + $0x30] sm:$0xf]
    %v123 = vld [vmem:[#allocation2 + $0x34] sm:$0xf]
    %v124 = vld [vmem:[#allocation2 + $0x38] sm:$0xf]
    %v125 = vld [vmem:[#allocation2 + $0x3c] sm:$0xf]
    %v126 = vld [vmem:[#allocation5] sm:$0xf]
    %v127 = vld [vmem:[#allocation5 + $0x4] sm:$0xf]
    %v128 = vld [vmem:[#allocation5 + $0x8] sm:$0xf]
    %v129 = vld [vmem:[#allocation5 + $0xc] sm:$0xf]
    %v130 = vld [vmem:[#allocation5 + $0x10] sm:$0xf]
    %v131 = vld [vmem:[#allocation5 + $0x14] sm:$0xf]
    %v132 = vld [vmem:[#allocation5 + $0x18] sm:$0xf]
    %v133 = vld [vmem:[#allocation5 + $0x1c] sm:$0xf]
    %v134 = vld [vmem:[#allocation5 + $0x20] sm:$0xf]
    %v135 = vld [vmem:[#allocation5 + $0x24] sm:$0xf]
    %v136 = vld [vmem:[#allocation5 + $0x28] sm:$0xf]
    %v137 = vld [vmem:[#allocation5 + $0x2c] sm:$0xf]
    %v138 = vld [vmem:[#allocation5 + $0x30] sm:$0xf]
    %v139 = vld [vmem:[#allocation5 + $0x34] sm:$0xf]
    %v140 = vld [vmem:[#allocation5 + $0x38] sm:$0xf]
    %v141 = vld [vmem:[#allocation5 + $0x3c] sm:$0xf]
    %v158 = vunpack.c.l.b16 %v110
    %v159 = vunpack.c.l.b16 %v111
    %v160 = vunpack.c.l.b16 %v112
    %v161 = vunpack.c.l.b16 %v113
    %v162 = vunpack.c.l.b16 %v114
    %v163 = vunpack.c.l.b16 %v115
    %v164 = vunpack.c.l.b16 %v116
    %v165 = vunpack.c.l.b16 %v117
    %v166 = vunpack.c.l.b16 %v118
    %v167 = vunpack.c.l.b16 %v119
    %v168 = vunpack.c.l.b16 %v120
    %v169 = vunpack.c.l.b16 %v121
    %v170 = vunpack.c.l.b16 %v122
    %v171 = vunpack.c.l.b16 %v123
    %v172 = vunpack.c.l.b16 %v124
    %v173 = vunpack.c.l.b16 %v125
    %v174 = vpack.c.b16 %v159, %v158
    %v175 = vpack.c.b16 %v161, %v160
    %v176 = vpack.c.b16 %v163, %v162
    %v177 = vpack.c.b16 %v165, %v164
    %v178 = vpack.c.b16 %v167, %v166
    %v179 = vpack.c.b16 %v169, %v168
    %v180 = vpack.c.b16 %v171, %v170
    %v181 = vpack.c.b16 %v173, %v172
    %v206 = vunpack.c.l.b16 %v126
    %v207 = vunpack.c.l.b16 %v127
    %v208 = vunpack.c.l.b16 %v128
    %v209 = vunpack.c.l.b16 %v129
    %v210 = vunpack.c.l.b16 %v130
    %v211 = vunpack.c.l.b16 %v131
    %v212 = vunpack.c.l.b16 %v132
    %v213 = vunpack.c.l.b16 %v133
    %v214 = vunpack.c.l.b16 %v134
    %v215 = vunpack.c.l.b16 %v135
    %v216 = vunpack.c.l.b16 %v136
    %v217 = vunpack.c.l.b16 %v137
    %v218 = vunpack.c.l.b16 %v138
    %v219 = vunpack.c.l.b16 %v139
    %v220 = vunpack.c.l.b16 %v140
    %v221 = vunpack.c.l.b16 %v141
    %v222 = vpack.c.b16 %v207, %v206
    %v223 = vpack.c.b16 %v209, %v208
    %v224 = vpack.c.b16 %v211, %v210
    %v225 = vpack.c.b16 %v213, %v212
    %v226 = vpack.c.b16 %v215, %v214
    %v227 = vpack.c.b16 %v217, %v216
    %v228 = vpack.c.b16 %v219, %v218
    %v229 = vpack.c.b16 %v221, %v220
    %238 = vmatprep.subr.bf16.mxu0 0
    %239 = vmatpush1.bf16.msra.mxu0 %v222
    %240 = vmatprep.subr.bf16.mxu0 0
    %241 = vmatpush1.bf16.msra.mxu0 %v223
    %242 = vmatprep.subr.bf16.mxu0 0
    %243 = vmatpush1.bf16.msra.mxu0 %v224
    %244 = vmatprep.subr.bf16.mxu0 0
    %245 = vmatpush1.bf16.msra.mxu0 %v225
    %246 = vmatprep.subr.bf16.mxu0 0
    %247 = vmatpush1.bf16.msra.mxu0 %v226
    %248 = vmatprep.subr.bf16.mxu0 0
    %249 = vmatpush1.bf16.msra.mxu0 %v227
    %250 = vmatprep.subr.bf16.mxu0 0
    %251 = vmatpush1.bf16.msra.mxu0 %v228
    %252 = vmatprep.subr.bf16.mxu0 0
    %253 = vmatpush1.bf16.msra.mxu0 %v229
    %254 = vmatprep.subr.bf16.mxu0 0
    %255 = vmatpush1.bf16.msra.mxu0 0
    %256 = vmatprep.subr.bf16.mxu0 0
    %257 = vmatpush1.bf16.msra.mxu0 0
    %258 = vmatprep.subr.bf16.mxu0 0
    %259 = vmatpush1.bf16.msra.mxu0 0
    %260 = vmatprep.subr.bf16.mxu0 0
    %261 = vmatpush1.bf16.msra.mxu0 0
    %262 = vmatprep.subr.bf16.mxu0 0
    %263 = vmatpush1.bf16.msra.mxu0 0
    %264 = vmatprep.subr.bf16.mxu0 0
    %265 = vmatpush1.bf16.msra.mxu0 0
    %266 = vmatprep.subr.bf16.mxu0 0
    %267 = vmatpush1.bf16.msra.mxu0 0
    %268 = vmatprep.subr.bf16.mxu0 0
    %269 = vmatpush1.bf16.msra.mxu0 0
    %270 = vmatprep.mubr.bf16.mxu0 0
    %271 = vmatmul.mubr.bf16.gmra.mrb[0].mxu0 %v174
    %v272 = vpop.f32.mrb[0].mxu0
    %v273 = vadd.f32 0.0, %v272
    %v274 = vpop.f32.mrb[0].mxu0
    %v275 = vpop.f32.mrb[0].mxu0
    %v276 = vadd.f32 0.0, %v275
    %v277 = vpop.f32.mrb[0].mxu0
    %278 = vmatprep.mubr.bf16.mxu0 0
    %279 = vmatmul.mubr.bf16.gmra.mrb[0].mxu0 %v175
    %v280 = vpop.f32.mrb[0].mxu0
    %v281 = vadd.f32 0.0, %v280
    %v282 = vpop.f32.mrb[0].mxu0
    %v283 = vpop.f32.mrb[0].mxu0
    %v284 = vadd.f32 0.0, %v283
    %v285 = vpop.f32.mrb[0].mxu0
    %286 = vmatprep.mubr.bf16.mxu0 0
    %287 = vmatmul.mubr.bf16.gmra.mrb[0].mxu0 %v176
    %v288 = vpop.f32.mrb[0].mxu0
    %v289 = vadd.f32 0.0, %v288
    %v290 = vpop.f32.mrb[0].mxu0
    %v291 = vpop.f32.mrb[0].mxu0
    %v292 = vadd.f32 0.0, %v291
    %v293 = vpop.f32.mrb[0].mxu0
    %294 = vmatprep.mubr.bf16.mxu0 0
    %295 = vmatmul.mubr.bf16.gmra.mrb[0].mxu0 %v177
    %v296 = vpop.f32.mrb[0].mxu0
    %v297 = vadd.f32 0.0, %v296
    %v298 = vpop.f32.mrb[0].mxu0
    %v299 = vpop.f32.mrb[0].mxu0
    %v300 = vadd.f32 0.0, %v299
    %v301 = vpop.f32.mrb[0].mxu0
    %302 = vmatprep.mubr.bf16.mxu0 0
    %303 = vmatmul.mubr.bf16.gmra.mrb[0].mxu0 %v178
    %v304 = vpop.f32.mrb[0].mxu0
    %v305 = vadd.f32 0.0, %v304
    %v306 = vpop.f32.mrb[0].mxu0
    %v307 = vpop.f32.mrb[0].mxu0
    %v308 = vadd.f32 0.0, %v307
    %v309 = vpop.f32.mrb[0].mxu0
    %310 = vmatprep.mubr.bf16.mxu0 0
    %311 = vmatmul.mubr.bf16.gmra.mrb[0].mxu0 %v179
    %v312 = vpop.f32.mrb[0].mxu0
    %v313 = vadd.f32 0.0, %v312
    %v314 = vpop.f32.mrb[0].mxu0
    %v315 = vpop.f32.mrb[0].mxu0
    %v316 = vadd.f32 0.0, %v315
    %v317 = vpop.f32.mrb[0].mxu0
    %318 = vmatprep.mubr.bf16.mxu0 0
    %319 = vmatmul.mubr.bf16.gmra.mrb[0].mxu0 %v180
    %v320 = vpop.f32.mrb[0].mxu0
    %v321 = vadd.f32 0.0, %v320
    %v322 = vpop.f32.mrb[0].mxu0
    %v323 = vpop.f32.mrb[0].mxu0
    %v324 = vadd.f32 0.0, %v323
    %v325 = vpop.f32.mrb[0].mxu0
    %326 = vmatprep.mubr.bf16.mxu0 0
    %327 = vmatmul.mubr.bf16.gmra.mrb[0].mxu0 %v181
    %v328 = vpop.f32.mrb[0].mxu0
    %v329 = vadd.f32 0.0, %v328
    %v330 = vpop.f32.mrb[0].mxu0
    %v331 = vpop.f32.mrb[0].mxu0
    %v332 = vadd.f32 0.0, %v331
    %v333 = vpop.f32.mrb[0].mxu0
    %334 = vdwg.mxu0
    %v335 = vld [vmem:[%s6] sm:$0x1]
    %v336 = vld [vmem:[%s6 + $0x1] sm:$0x1]
    %v337 = vadd.f32 %v273, %v276
    %v338 = vadd.f32 %v337, %v281
    %v339 = vadd.f32 %v338, %v284
    %v340 = vadd.f32 %v339, %v289
    %v341 = vadd.f32 %v340, %v292
    %v342 = vadd.f32 %v341, %v297
    %v343 = vadd.f32 %v342, %v300
    %v344 = vadd.f32 %v343, %v305
    %v345 = vadd.f32 %v344, %v308
    %v346 = vadd.f32 %v345, %v313
    %v347 = vadd.f32 %v346, %v316
    %v348 = vadd.f32 %v347, %v321
    %v349 = vadd.f32 %v348, %v324
    %v350 = vadd.f32 %v349, %v329
    %v351 = vadd.f32 %v350, %v332
    %v352 = vrot.slane %v351, 4
    %v353 = vadd.f32 %v351, %v352
    %v354 = vrot.slane %v353, 2
    %v355 = vadd.f32 %v353, %v354
    %v356 = vrot.slane %v355, 1
    %v357 = vadd.f32 %v355, %v356
    %v358 = vrcp.pop 128.0
    %v359 = vmul.f32 %v357, %v358
    %v360 = vsub.f32 %v273, %v359
    %v361 = vsub.f32 %v276, %v359
    %v362 = vsub.f32 %v281, %v359
    %v363 = vsub.f32 %v284, %v359
    %v364 = vsub.f32 %v289, %v359
    %v365 = vsub.f32 %v292, %v359
    %v366 = vsub.f32 %v297, %v359
    %v367 = vsub.f32 %v300, %v359
    %v368 = vsub.f32 %v305, %v359
    %v369 = vsub.f32 %v308, %v359
    %v370 = vsub.f32 %v313, %v359
    %v371 = vsub.f32 %v316, %v359
    %v372 = vsub.f32 %v321, %v359
    %v373 = vsub.f32 %v324, %v359
    %v374 = vsub.f32 %v329, %v359
    %v375 = vsub.f32 %v332, %v359
    %v376 = vmul.f32 %v360, %v360
    %v377 = vmul.f32 %v361, %v361
    %v378 = vmul.f32 %v362, %v362
    %v379 = vmul.f32 %v363, %v363
    %v380 = vmul.f32 %v364, %v364
    %v381 = vmul.f32 %v365, %v365
    %v382 = vmul.f32 %v366, %v366
    %v383 = vmul.f32 %v367, %v367
    %v384 = vmul.f32 %v368, %v368
    %v385 = vmul.f32 %v369, %v369
    %v386 = vmul.f32 %v370, %v370
    %v387 = vmul.f32 %v371, %v371
    %v388 = vmul.f32 %v372, %v372
    %v389 = vmul.f32 %v373, %v373
    %v390 = vmul.f32 %v374, %v374
    %v391 = vmul.f32 %v375, %v375
    %v392 = vadd.f32 %v376, %v377
    %v393 = vadd.f32 %v392, %v378
    %v394 = vadd.f32 %v393, %v379
    %v395 = vadd.f32 %v394, %v380
    %v396 = vadd.f32 %v395, %v381
    %v397 = vadd.f32 %v396, %v382
    %v398 = vadd.f32 %v397, %v383
    %v399 = vadd.f32 %v398, %v384
    %v400 = vadd.f32 %v399, %v385
    %v401 = vadd.f32 %v400, %v386
    %v402 = vadd.f32 %v401, %v387
    %v403 = vadd.f32 %v402, %v388
    %v404 = vadd.f32 %v403, %v389
    %v405 = vadd.f32 %v404, %v390
    %v406 = vadd.f32 %v405, %v391
    %v407 = vrot.slane %v406, 4
    %v408 = vadd.f32 %v406, %v407
    %v409 = vrot.slane %v408, 2
    %v410 = vadd.f32 %v408, %v409
    %v411 = vrot.slane %v410, 1
    %v412 = vadd.f32 %v410, %v411
    %v413 = vmul.f32 %v412, %v358
    %v414 = vadd.f32 %v413, 1e-05
    %v415 = vrsqrt.pop %v414
    %v416 = vmul.f32 %v335, %v415
    %v417 = vmul.f32 %v359, %v416
    %v418 = vsub.f32 %v336, %v417
    %v419 = vlaneseq
    %v420 = vshrl.u32 %v419, 7
    %v421 = vsub.s32 0, %v420
    %v422 = vrot.slane %v416, %v421
    %v423 = vmul.f32 %v273, %v422
    %v424 = vmul.f32 %v276, %v422
    %v425 = vmul.f32 %v281, %v422
    %v426 = vmul.f32 %v284, %v422
    %v427 = vmul.f32 %v289, %v422
    %v428 = vmul.f32 %v292, %v422
    %v429 = vmul.f32 %v297, %v422
    %v430 = vmul.f32 %v300, %v422
    %v431 = vmul.f32 %v305, %v422
    %v432 = vmul.f32 %v308, %v422
    %v433 = vmul.f32 %v313, %v422
    %v434 = vmul.f32 %v316, %v422
    %v435 = vmul.f32 %v321, %v422
    %v436 = vmul.f32 %v324, %v422
    %v437 = vmul.f32 %v329, %v422
    %v438 = vmul.f32 %v332, %v422
    %v439 = vlaneseq
    %v440 = vshrl.u32 %v439, 7
    %v441 = vsub.s32 0, %v440
    %v442 = vrot.slane %v418, %v441
    %v443 = vadd.f32 %v423, %v442
    %v444 = vadd.f32 %v424, %v442
    %v445 = vadd.f32 %v425, %v442
    %v446 = vadd.f32 %v426, %v442
    %v447 = vadd.f32 %v427, %v442
    %v448 = vadd.f32 %v428, %v442
    %v449 = vadd.f32 %v429, %v442
    %v450 = vadd.f32 %v430, %v442
    %v451 = vadd.f32 %v431, %v442
    %v452 = vadd.f32 %v432, %v442
    %v453 = vadd.f32 %v433, %v442
    %v454 = vadd.f32 %v434, %v442
    %v455 = vadd.f32 %v435, %v442
    %v456 = vadd.f32 %v436, %v442
    %v457 = vadd.f32 %v437, %v442
    %v458 = vadd.f32 %v438, %v442
    %vm459 = vcmp.gt.f32.partialorder %v443, 0.0
    %vm460 = vcmp.gt.f32.partialorder %v444, 0.0
    %vm461 = vcmp.gt.f32.partialorder %v445, 0.0
    %vm462 = vcmp.gt.f32.partialorder %v446, 0.0
    %vm463 = vcmp.gt.f32.partialorder %v447, 0.0
    %vm464 = vcmp.gt.f32.partialorder %v448, 0.0
    %vm465 = vcmp.gt.f32.partialorder %v449, 0.0
    %vm466 = vcmp.gt.f32.partialorder %v450, 0.0
    %vm467 = vcmp.gt.f32.partialorder %v451, 0.0
    %vm468 = vcmp.gt.f32.partialorder %v452, 0.0
    %vm469 = vcmp.gt.f32.partialorder %v453, 0.0
    %vm470 = vcmp.gt.f32.partialorder %v454, 0.0
    %vm471 = vcmp.gt.f32.partialorder %v455, 0.0
    %vm472 = vcmp.gt.f32.partialorder %v456, 0.0
    %vm473 = vcmp.gt.f32.partialorder %v457, 0.0
    %vm474 = vcmp.gt.f32.partialorder %v458, 0.0
    %v475 = vmul.f32 %v443, 0.2
    %v476 = vmul.f32 %v444, 0.2
    %v477 = vmul.f32 %v445, 0.2
    %v478 = vmul.f32 %v446, 0.2
    %v479 = vmul.f32 %v447, 0.2
    %v480 = vmul.f32 %v448, 0.2
    %v481 = vmul.f32 %v449, 0.2
    %v482 = vmul.f32 %v450, 0.2
    %v483 = vmul.f32 %v451, 0.2
    %v484 = vmul.f32 %v452, 0.2
    %v485 = vmul.f32 %v453, 0.2
    %v486 = vmul.f32 %v454, 0.2
    %v487 = vmul.f32 %v455, 0.2
    %v488 = vmul.f32 %v456, 0.2
    %v489 = vmul.f32 %v457, 0.2
    %v490 = vmul.f32 %v458, 0.2
    %v491 = vsel %vm459, %v443, %v475
    %v492 = vsel %vm460, %v444, %v476
    %v493 = vsel %vm461, %v445, %v477
    %v494 = vsel %vm462, %v446, %v478
    %v495 = vsel %vm463, %v447, %v479
    %v496 = vsel %vm464, %v448, %v480
    %v497 = vsel %vm465, %v449, %v481
    %v498 = vsel %vm466, %v450, %v482
    %v499 = vsel %vm467, %v451, %v483
    %v500 = vsel %vm468, %v452, %v484
    %v501 = vsel %vm469, %v453, %v485
    %v502 = vsel %vm470, %v454, %v486
    %v503 = vsel %vm471, %v455, %v487
    %v504 = vsel %vm472, %v456, %v488
    %v505 = vsel %vm473, %v457, %v489
    %v506 = vsel %vm474, %v458, %v490
    %v507 = vpack.c.bf16 %v492, %v491
    %v508 = vpack.c.bf16 %v494, %v493
    %v509 = vpack.c.bf16 %v496, %v495
    %v510 = vpack.c.bf16 %v498, %v497
    %v511 = vpack.c.bf16 %v500, %v499
    %v512 = vpack.c.bf16 %v502, %v501
    %v513 = vpack.c.bf16 %v504, %v503
    %v514 = vpack.c.bf16 %v506, %v505
    %v515 = vld [vmem:[#allocation7] sm:$0xf]
    %v516 = vld [vmem:[#allocation7 + $0x4] sm:$0xf]
    %v517 = vld [vmem:[#allocation7 + $0x8] sm:$0xf]
    %v518 = vld [vmem:[#allocation7 + $0xc] sm:$0xf]
    %v523 = vunpack.c.l.b16 %v515
    %v524 = vunpack.c.l.b16 %v516
    %v525 = vunpack.c.l.b16 %v517
    %v526 = vunpack.c.l.b16 %v518
    %v527 = vpack.c.b16 %v524, %v523
    %v528 = vpack.c.b16 %v526, %v525
    %531 = vmatprep.subr.bf16.mxu0 0
    %532 = vmatpush1.bf16.msra.mxu0 %v507
    %533 = vmatprep.subr.bf16.mxu0 0
    %534 = vmatpush1.bf16.msra.mxu0 %v508
    %535 = vmatprep.subr.bf16.mxu0 0
    %536 = vmatpush1.bf16.msra.mxu0 %v509
    %537 = vmatprep.subr.bf16.mxu0 0
    %538 = vmatpush1.bf16.msra.mxu0 %v510
    %539 = vmatprep.subr.bf16.mxu0 0
    %540 = vmatpush1.bf16.msra.mxu0 %v511
    %541 = vmatprep.subr.bf16.mxu0 0
    %542 = vmatpush1.bf16.msra.mxu0 %v512
    %543 = vmatprep.subr.bf16.mxu0 0
    %544 = vmatpush1.bf16.msra.mxu0 %v513
    %545 = vmatprep.subr.bf16.mxu0 0
    %546 = vmatpush1.bf16.msra.mxu0 %v514
    %547 = vmatprep.subr.bf16.mxu0 0
    %548 = vmatpush1.bf16.msra.mxu0 0
    %549 = vmatprep.subr.bf16.mxu0 0
    %550 = vmatpush1.bf16.msra.mxu0 0
    %551 = vmatprep.subr.bf16.mxu0 0
    %552 = vmatpush1.bf16.msra.mxu0 0
    %553 = vmatprep.subr.bf16.mxu0 0
    %554 = vmatpush1.bf16.msra.mxu0 0
    %555 = vmatprep.subr.bf16.mxu0 0
    %556 = vmatpush1.bf16.msra.mxu0 0
    %557 = vmatprep.subr.bf16.mxu0 0
    %558 = vmatpush1.bf16.msra.mxu0 0
    %559 = vmatprep.subr.bf16.mxu0 0
    %560 = vmatpush1.bf16.msra.mxu0 0
    %561 = vmatprep.subr.bf16.mxu0 0
    %562 = vmatpush1.bf16.msra.mxu0 0
    %563 = vmatprep.mubr.bf16.mxu0 0
    %564 = vmatmul.mubr.bf16.gmra.mrb[0].mxu0 %v527
    %v565 = vpop.f32.mrb[0].mxu0
    %v566 = vadd.f32 0.0, %v565
    %v567 = vpop.f32.mrb[0].mxu0
    %v568 = vpop.f32.mrb[0].mxu0
    %v569 = vadd.f32 0.0, %v568
    %v570 = vpop.f32.mrb[0].mxu0
    %571 = vmatprep.mubr.bf16.mxu0 0
    %572 = vmatmul.mubr.bf16.gmra.mrb[0].mxu0 %v528
    %v573 = vpop.f32.mrb[0].mxu0
    %v574 = vadd.f32 0.0, %v573
    %v575 = vpop.f32.mrb[0].mxu0
    %v576 = vpop.f32.mrb[0].mxu0
    %v577 = vadd.f32 0.0, %v576
    %v578 = vpop.f32.mrb[0].mxu0
    %579 = vdwg.mxu0
    %v580 = vpack.c.bf16 %v569, %v566
    %v581 = vpack.c.bf16 %v577, %v574
    %v582 = vld [vmem:[#allocation8] sm:$0xf]
    %v583 = vld [vmem:[#allocation8 + $0x4] sm:$0xf]
    %v584 = vld [vmem:[#allocation8 + $0x8] sm:$0xf]
    %v585 = vld [vmem:[#allocation8 + $0xc] sm:$0xf]
    %v586 = vld [vmem:[#allocation8 + $0x10] sm:$0xf]
    %v587 = vld [vmem:[#allocation8 + $0x14] sm:$0xf]
    %v588 = vld [vmem:[#allocation8 + $0x18] sm:$0xf]
    %v589 = vld [vmem:[#allocation8 + $0x1c] sm:$0xf]
    %v590 = vld [vmem:[#allocation8 + $0x20] sm:$0xf]
    %v591 = vld [vmem:[#allocation8 + $0x24] sm:$0xf]
    %v592 = vld [vmem:[#allocation8 + $0x28] sm:$0xf]
    %v593 = vld [vmem:[#allocation8 + $0x2c] sm:$0xf]
    %v594 = vld [vmem:[#allocation8 + $0x30] sm:$0xf]
    %v595 = vld [vmem:[#allocation8 + $0x34] sm:$0xf]
    %v596 = vld [vmem:[#allocation8 + $0x38] sm:$0xf]
    %v597 = vld [vmem:[#allocation8 + $0x3c] sm:$0xf]
    %s598 = scalar_lea.vmem [#allocation7], 16
    %v599 = vld [vmem:[%s598] sm:$0xf]
    %v600 = vld [vmem:[%s598 + $0x4] sm:$0xf]
    %v601 = vld [vmem:[%s598 + $0x8] sm:$0xf]
    %v602 = vld [vmem:[%s598 + $0xc] sm:$0xf]
    %v607 = vunpack.c.l.b16 %v599
    %v608 = vunpack.c.l.b16 %v600
    %v609 = vunpack.c.l.b16 %v601
    %v610 = vunpack.c.l.b16 %v602
    %v611 = vpack.c.b16 %v608, %v607
    %v612 = vpack.c.b16 %v610, %v609
    %615 = vmatprep.subr.bf16.mxu0 0
    %616 = vmatpush1.bf16.msra.mxu0 %v507
    %617 = vmatprep.subr.bf16.mxu0 0
    %618 = vmatpush1.bf16.msra.mxu0 %v508
    %619 = vmatprep.subr.bf16.mxu0 0
    %620 = vmatpush1.bf16.msra.mxu0 %v509
    %621 = vmatprep.subr.bf16.mxu0 0
    %622 = vmatpush1.bf16.msra.mxu0 %v510
    %623 = vmatprep.subr.bf16.mxu0 0
    %624 = vmatpush1.bf16.msra.mxu0 %v511
    %625 = vmatprep.subr.bf16.mxu0 0
    %626 = vmatpush1.bf16.msra.mxu0 %v512
    %627 = vmatprep.subr.bf16.mxu0 0
    %628 = vmatpush1.bf16.msra.mxu0 %v513
    %629 = vmatprep.subr.bf16.mxu0 0
    %630 = vmatpush1.bf16.msra.mxu0 %v514
    %631 = vmatprep.subr.bf16.mxu0 0
    %632 = vmatpush1.bf16.msra.mxu0 0
    %633 = vmatprep.subr.bf16.mxu0 0
    %634 = vmatpush1.bf16.msra.mxu0 0
    %635 = vmatprep.subr.bf16.mxu0 0
    %636 = vmatpush1.bf16.msra.mxu0 0
    %637 = vmatprep.subr.bf16.mxu0 0
    %638 = vmatpush1.bf16.msra.mxu0 0
    %639 = vmatprep.subr.bf16.mxu0 0
    %640 = vmatpush1.bf16.msra.mxu0 0
    %641 = vmatprep.subr.bf16.mxu0 0
    %642 = vmatpush1.bf16.msra.mxu0 0
    %643 = vmatprep.subr.bf16.mxu0 0
    %644 = vmatpush1.bf16.msra.mxu0 0
    %645 = vmatprep.subr.bf16.mxu0 0
    %646 = vmatpush1.bf16.msra.mxu0 0
    %647 = vmatprep.mubr.bf16.mxu0 0
    %648 = vmatmul.mubr.bf16.gmra.mrb[0].mxu0 %v611
    %v649 = vpop.f32.mrb[0].mxu0
    %v650 = vadd.f32 0.0, %v649
    %v651 = vpop.f32.mrb[0].mxu0
    %v652 = vpop.f32.mrb[0].mxu0
    %v653 = vadd.f32 0.0, %v652
    %v654 = vpop.f32.mrb[0].mxu0
    %655 = vmatprep.mubr.bf16.mxu0 0
    %656 = vmatmul.mubr.bf16.gmra.mrb[0].mxu0 %v612
    %v657 = vpop.f32.mrb[0].mxu0
    %v658 = vadd.f32 0.0, %v657
    %v659 = vpop.f32.mrb[0].mxu0
    %v660 = vpop.f32.mrb[0].mxu0
    %v661 = vadd.f32 0.0, %v660
    %v662 = vpop.f32.mrb[0].mxu0
    %663 = vdwg.mxu0
    %v664 = vpack.c.bf16 %v653, %v650
    %v665 = vpack.c.bf16 %v661, %v658
    %s666 = scalar_lea.vmem [#allocation8], 64
    %v667 = vld [vmem:[%s666] sm:$0xf]
    %v668 = vld [vmem:[%s666 + $0x4] sm:$0xf]
    %v669 = vld [vmem:[%s666 + $0x8] sm:$0xf]
    %v670 = vld [vmem:[%s666 + $0xc] sm:$0xf]
    %v671 = vld [vmem:[%s666 + $0x10] sm:$0xf]
    %v672 = vld [vmem:[%s666 + $0x14] sm:$0xf]
    %v673 = vld [vmem:[%s666 + $0x18] sm:$0xf]
    %v674 = vld [vmem:[%s666 + $0x1c] sm:$0xf]
    %v675 = vld [vmem:[%s666 + $0x20] sm:$0xf]
    %v676 = vld [vmem:[%s666 + $0x24] sm:$0xf]
    %v677 = vld [vmem:[%s666 + $0x28] sm:$0xf]
    %v678 = vld [vmem:[%s666 + $0x2c] sm:$0xf]
    %v679 = vld [vmem:[%s666 + $0x30] sm:$0xf]
    %v680 = vld [vmem:[%s666 + $0x34] sm:$0xf]
    %v681 = vld [vmem:[%s666 + $0x38] sm:$0xf]
    %v682 = vld [vmem:[%s666 + $0x3c] sm:$0xf]
    %v699 = vunpack.c.l.b16 %v667
    %v700 = vunpack.c.l.b16 %v668
    %v701 = vunpack.c.l.b16 %v669
    %v702 = vunpack.c.l.b16 %v670
    %v703 = vunpack.c.l.b16 %v671
    %v704 = vunpack.c.l.b16 %v672
    %v705 = vunpack.c.l.b16 %v673
    %v706 = vunpack.c.l.b16 %v674
    %v707 = vunpack.c.l.b16 %v675
    %v708 = vunpack.c.l.b16 %v676
    %v709 = vunpack.c.l.b16 %v677
    %v710 = vunpack.c.l.b16 %v678
    %v711 = vunpack.c.l.b16 %v679
    %v712 = vunpack.c.l.b16 %v680
    %v713 = vunpack.c.l.b16 %v681
    %v714 = vunpack.c.l.b16 %v682
    %v715 = vpack.c.b16 %v700, %v699
    %v716 = vpack.c.b16 %v702, %v701
    %v717 = vpack.c.b16 %v704, %v703
    %v718 = vpack.c.b16 %v706, %v705
    %v719 = vpack.c.b16 %v708, %v707
    %v720 = vpack.c.b16 %v710, %v709
    %v721 = vpack.c.b16 %v712, %v711
    %v722 = vpack.c.b16 %v714, %v713
    %731 = vmatprep.subr.bf16.mxu0 0
    %732 = vmatpush1.bf16.msra.mxu0 %v715
    %733 = vmatprep.subr.bf16.mxu0 0
    %734 = vmatpush1.bf16.msra.mxu0 %v716
    %735 = vmatprep.subr.bf16.mxu0 0
    %736 = vmatpush1.bf16.msra.mxu0 %v717
    %737 = vmatprep.subr.bf16.mxu0 0
    %738 = vmatpush1.bf16.msra.mxu0 %v718
    %739 = vmatprep.subr.bf16.mxu0 0
    %740 = vmatpush1.bf16.msra.mxu0 %v719
    %741 = vmatprep.subr.bf16.mxu0 0
    %742 = vmatpush1.bf16.msra.mxu0 %v720
    %743 = vmatprep.subr.bf16.mxu0 0
    %744 = vmatpush1.bf16.msra.mxu0 %v721
    %745 = vmatprep.subr.bf16.mxu0 0
    %746 = vmatpush1.bf16.msra.mxu0 %v722
    %747 = vmatprep.subr.bf16.mxu0 0
    %748 = vmatpush1.bf16.msra.mxu0 0
    %749 = vmatprep.subr.bf16.mxu0 0
    %750 = vmatpush1.bf16.msra.mxu0 0
    %751 = vmatprep.subr.bf16.mxu0 0
    %752 = vmatpush1.bf16.msra.mxu0 0
    %753 = vmatprep.subr.bf16.mxu0 0
    %754 = vmatpush1.bf16.msra.mxu0 0
    %755 = vmatprep.subr.bf16.mxu0 0
    %756 = vmatpush1.bf16.msra.mxu0 0
    %757 = vmatprep.subr.bf16.mxu0 0
    %758 = vmatpush1.bf16.msra.mxu0 0
    %759 = vmatprep.subr.bf16.mxu0 0
    %760 = vmatpush1.bf16.msra.mxu0 0
    %761 = vmatprep.subr.bf16.mxu0 0
    %762 = vmatpush1.bf16.msra.mxu0 0
    %763 = vmatprep.mubr.bf16.mxu0 0
    %764 = vmatmul.mubr.bf16.gmra.mrb[0].mxu0 %v664
    %v765 = vpop.f32.mrb[0].mxu0
    %v766 = vadd.f32 0.0, %v765
    %v767 = vpop.f32.mrb[0].mxu0
    %v768 = vpop.f32.mrb[0].mxu0
    %v769 = vadd.f32 0.0, %v768
    %v770 = vpop.f32.mrb[0].mxu0
    %771 = vmatprep.mubr.bf16.mxu0 0
    %772 = vmatmul.mubr.bf16.gmra.mrb[0].mxu0 %v665
    %v773 = vpop.f32.mrb[0].mxu0
    %v774 = vadd.f32 0.0, %v773
    %v775 = vpop.f32.mrb[0].mxu0
    %v776 = vpop.f32.mrb[0].mxu0
    %v777 = vadd.f32 0.0, %v776
    %v778 = vpop.f32.mrb[0].mxu0
    %779 = vdwg.mxu0
    %v796 = vunpack.c.l.b16 %v582
    %v797 = vunpack.c.l.b16 %v583
    %v798 = vunpack.c.l.b16 %v584
    %v799 = vunpack.c.l.b16 %v585
    %v800 = vunpack.c.l.b16 %v586
    %v801 = vunpack.c.l.b16 %v587
    %v802 = vunpack.c.l.b16 %v588
    %v803 = vunpack.c.l.b16 %v589
    %v804 = vunpack.c.l.b16 %v590
    %v805 = vunpack.c.l.b16 %v591
    %v806 = vunpack.c.l.b16 %v592
    %v807 = vunpack.c.l.b16 %v593
    %v808 = vunpack.c.l.b16 %v594
    %v809 = vunpack.c.l.b16 %v595
    %v810 = vunpack.c.l.b16 %v596
    %v811 = vunpack.c.l.b16 %v597
    %v812 = vpack.c.b16 %v797, %v796
    %v813 = vpack.c.b16 %v799, %v798
    %v814 = vpack.c.b16 %v801, %v800
    %v815 = vpack.c.b16 %v803, %v802
    %v816 = vpack.c.b16 %v805, %v804
    %v817 = vpack.c.b16 %v807, %v806
    %v818 = vpack.c.b16 %v809, %v808
    %v819 = vpack.c.b16 %v811, %v810
    %828 = vmatprep.subr.bf16.mxu0 0
    %829 = vmatpush1.bf16.msra.mxu0 %v812
    %830 = vmatprep.subr.bf16.mxu0 0
    %831 = vmatpush1.bf16.msra.mxu0 %v813
    %832 = vmatprep.subr.bf16.mxu0 0
    %833 = vmatpush1.bf16.msra.mxu0 %v814
    %834 = vmatprep.subr.bf16.mxu0 0
    %835 = vmatpush1.bf16.msra.mxu0 %v815
    %836 = vmatprep.subr.bf16.mxu0 0
    %837 = vmatpush1.bf16.msra.mxu0 %v816
    %838 = vmatprep.subr.bf16.mxu0 0
    %839 = vmatpush1.bf16.msra.mxu0 %v817
    %840 = vmatprep.subr.bf16.mxu0 0
    %841 = vmatpush1.bf16.msra.mxu0 %v818
    %842 = vmatprep.subr.bf16.mxu0 0
    %843 = vmatpush1.bf16.msra.mxu0 %v819
    %844 = vmatprep.subr.bf16.mxu0 0
    %845 = vmatpush1.bf16.msra.mxu0 0
    %846 = vmatprep.subr.bf16.mxu0 0
    %847 = vmatpush1.bf16.msra.mxu0 0
    %848 = vmatprep.subr.bf16.mxu0 0
    %849 = vmatpush1.bf16.msra.mxu0 0
    %850 = vmatprep.subr.bf16.mxu0 0
    %851 = vmatpush1.bf16.msra.mxu0 0
    %852 = vmatprep.subr.bf16.mxu0 0
    %853 = vmatpush1.bf16.msra.mxu0 0
    %854 = vmatprep.subr.bf16.mxu0 0
    %855 = vmatpush1.bf16.msra.mxu0 0
    %856 = vmatprep.subr.bf16.mxu0 0
    %857 = vmatpush1.bf16.msra.mxu0 0
    %858 = vmatprep.subr.bf16.mxu0 0
    %859 = vmatpush1.bf16.msra.mxu0 0
    %860 = vmatprep.mubr.bf16.mxu0 0
    %861 = vmatmul.mubr.bf16.gmra.mrb[0].mxu0 %v580
    %v862 = vpop.f32.mrb[0].mxu0
    %v863 = vadd.f32 %v766, %v862
    %v864 = vpop.f32.mrb[0].mxu0
    %v865 = vpop.f32.mrb[0].mxu0
    %v866 = vadd.f32 %v769, %v865
    %v867 = vpop.f32.mrb[0].mxu0
    %868 = vmatprep.mubr.bf16.mxu0 0
    %869 = vmatmul.mubr.bf16.gmra.mrb[0].mxu0 %v581
    %v870 = vpop.f32.mrb[0].mxu0
    %v871 = vadd.f32 %v774, %v870
    %v872 = vpop.f32.mrb[0].mxu0
    %v873 = vpop.f32.mrb[0].mxu0
    %v874 = vadd.f32 %v777, %v873
    %v875 = vpop.f32.mrb[0].mxu0
    %876 = vdwg.mxu0
    %s877 = scalar_lea.vmem [#allocation7], 32
    %v878 = vld [vmem:[%s877] sm:$0xf]
    %v879 = vld [vmem:[%s877 + $0x4] sm:$0xf]
    %v880 = vld [vmem:[%s877 + $0x8] sm:$0xf]
    %v881 = vld [vmem:[%s877 + $0xc] sm:$0xf]
    %v886 = vunpack.c.l.b16 %v878
    %v887 = vunpack.c.l.b16 %v879
    %v888 = vunpack.c.l.b16 %v880
    %v889 = vunpack.c.l.b16 %v881
    %v890 = vpack.c.b16 %v887, %v886
    %v891 = vpack.c.b16 %v889, %v888
    %894 = vmatprep.subr.bf16.mxu0 0
    %895 = vmatpush1.bf16.msra.mxu0 %v507
    %896 = vmatprep.subr.bf16.mxu0 0
    %897 = vmatpush1.bf16.msra.mxu0 %v508
    %898 = vmatprep.subr.bf16.mxu0 0
    %899 = vmatpush1.bf16.msra.mxu0 %v509
    %900 = vmatprep.subr.bf16.mxu0 0
    %901 = vmatpush1.bf16.msra.mxu0 %v510
    %902 = vmatprep.subr.bf16.mxu0 0
    %903 = vmatpush1.bf16.msra.mxu0 %v511
    %904 = vmatprep.subr.bf16.mxu0 0
    %905 = vmatpush1.bf16.msra.mxu0 %v512
    %906 = vmatprep.subr.bf16.mxu0 0
    %907 = vmatpush1.bf16.msra.mxu0 %v513
    %908 = vmatprep.subr.bf16.mxu0 0
    %909 = vmatpush1.bf16.msra.mxu0 %v514
    %910 = vmatprep.subr.bf16.mxu0 0
    %911 = vmatpush1.bf16.msra.mxu0 0
    %912 = vmatprep.subr.bf16.mxu0 0
    %913 = vmatpush1.bf16.msra.mxu0 0
    %914 = vmatprep.subr.bf16.mxu0 0
    %915 = vmatpush1.bf16.msra.mxu0 0
    %916 = vmatprep.subr.bf16.mxu0 0
    %917 = vmatpush1.bf16.msra.mxu0 0
    %918 = vmatprep.subr.bf16.mxu0 0
    %919 = vmatpush1.bf16.msra.mxu0 0
    %920 = vmatprep.subr.bf16.mxu0 0
    %921 = vmatpush1.bf16.msra.mxu0 0
    %922 = vmatprep.subr.bf16.mxu0 0
    %923 = vmatpush1.bf16.msra.mxu0 0
    %924 = vmatprep.subr.bf16.mxu0 0
    %925 = vmatpush1.bf16.msra.mxu0 0
    %926 = vmatprep.mubr.bf16.mxu0 0
    %927 = vmatmul.mubr.bf16.gmra.mrb[0].mxu0 %v890
    %v928 = vpop.f32.mrb[0].mxu0
    %v929 = vadd.f32 0.0, %v928
    %v930 = vpop.f32.mrb[0].mxu0
    %v931 = vpop.f32.mrb[0].mxu0
    %v932 = vadd.f32 0.0, %v931
    %v933 = vpop.f32.mrb[0].mxu0
    %934 = vmatprep.mubr.bf16.mxu0 0
    %935 = vmatmul.mubr.bf16.gmra.mrb[0].mxu0 %v891
    %v936 = vpop.f32.mrb[0].mxu0
    %v937 = vadd.f32 0.0, %v936
    %v938 = vpop.f32.mrb[0].mxu0
    %v939 = vpop.f32.mrb[0].mxu0
    %v940 = vadd.f32 0.0, %v939
    %v941 = vpop.f32.mrb[0].mxu0
    %942 = vdwg.mxu0
    %v943 = vpack.c.bf16 %v932, %v929
    %v944 = vpack.c.bf16 %v940, %v937
    %s945 = scalar_lea.vmem [#allocation8], 128
    %v946 = vld [vmem:[%s945] sm:$0xf]
    %v947 = vld [vmem:[%s945 + $0x4] sm:$0xf]
    %v948 = vld [vmem:[%s945 + $0x8] sm:$0xf]
    %v949 = vld [vmem:[%s945 + $0xc] sm:$0xf]
    %v950 = vld [vmem:[%s945 + $0x10] sm:$0xf]
    %v951 = vld [vmem:[%s945 + $0x14] sm:$0xf]
    %v952 = vld [vmem:[%s945 + $0x18] sm:$0xf]
    %v953 = vld [vmem:[%s945 + $0x1c] sm:$0xf]
    %v954 = vld [vmem:[%s945 + $0x20] sm:$0xf]
    %v955 = vld [vmem:[%s945 + $0x24] sm:$0xf]
    %v956 = vld [vmem:[%s945 + $0x28] sm:$0xf]
    %v957 = vld [vmem:[%s945 + $0x2c] sm:$0xf]
    %v958 = vld [vmem:[%s945 + $0x30] sm:$0xf]
    %v959 = vld [vmem:[%s945 + $0x34] sm:$0xf]
    %v960 = vld [vmem:[%s945 + $0x38] sm:$0xf]
    %v961 = vld [vmem:[%s945 + $0x3c] sm:$0xf]
    %v978 = vunpack.c.l.b16 %v946
    %v979 = vunpack.c.l.b16 %v947
    %v980 = vunpack.c.l.b16 %v948
    %v981 = vunpack.c.l.b16 %v949
    %v982 = vunpack.c.l.b16 %v950
    %v983 = vunpack.c.l.b16 %v951
    %v984 = vunpack.c.l.b16 %v952
    %v985 = vunpack.c.l.b16 %v953
    %v986 = vunpack.c.l.b16 %v954
    %v987 = vunpack.c.l.b16 %v955
    %v988 = vunpack.c.l.b16 %v956
    %v989 = vunpack.c.l.b16 %v957
    %v990 = vunpack.c.l.b16 %v958
    %v991 = vunpack.c.l.b16 %v959
    %v992 = vunpack.c.l.b16 %v960
    %v993 = vunpack.c.l.b16 %v961
    %v994 = vpack.c.b16 %v979, %v978
    %v995 = vpack.c.b16 %v981, %v980
    %v996 = vpack.c.b16 %v983, %v982
    %v997 = vpack.c.b16 %v985, %v984
    %v998 = vpack.c.b16 %v987, %v986
    %v999 = vpack.c.b16 %v989, %v988
    %v1000 = vpack.c.b16 %v991, %v990
    %v1001 = vpack.c.b16 %v993, %v992
    %1010 = vmatprep.subr.bf16.mxu0 0
    %1011 = vmatpush1.bf16.msra.mxu0 %v994
    %1012 = vmatprep.subr.bf16.mxu0 0
    %1013 = vmatpush1.bf16.msra.mxu0 %v995
    %1014 = vmatprep.subr.bf16.mxu0 0
    %1015 = vmatpush1.bf16.msra.mxu0 %v996
    %1016 = vmatprep.subr.bf16.mxu0 0
    %1017 = vmatpush1.bf16.msra.mxu0 %v997
    %1018 = vmatprep.subr.bf16.mxu0 0
    %1019 = vmatpush1.bf16.msra.mxu0 %v998
    %1020 = vmatprep.subr.bf16.mxu0 0
    %1021 = vmatpush1.bf16.msra.mxu0 %v999
    %1022 = vmatprep.subr.bf16.mxu0 0
    %1023 = vmatpush1.bf16.msra.mxu0 %v1000
    %1024 = vmatprep.subr.bf16.mxu0 0
    %1025 = vmatpush1.bf16.msra.mxu0 %v1001
    %1026 = vmatprep.subr.bf16.mxu0 0
    %1027 = vmatpush1.bf16.msra.mxu0 0
    %1028 = vmatprep.subr.bf16.mxu0 0
    %1029 = vmatpush1.bf16.msra.mxu0 0
    %1030 = vmatprep.subr.bf16.mxu0 0
    %1031 = vmatpush1.bf16.msra.mxu0 0
    %1032 = vmatprep.subr.bf16.mxu0 0
    %1033 = vmatpush1.bf16.msra.mxu0 0
    %1034 = vmatprep.subr.bf16.mxu0 0
    %1035 = vmatpush1.bf16.msra.mxu0 0
    %1036 = vmatprep.subr.bf16.mxu0 0
    %1037 = vmatpush1.bf16.msra.mxu0 0
    %1038 = vmatprep.subr.bf16.mxu0 0
    %1039 = vmatpush1.bf16.msra.mxu0 0
    %1040 = vmatprep.subr.bf16.mxu0 0
    %1041 = vmatpush1.bf16.msra.mxu0 0
    %1042 = vmatprep.mubr.bf16.mxu0 0
    %1043 = vmatmul.mubr.bf16.gmra.mrb[0].mxu0 %v943
    %v1044 = vpop.f32.mrb[0].mxu0
    %v1045 = vadd.f32 0.0, %v1044
    %v1046 = vpop.f32.mrb[0].mxu0
    %v1047 = vpop.f32.mrb[0].mxu0
    %v1048 = vadd.f32 0.0, %v1047
    %v1049 = vpop.f32.mrb[0].mxu0
    %1050 = vmatprep.mubr.bf16.mxu0 0
    %1051 = vmatmul.mubr.bf16.gmra.mrb[0].mxu0 %v944
    %v1052 = vpop.f32.mrb[0].mxu0
    %v1053 = vadd.f32 0.0, %v1052
    %v1054 = vpop.f32.mrb[0].mxu0
    %v1055 = vpop.f32.mrb[0].mxu0
    %v1056 = vadd.f32 0.0, %v1055
    %v1057 = vpop.f32.mrb[0].mxu0
    %1058 = vdwg.mxu0
    %v1059 = vadd.f32 %v863, %v1045
    %v1060 = vadd.f32 %v866, %v1048
    %v1061 = vadd.f32 %v871, %v1053
    %v1062 = vadd.f32 %v874, %v1056
    %s1063 = scalar_lea.vmem [#allocation7], 48
    %v1064 = vld [vmem:[%s1063] sm:$0xf]
    %v1065 = vld [vmem:[%s1063 + $0x4] sm:$0xf]
    %v1066 = vld [vmem:[%s1063 + $0x8] sm:$0xf]
    %v1067 = vld [vmem:[%s1063 + $0xc] sm:$0xf]
    %v1072 = vunpack.c.l.b16 %v1064
    %v1073 = vunpack.c.l.b16 %v1065
    %v1074 = vunpack.c.l.b16 %v1066
    %v1075 = vunpack.c.l.b16 %v1067
    %v1076 = vpack.c.b16 %v1073, %v1072
    %v1077 = vpack.c.b16 %v1075, %v1074
    %1080 = vmatprep.subr.bf16.mxu0 0
    %1081 = vmatpush1.bf16.msra.mxu0 %v507
    %1082 = vmatprep.subr.bf16.mxu0 0
    %1083 = vmatpush1.bf16.msra.mxu0 %v508
    %1084 = vmatprep.subr.bf16.mxu0 0
    %1085 = vmatpush1.bf16.msra.mxu0 %v509
    %1086 = vmatprep.subr.bf16.mxu0 0
    %1087 = vmatpush1.bf16.msra.mxu0 %v510
    %1088 = vmatprep.subr.bf16.mxu0 0
    %1089 = vmatpush1.bf16.msra.mxu0 %v511
    %1090 = vmatprep.subr.bf16.mxu0 0
    %1091 = vmatpush1.bf16.msra.mxu0 %v512
    %1092 = vmatprep.subr.bf16.mxu0 0
    %1093 = vmatpush1.bf16.msra.mxu0 %v513
    %1094 = vmatprep.subr.bf16.mxu0 0
    %1095 = vmatpush1.bf16.msra.mxu0 %v514
    %1096 = vmatprep.subr.bf16.mxu0 0
    %1097 = vmatpush1.bf16.msra.mxu0 0
    %1098 = vmatprep.subr.bf16.mxu0 0
    %1099 = vmatpush1.bf16.msra.mxu0 0
    %1100 = vmatprep.subr.bf16.mxu0 0
    %1101 = vmatpush1.bf16.msra.mxu0 0
    %1102 = vmatprep.subr.bf16.mxu0 0
    %1103 = vmatpush1.bf16.msra.mxu0 0
    %1104 = vmatprep.subr.bf16.mxu0 0
    %1105 = vmatpush1.bf16.msra.mxu0 0
    %1106 = vmatprep.subr.bf16.mxu0 0
    %1107 = vmatpush1.bf16.msra.mxu0 0
    %1108 = vmatprep.subr.bf16.mxu0 0
    %1109 = vmatpush1.bf16.msra.mxu0 0
    %1110 = vmatprep.subr.bf16.mxu0 0
    %1111 = vmatpush1.bf16.msra.mxu0 0
    %1112 = vmatprep.mubr.bf16.mxu0 0
    %1113 = vmatmul.mubr.bf16.gmra.mrb[0].mxu0 %v1076
    %v1114 = vpop.f32.mrb[0].mxu0
    %v1115 = vadd.f32 0.0, %v1114
    %v1116 = vpop.f32.mrb[0].mxu0
    %v1117 = vpop.f32.mrb[0].mxu0
    %v1118 = vadd.f32 0.0, %v1117
    %v1119 = vpop.f32.mrb[0].mxu0
    %1120 = vmatprep.mubr.bf16.mxu0 0
    %1121 = vmatmul.mubr.bf16.gmra.mrb[0].mxu0 %v1077
    %v1122 = vpop.f32.mrb[0].mxu0
    %v1123 = vadd.f32 0.0, %v1122
    %v1124 = vpop.f32.mrb[0].mxu0
    %v1125 = vpop.f32.mrb[0].mxu0
    %v1126 = vadd.f32 0.0, %v1125
    %v1127 = vpop.f32.mrb[0].mxu0
    %1128 = vdwg.mxu0
    %v1129 = vpack.c.bf16 %v1118, %v1115
    %v1130 = vpack.c.bf16 %v1126, %v1123
    %s1131 = scalar_lea.vmem [#allocation8], 192
    %v1132 = vld [vmem:[%s1131] sm:$0xf]
    %v1133 = vld [vmem:[%s1131 + $0x4] sm:$0xf]
    %v1134 = vld [vmem:[%s1131 + $0x8] sm:$0xf]
    %v1135 = vld [vmem:[%s1131 + $0xc] sm:$0xf]
    %v1136 = vld [vmem:[%s1131 + $0x10] sm:$0xf]
    %v1137 = vld [vmem:[%s1131 + $0x14] sm:$0xf]
    %v1138 = vld [vmem:[%s1131 + $0x18] sm:$0xf]
    %v1139 = vld [vmem:[%s1131 + $0x1c] sm:$0xf]
    %v1140 = vld [vmem:[%s1131 + $0x20] sm:$0xf]
    %v1141 = vld [vmem:[%s1131 + $0x24] sm:$0xf]
    %v1142 = vld [vmem:[%s1131 + $0x28] sm:$0xf]
    %v1143 = vld [vmem:[%s1131 + $0x2c] sm:$0xf]
    %v1144 = vld [vmem:[%s1131 + $0x30] sm:$0xf]
    %v1145 = vld [vmem:[%s1131 + $0x34] sm:$0xf]
    %v1146 = vld [vmem:[%s1131 + $0x38] sm:$0xf]
    %v1147 = vld [vmem:[%s1131 + $0x3c] sm:$0xf]
    %v1164 = vunpack.c.l.b16 %v1132
    %v1165 = vunpack.c.l.b16 %v1133
    %v1166 = vunpack.c.l.b16 %v1134
    %v1167 = vunpack.c.l.b16 %v1135
    %v1168 = vunpack.c.l.b16 %v1136
    %v1169 = vunpack.c.l.b16 %v1137
    %v1170 = vunpack.c.l.b16 %v1138
    %v1171 = vunpack.c.l.b16 %v1139
    %v1172 = vunpack.c.l.b16 %v1140
    %v1173 = vunpack.c.l.b16 %v1141
    %v1174 = vunpack.c.l.b16 %v1142
    %v1175 = vunpack.c.l.b16 %v1143
    %v1176 = vunpack.c.l.b16 %v1144
    %v1177 = vunpack.c.l.b16 %v1145
    %v1178 = vunpack.c.l.b16 %v1146
    %v1179 = vunpack.c.l.b16 %v1147
    %v1180 = vpack.c.b16 %v1165, %v1164
    %v1181 = vpack.c.b16 %v1167, %v1166
    %v1182 = vpack.c.b16 %v1169, %v1168
    %v1183 = vpack.c.b16 %v1171, %v1170
    %v1184 = vpack.c.b16 %v1173, %v1172
    %v1185 = vpack.c.b16 %v1175, %v1174
    %v1186 = vpack.c.b16 %v1177, %v1176
    %v1187 = vpack.c.b16 %v1179, %v1178
    %1196 = vmatprep.subr.bf16.mxu0 0
    %1197 = vmatpush1.bf16.msra.mxu0 %v1180
    %1198 = vmatprep.subr.bf16.mxu0 0
    %1199 = vmatpush1.bf16.msra.mxu0 %v1181
    %1200 = vmatprep.subr.bf16.mxu0 0
    %1201 = vmatpush1.bf16.msra.mxu0 %v1182
    %1202 = vmatprep.subr.bf16.mxu0 0
    %1203 = vmatpush1.bf16.msra.mxu0 %v1183
    %1204 = vmatprep.subr.bf16.mxu0 0
    %1205 = vmatpush1.bf16.msra.mxu0 %v1184
    %1206 = vmatprep.subr.bf16.mxu0 0
    %1207 = vmatpush1.bf16.msra.mxu0 %v1185
    %1208 = vmatprep.subr.bf16.mxu0 0
    %1209 = vmatpush1.bf16.msra.mxu0 %v1186
    %1210 = vmatprep.subr.bf16.mxu0 0
    %1211 = vmatpush1.bf16.msra.mxu0 %v1187
    %1212 = vmatprep.subr.bf16.mxu0 0
    %1213 = vmatpush1.bf16.msra.mxu0 0
    %1214 = vmatprep.subr.bf16.mxu0 0
    %1215 = vmatpush1.bf16.msra.mxu0 0
    %1216 = vmatprep.subr.bf16.mxu0 0
    %1217 = vmatpush1.bf16.msra.mxu0 0
    %1218 = vmatprep.subr.bf16.mxu0 0
    %1219 = vmatpush1.bf16.msra.mxu0 0
    %1220 = vmatprep.subr.bf16.mxu0 0
    %1221 = vmatpush1.bf16.msra.mxu0 0
    %1222 = vmatprep.subr.bf16.mxu0 0
    %1223 = vmatpush1.bf16.msra.mxu0 0
    %1224 = vmatprep.subr.bf16.mxu0 0
    %1225 = vmatpush1.bf16.msra.mxu0 0
    %1226 = vmatprep.subr.bf16.mxu0 0
    %1227 = vmatpush1.bf16.msra.mxu0 0
    %1228 = vmatprep.mubr.bf16.mxu0 0
    %1229 = vmatmul.mubr.bf16.gmra.mrb[0].mxu0 %v1129
    %v1230 = vpop.f32.mrb[0].mxu0
    %v1231 = vadd.f32 0.0, %v1230
    %v1232 = vpop.f32.mrb[0].mxu0
    %v1233 = vpop.f32.mrb[0].mxu0
    %v1234 = vadd.f32 0.0, %v1233
    %v1235 = vpop.f32.mrb[0].mxu0
    %1236 = vmatprep.mubr.bf16.mxu0 0
    %1237 = vmatmul.mubr.bf16.gmra.mrb[0].mxu0 %v1130
    %v1238 = vpop.f32.mrb[0].mxu0
    %v1239 = vadd.f32 0.0, %v1238
    %v1240 = vpop.f32.mrb[0].mxu0
    %v1241 = vpop.f32.mrb[0].mxu0
    %v1242 = vadd.f32 0.0, %v1241
    %v1243 = vpop.f32.mrb[0].mxu0
    %1244 = vdwg.mxu0
    %v1245 = vadd.f32 %v1059, %v1231
    %v1246 = vadd.f32 %v1060, %v1234
    %v1247 = vadd.f32 %v1061, %v1239
    %v1248 = vadd.f32 %v1062, %v1242
    %s1249 = scalar_lea.vmem [#allocation7], 64
    %v1250 = vld [vmem:[%s1249] sm:$0xf]
    %v1251 = vld [vmem:[%s1249 + $0x4] sm:$0xf]
    %v1252 = vld [vmem:[%s1249 + $0x8] sm:$0xf]
    %v1253 = vld [vmem:[%s1249 + $0xc] sm:$0xf]
    %v1258 = vunpack.c.l.b16 %v1250
    %v1259 = vunpack.c.l.b16 %v1251
    %v1260 = vunpack.c.l.b16 %v1252
    %v1261 = vunpack.c.l.b16 %v1253
    %v1262 = vpack.c.b16 %v1259, %v1258
    %v1263 = vpack.c.b16 %v1261, %v1260
    %1266 = vmatprep.subr.bf16.mxu0 0
    %1267 = vmatpush1.bf16.msra.mxu0 %v507
    %1268 = vmatprep.subr.bf16.mxu0 0
    %1269 = vmatpush1.bf16.msra.mxu0 %v508
    %1270 = vmatprep.subr.bf16.mxu0 0
    %1271 = vmatpush1.bf16.msra.mxu0 %v509
    %1272 = vmatprep.subr.bf16.mxu0 0
    %1273 = vmatpush1.bf16.msra.mxu0 %v510
    %1274 = vmatprep.subr.bf16.mxu0 0
    %1275 = vmatpush1.bf16.msra.mxu0 %v511
    %1276 = vmatprep.subr.bf16.mxu0 0
    %1277 = vmatpush1.bf16.msra.mxu0 %v512
    %1278 = vmatprep.subr.bf16.mxu0 0
    %1279 = vmatpush1.bf16.msra.mxu0 %v513
    %1280 = vmatprep.subr.bf16.mxu0 0
    %1281 = vmatpush1.bf16.msra.mxu0 %v514
    %1282 = vmatprep.subr.bf16.mxu0 0
    %1283 = vmatpush1.bf16.msra.mxu0 0
    %1284 = vmatprep.subr.bf16.mxu0 0
    %1285 = vmatpush1.bf16.msra.mxu0 0
    %1286 = vmatprep.subr.bf16.mxu0 0
    %1287 = vmatpush1.bf16.msra.mxu0 0
    %1288 = vmatprep.subr.bf16.mxu0 0
    %1289 = vmatpush1.bf16.msra.mxu0 0
    %1290 = vmatprep.subr.bf16.mxu0 0
    %1291 = vmatpush1.bf16.msra.mxu0 0
    %1292 = vmatprep.subr.bf16.mxu0 0
    %1293 = vmatpush1.bf16.msra.mxu0 0
    %1294 = vmatprep.subr.bf16.mxu0 0
    %1295 = vmatpush1.bf16.msra.mxu0 0
    %1296 = vmatprep.subr.bf16.mxu0 0
    %1297 = vmatpush1.bf16.msra.mxu0 0
    %1298 = vmatprep.mubr.bf16.mxu0 0
    %1299 = vmatmul.mubr.bf16.gmra.mrb[0].mxu0 %v1262
    %v1300 = vpop.f32.mrb[0].mxu0
    %v1301 = vadd.f32 0.0, %v1300
    %v1302 = vpop.f32.mrb[0].mxu0
    %v1303 = vpop.f32.mrb[0].mxu0
    %v1304 = vadd.f32 0.0, %v1303
    %v1305 = vpop.f32.mrb[0].mxu0
    %1306 = vmatprep.mubr.bf16.mxu0 0
    %1307 = vmatmul.mubr.bf16.gmra.mrb[0].mxu0 %v1263
    %v1308 = vpop.f32.mrb[0].mxu0
    %v1309 = vadd.f32 0.0, %v1308
    %v1310 = vpop.f32.mrb[0].mxu0
    %v1311 = vpop.f32.mrb[0].mxu0
    %v1312 = vadd.f32 0.0, %v1311
    %v1313 = vpop.f32.mrb[0].mxu0
    %1314 = vdwg.mxu0
    %v1315 = vpack.c.bf16 %v1304, %v1301
    %v1316 = vpack.c.bf16 %v1312, %v1309
    %s1317 = scalar_lea.vmem [#allocation8], 256
    %v1318 = vld [vmem:[%s1317] sm:$0xf]
    %v1319 = vld [vmem:[%s1317 + $0x4] sm:$0xf]
    %v1320 = vld [vmem:[%s1317 + $0x8] sm:$0xf]
    %v1321 = vld [vmem:[%s1317 + $0xc] sm:$0xf]
    %v1322 = vld [vmem:[%s1317 + $0x10] sm:$0xf]
    %v1323 = vld [vmem:[%s1317 + $0x14] sm:$0xf]
    %v1324 = vld [vmem:[%s1317 + $0x18] sm:$0xf]
    %v1325 = vld [vmem:[%s1317 + $0x1c] sm:$0xf]
    %v1326 = vld [vmem:[%s1317 + $0x20] sm:$0xf]
    %v1327 = vld [vmem:[%s1317 + $0x24] sm:$0xf]
    %v1328 = vld [vmem:[%s1317 + $0x28] sm:$0xf]
    %v1329 = vld [vmem:[%s1317 + $0x2c] sm:$0xf]
    %v1330 = vld [vmem:[%s1317 + $0x30] sm:$0xf]
    %v1331 = vld [vmem:[%s1317 + $0x34] sm:$0xf]
    %v1332 = vld [vmem:[%s1317 + $0x38] sm:$0xf]
    %v1333 = vld [vmem:[%s1317 + $0x3c] sm:$0xf]
    %v1350 = vunpack.c.l.b16 %v1318
    %v1351 = vunpack.c.l.b16 %v1319
    %v1352 = vunpack.c.l.b16 %v1320
    %v1353 = vunpack.c.l.b16 %v1321
    %v1354 = vunpack.c.l.b16 %v1322
    %v1355 = vunpack.c.l.b16 %v1323
    %v1356 = vunpack.c.l.b16 %v1324
    %v1357 = vunpack.c.l.b16 %v1325
    %v1358 = vunpack.c.l.b16 %v1326
    %v1359 = vunpack.c.l.b16 %v1327
    %v1360 = vunpack.c.l.b16 %v1328
    %v1361 = vunpack.c.l.b16 %v1329
    %v1362 = vunpack.c.l.b16 %v1330
    %v1363 = vunpack.c.l.b16 %v1331
    %v1364 = vunpack.c.l.b16 %v1332
    %v1365 = vunpack.c.l.b16 %v1333
    %v1366 = vpack.c.b16 %v1351, %v1350
    %v1367 = vpack.c.b16 %v1353, %v1352
    %v1368 = vpack.c.b16 %v1355, %v1354
    %v1369 = vpack.c.b16 %v1357, %v1356
    %v1370 = vpack.c.b16 %v1359, %v1358
    %v1371 = vpack.c.b16 %v1361, %v1360
    %v1372 = vpack.c.b16 %v1363, %v1362
    %v1373 = vpack.c.b16 %v1365, %v1364
    %1382 = vmatprep.subr.bf16.mxu0 0
    %1383 = vmatpush1.bf16.msra.mxu0 %v1366
    %1384 = vmatprep.subr.bf16.mxu0 0
    %1385 = vmatpush1.bf16.msra.mxu0 %v1367
    %1386 = vmatprep.subr.bf16.mxu0 0
    %1387 = vmatpush1.bf16.msra.mxu0 %v1368
    %1388 = vmatprep.subr.bf16.mxu0 0
    %1389 = vmatpush1.bf16.msra.mxu0 %v1369
    %1390 = vmatprep.subr.bf16.mxu0 0
    %1391 = vmatpush1.bf16.msra.mxu0 %v1370
    %1392 = vmatprep.subr.bf16.mxu0 0
    %1393 = vmatpush1.bf16.msra.mxu0 %v1371
    %1394 = vmatprep.subr.bf16.mxu0 0
    %1395 = vmatpush1.bf16.msra.mxu0 %v1372
    %1396 = vmatprep.subr.bf16.mxu0 0
    %1397 = vmatpush1.bf16.msra.mxu0 %v1373
    %1398 = vmatprep.subr.bf16.mxu0 0
    %1399 = vmatpush1.bf16.msra.mxu0 0
    %1400 = vmatprep.subr.bf16.mxu0 0
    %1401 = vmatpush1.bf16.msra.mxu0 0
    %1402 = vmatprep.subr.bf16.mxu0 0
    %1403 = vmatpush1.bf16.msra.mxu0 0
    %1404 = vmatprep.subr.bf16.mxu0 0
    %1405 = vmatpush1.bf16.msra.mxu0 0
    %1406 = vmatprep.subr.bf16.mxu0 0
    %1407 = vmatpush1.bf16.msra.mxu0 0
    %1408 = vmatprep.subr.bf16.mxu0 0
    %1409 = vmatpush1.bf16.msra.mxu0 0
    %1410 = vmatprep.subr.bf16.mxu0 0
    %1411 = vmatpush1.bf16.msra.mxu0 0
    %1412 = vmatprep.subr.bf16.mxu0 0
    %1413 = vmatpush1.bf16.msra.mxu0 0
    %1414 = vmatprep.mubr.bf16.mxu0 0
    %1415 = vmatmul.mubr.bf16.gmra.mrb[0].mxu0 %v1315
    %v1416 = vpop.f32.mrb[0].mxu0
    %v1417 = vadd.f32 0.0, %v1416
    %v1418 = vpop.f32.mrb[0].mxu0
    %v1419 = vpop.f32.mrb[0].mxu0
    %v1420 = vadd.f32 0.0, %v1419
    %v1421 = vpop.f32.mrb[0].mxu0
    %1422 = vmatprep.mubr.bf16.mxu0 0
    %1423 = vmatmul.mubr.bf16.gmra.mrb[0].mxu0 %v1316
    %v1424 = vpop.f32.mrb[0].mxu0
    %v1425 = vadd.f32 0.0, %v1424
    %v1426 = vpop.f32.mrb[0].mxu0
    %v1427 = vpop.f32.mrb[0].mxu0
    %v1428 = vadd.f32 0.0, %v1427
    %v1429 = vpop.f32.mrb[0].mxu0
    %1430 = vdwg.mxu0
    %v1431 = vadd.f32 %v1245, %v1417
    %v1432 = vadd.f32 %v1246, %v1420
    %v1433 = vadd.f32 %v1247, %v1425
    %v1434 = vadd.f32 %v1248, %v1428
    %s1435 = scalar_lea.vmem [#allocation7], 80
    %v1436 = vld [vmem:[%s1435] sm:$0xf]
    %v1437 = vld [vmem:[%s1435 + $0x4] sm:$0xf]
    %v1438 = vld [vmem:[%s1435 + $0x8] sm:$0xf]
    %v1439 = vld [vmem:[%s1435 + $0xc] sm:$0xf]
    %v1444 = vunpack.c.l.b16 %v1436
    %v1445 = vunpack.c.l.b16 %v1437
    %v1446 = vunpack.c.l.b16 %v1438
    %v1447 = vunpack.c.l.b16 %v1439
    %v1448 = vpack.c.b16 %v1445, %v1444
    %v1449 = vpack.c.b16 %v1447, %v1446
    %1452 = vmatprep.subr.bf16.mxu0 0
    %1453 = vmatpush1.bf16.msra.mxu0 %v507
    %1454 = vmatprep.subr.bf16.mxu0 0
    %1455 = vmatpush1.bf16.msra.mxu0 %v508
    %1456 = vmatprep.subr.bf16.mxu0 0
    %1457 = vmatpush1.bf16.msra.mxu0 %v509
    %1458 = vmatprep.subr.bf16.mxu0 0
    %1459 = vmatpush1.bf16.msra.mxu0 %v510
    %1460 = vmatprep.subr.bf16.mxu0 0
    %1461 = vmatpush1.bf16.msra.mxu0 %v511
    %1462 = vmatprep.subr.bf16.mxu0 0
    %1463 = vmatpush1.bf16.msra.mxu0 %v512
    %1464 = vmatprep.subr.bf16.mxu0 0
    %1465 = vmatpush1.bf16.msra.mxu0 %v513
    %1466 = vmatprep.subr.bf16.mxu0 0
    %1467 = vmatpush1.bf16.msra.mxu0 %v514
    %1468 = vmatprep.subr.bf16.mxu0 0
    %1469 = vmatpush1.bf16.msra.mxu0 0
    %1470 = vmatprep.subr.bf16.mxu0 0
    %1471 = vmatpush1.bf16.msra.mxu0 0
    %1472 = vmatprep.subr.bf16.mxu0 0
    %1473 = vmatpush1.bf16.msra.mxu0 0
    %1474 = vmatprep.subr.bf16.mxu0 0
    %1475 = vmatpush1.bf16.msra.mxu0 0
    %1476 = vmatprep.subr.bf16.mxu0 0
    %1477 = vmatpush1.bf16.msra.mxu0 0
    %1478 = vmatprep.subr.bf16.mxu0 0
    %1479 = vmatpush1.bf16.msra.mxu0 0
    %1480 = vmatprep.subr.bf16.mxu0 0
    %1481 = vmatpush1.bf16.msra.mxu0 0
    %1482 = vmatprep.subr.bf16.mxu0 0
    %1483 = vmatpush1.bf16.msra.mxu0 0
    %1484 = vmatprep.mubr.bf16.mxu0 0
    %1485 = vmatmul.mubr.bf16.gmra.mrb[0].mxu0 %v1448
    %v1486 = vpop.f32.mrb[0].mxu0
    %v1487 = vadd.f32 0.0, %v1486
    %v1488 = vpop.f32.mrb[0].mxu0
    %v1489 = vpop.f32.mrb[0].mxu0
    %v1490 = vadd.f32 0.0, %v1489
    %v1491 = vpop.f32.mrb[0].mxu0
    %1492 = vmatprep.mubr.bf16.mxu0 0
    %1493 = vmatmul.mubr.bf16.gmra.mrb[0].mxu0 %v1449
    %v1494 = vpop.f32.mrb[0].mxu0
    %v1495 = vadd.f32 0.0, %v1494
    %v1496 = vpop.f32.mrb[0].mxu0
    %v1497 = vpop.f32.mrb[0].mxu0
    %v1498 = vadd.f32 0.0, %v1497
    %v1499 = vpop.f32.mrb[0].mxu0
    %1500 = vdwg.mxu0
    %v1501 = vpack.c.bf16 %v1490, %v1487
    %v1502 = vpack.c.bf16 %v1498, %v1495
    %s1503 = scalar_lea.vmem [#allocation8], 320
    %v1504 = vld [vmem:[%s1503] sm:$0xf]
    %v1505 = vld [vmem:[%s1503 + $0x4] sm:$0xf]
    %v1506 = vld [vmem:[%s1503 + $0x8] sm:$0xf]
    %v1507 = vld [vmem:[%s1503 + $0xc] sm:$0xf]
    %v1508 = vld [vmem:[%s1503 + $0x10] sm:$0xf]
    %v1509 = vld [vmem:[%s1503 + $0x14] sm:$0xf]
    %v1510 = vld [vmem:[%s1503 + $0x18] sm:$0xf]
    %v1511 = vld [vmem:[%s1503 + $0x1c] sm:$0xf]
    %v1512 = vld [vmem:[%s1503 + $0x20] sm:$0xf]
    %v1513 = vld [vmem:[%s1503 + $0x24] sm:$0xf]
    %v1514 = vld [vmem:[%s1503 + $0x28] sm:$0xf]
    %v1515 = vld [vmem:[%s1503 + $0x2c] sm:$0xf]
    %v1516 = vld [vmem:[%s1503 + $0x30] sm:$0xf]
    %v1517 = vld [vmem:[%s1503 + $0x34] sm:$0xf]
    %v1518 = vld [vmem:[%s1503 + $0x38] sm:$0xf]
    %v1519 = vld [vmem:[%s1503 + $0x3c] sm:$0xf]
    %v1536 = vunpack.c.l.b16 %v1504
    %v1537 = vunpack.c.l.b16 %v1505
    %v1538 = vunpack.c.l.b16 %v1506
    %v1539 = vunpack.c.l.b16 %v1507
    %v1540 = vunpack.c.l.b16 %v1508
    %v1541 = vunpack.c.l.b16 %v1509
    %v1542 = vunpack.c.l.b16 %v1510
    %v1543 = vunpack.c.l.b16 %v1511
    %v1544 = vunpack.c.l.b16 %v1512
    %v1545 = vunpack.c.l.b16 %v1513
    %v1546 = vunpack.c.l.b16 %v1514
    %v1547 = vunpack.c.l.b16 %v1515
    %v1548 = vunpack.c.l.b16 %v1516
    %v1549 = vunpack.c.l.b16 %v1517
    %v1550 = vunpack.c.l.b16 %v1518
    %v1551 = vunpack.c.l.b16 %v1519
    %v1552 = vpack.c.b16 %v1537, %v1536
    %v1553 = vpack.c.b16 %v1539, %v1538
    %v1554 = vpack.c.b16 %v1541, %v1540
    %v1555 = vpack.c.b16 %v1543, %v1542
    %v1556 = vpack.c.b16 %v1545, %v1544
    %v1557 = vpack.c.b16 %v1547, %v1546
    %v1558 = vpack.c.b16 %v1549, %v1548
    %v1559 = vpack.c.b16 %v1551, %v1550
    %1568 = vmatprep.subr.bf16.mxu0 0
    %1569 = vmatpush1.bf16.msra.mxu0 %v1552
    %1570 = vmatprep.subr.bf16.mxu0 0
    %1571 = vmatpush1.bf16.msra.mxu0 %v1553
    %1572 = vmatprep.subr.bf16.mxu0 0
    %1573 = vmatpush1.bf16.msra.mxu0 %v1554
    %1574 = vmatprep.subr.bf16.mxu0 0
    %1575 = vmatpush1.bf16.msra.mxu0 %v1555
    %1576 = vmatprep.subr.bf16.mxu0 0
    %1577 = vmatpush1.bf16.msra.mxu0 %v1556
    %1578 = vmatprep.subr.bf16.mxu0 0
    %1579 = vmatpush1.bf16.msra.mxu0 %v1557
    %1580 = vmatprep.subr.bf16.mxu0 0
    %1581 = vmatpush1.bf16.msra.mxu0 %v1558
    %1582 = vmatprep.subr.bf16.mxu0 0
    %1583 = vmatpush1.bf16.msra.mxu0 %v1559
    %1584 = vmatprep.subr.bf16.mxu0 0
    %1585 = vmatpush1.bf16.msra.mxu0 0
    %1586 = vmatprep.subr.bf16.mxu0 0
    %1587 = vmatpush1.bf16.msra.mxu0 0
    %1588 = vmatprep.subr.bf16.mxu0 0
    %1589 = vmatpush1.bf16.msra.mxu0 0
    %1590 = vmatprep.subr.bf16.mxu0 0
    %1591 = vmatpush1.bf16.msra.mxu0 0
    %1592 = vmatprep.subr.bf16.mxu0 0
    %1593 = vmatpush1.bf16.msra.mxu0 0
    %1594 = vmatprep.subr.bf16.mxu0 0
    %1595 = vmatpush1.bf16.msra.mxu0 0
    %1596 = vmatprep.subr.bf16.mxu0 0
    %1597 = vmatpush1.bf16.msra.mxu0 0
    %1598 = vmatprep.subr.bf16.mxu0 0
    %1599 = vmatpush1.bf16.msra.mxu0 0
    %1600 = vmatprep.mubr.bf16.mxu0 0
    %1601 = vmatmul.mubr.bf16.gmra.mrb[0].mxu0 %v1501
    %v1602 = vpop.f32.mrb[0].mxu0
    %v1603 = vadd.f32 0.0, %v1602
    %v1604 = vpop.f32.mrb[0].mxu0
    %v1605 = vpop.f32.mrb[0].mxu0
    %v1606 = vadd.f32 0.0, %v1605
    %v1607 = vpop.f32.mrb[0].mxu0
    %1608 = vmatprep.mubr.bf16.mxu0 0
    %1609 = vmatmul.mubr.bf16.gmra.mrb[0].mxu0 %v1502
    %v1610 = vpop.f32.mrb[0].mxu0
    %v1611 = vadd.f32 0.0, %v1610
    %v1612 = vpop.f32.mrb[0].mxu0
    %v1613 = vpop.f32.mrb[0].mxu0
    %v1614 = vadd.f32 0.0, %v1613
    %v1615 = vpop.f32.mrb[0].mxu0
    %1616 = vdwg.mxu0
    %v1617 = vadd.f32 %v1431, %v1603
    %v1618 = vadd.f32 %v1432, %v1606
    %v1619 = vadd.f32 %v1433, %v1611
    %v1620 = vadd.f32 %v1434, %v1614
    %s1621 = scalar_lea.vmem [#allocation7], 96
    %v1622 = vld [vmem:[%s1621] sm:$0xf]
    %v1623 = vld [vmem:[%s1621 + $0x4] sm:$0xf]
    %v1624 = vld [vmem:[%s1621 + $0x8] sm:$0xf]
    %v1625 = vld [vmem:[%s1621 + $0xc] sm:$0xf]
    %v1630 = vunpack.c.l.b16 %v1622
    %v1631 = vunpack.c.l.b16 %v1623
    %v1632 = vunpack.c.l.b16 %v1624
    %v1633 = vunpack.c.l.b16 %v1625
    %v1634 = vpack.c.b16 %v1631, %v1630
    %v1635 = vpack.c.b16 %v1633, %v1632
    %1638 = vmatprep.subr.bf16.mxu0 0
    %1639 = vmatpush1.bf16.msra.mxu0 %v507
    %1640 = vmatprep.subr.bf16.mxu0 0
    %1641 = vmatpush1.bf16.msra.mxu0 %v508
    %1642 = vmatprep.subr.bf16.mxu0 0
    %1643 = vmatpush1.bf16.msra.mxu0 %v509
    %1644 = vmatprep.subr.bf16.mxu0 0
    %1645 = vmatpush1.bf16.msra.mxu0 %v510
    %1646 = vmatprep.subr.bf16.mxu0 0
    %1647 = vmatpush1.bf16.msra.mxu0 %v511
    %1648 = vmatprep.subr.bf16.mxu0 0
    %1649 = vmatpush1.bf16.msra.mxu0 %v512
    %1650 = vmatprep.subr.bf16.mxu0 0
    %1651 = vmatpush1.bf16.msra.mxu0 %v513
    %1652 = vmatprep.subr.bf16.mxu0 0
    %1653 = vmatpush1.bf16.msra.mxu0 %v514
    %1654 = vmatprep.subr.bf16.mxu0 0
    %1655 = vmatpush1.bf16.msra.mxu0 0
    %1656 = vmatprep.subr.bf16.mxu0 0
    %1657 = vmatpush1.bf16.msra.mxu0 0
    %1658 = vmatprep.subr.bf16.mxu0 0
    %1659 = vmatpush1.bf16.msra.mxu0 0
    %1660 = vmatprep.subr.bf16.mxu0 0
    %1661 = vmatpush1.bf16.msra.mxu0 0
    %1662 = vmatprep.subr.bf16.mxu0 0
    %1663 = vmatpush1.bf16.msra.mxu0 0
    %1664 = vmatprep.subr.bf16.mxu0 0
    %1665 = vmatpush1.bf16.msra.mxu0 0
    %1666 = vmatprep.subr.bf16.mxu0 0
    %1667 = vmatpush1.bf16.msra.mxu0 0
    %1668 = vmatprep.subr.bf16.mxu0 0
    %1669 = vmatpush1.bf16.msra.mxu0 0
    %1670 = vmatprep.mubr.bf16.mxu0 0
    %1671 = vmatmul.mubr.bf16.gmra.mrb[0].mxu0 %v1634
    %v1672 = vpop.f32.mrb[0].mxu0
    %v1673 = vadd.f32 0.0, %v1672
    %v1674 = vpop.f32.mrb[0].mxu0
    %v1675 = vpop.f32.mrb[0].mxu0
    %v1676 = vadd.f32 0.0, %v1675
    %v1677 = vpop.f32.mrb[0].mxu0
    %1678 = vmatprep.mubr.bf16.mxu0 0
    %1679 = vmatmul.mubr.bf16.gmra.mrb[0].mxu0 %v1635
    %v1680 = vpop.f32.mrb[0].mxu0
    %v1681 = vadd.f32 0.0, %v1680
    %v1682 = vpop.f32.mrb[0].mxu0
    %v1683 = vpop.f32.mrb[0].mxu0
    %v1684 = vadd.f32 0.0, %v1683
    %v1685 = vpop.f32.mrb[0].mxu0
    %1686 = vdwg.mxu0
    %v1687 = vpack.c.bf16 %v1676, %v1673
    %v1688 = vpack.c.bf16 %v1684, %v1681
    %s1689 = scalar_lea.vmem [#allocation8], 384
    %v1690 = vld [vmem:[%s1689] sm:$0xf]
    %v1691 = vld [vmem:[%s1689 + $0x4] sm:$0xf]
    %v1692 = vld [vmem:[%s1689 + $0x8] sm:$0xf]
    %v1693 = vld [vmem:[%s1689 + $0xc] sm:$0xf]
    %v1694 = vld [vmem:[%s1689 + $0x10] sm:$0xf]
    %v1695 = vld [vmem:[%s1689 + $0x14] sm:$0xf]
    %v1696 = vld [vmem:[%s1689 + $0x18] sm:$0xf]
    %v1697 = vld [vmem:[%s1689 + $0x1c] sm:$0xf]
    %v1698 = vld [vmem:[%s1689 + $0x20] sm:$0xf]
    %v1699 = vld [vmem:[%s1689 + $0x24] sm:$0xf]
    %v1700 = vld [vmem:[%s1689 + $0x28] sm:$0xf]
    %v1701 = vld [vmem:[%s1689 + $0x2c] sm:$0xf]
    %v1702 = vld [vmem:[%s1689 + $0x30] sm:$0xf]
    %v1703 = vld [vmem:[%s1689 + $0x34] sm:$0xf]
    %v1704 = vld [vmem:[%s1689 + $0x38] sm:$0xf]
    %v1705 = vld [vmem:[%s1689 + $0x3c] sm:$0xf]
    %v1722 = vunpack.c.l.b16 %v1690
    %v1723 = vunpack.c.l.b16 %v1691
    %v1724 = vunpack.c.l.b16 %v1692
    %v1725 = vunpack.c.l.b16 %v1693
    %v1726 = vunpack.c.l.b16 %v1694
    %v1727 = vunpack.c.l.b16 %v1695
    %v1728 = vunpack.c.l.b16 %v1696
    %v1729 = vunpack.c.l.b16 %v1697
    %v1730 = vunpack.c.l.b16 %v1698
    %v1731 = vunpack.c.l.b16 %v1699
    %v1732 = vunpack.c.l.b16 %v1700
    %v1733 = vunpack.c.l.b16 %v1701
    %v1734 = vunpack.c.l.b16 %v1702
    %v1735 = vunpack.c.l.b16 %v1703
    %v1736 = vunpack.c.l.b16 %v1704
    %v1737 = vunpack.c.l.b16 %v1705
    %v1738 = vpack.c.b16 %v1723, %v1722
    %v1739 = vpack.c.b16 %v1725, %v1724
    %v1740 = vpack.c.b16 %v1727, %v1726
    %v1741 = vpack.c.b16 %v1729, %v1728
    %v1742 = vpack.c.b16 %v1731, %v1730
    %v1743 = vpack.c.b16 %v1733, %v1732
    %v1744 = vpack.c.b16 %v1735, %v1734
    %v1745 = vpack.c.b16 %v1737, %v1736
    %1754 = vmatprep.subr.bf16.mxu0 0
    %1755 = vmatpush1.bf16.msra.mxu0 %v1738
    %1756 = vmatprep.subr.bf16.mxu0 0
    %1757 = vmatpush1.bf16.msra.mxu0 %v1739
    %1758 = vmatprep.subr.bf16.mxu0 0
    %1759 = vmatpush1.bf16.msra.mxu0 %v1740
    %1760 = vmatprep.subr.bf16.mxu0 0
    %1761 = vmatpush1.bf16.msra.mxu0 %v1741
    %1762 = vmatprep.subr.bf16.mxu0 0
    %1763 = vmatpush1.bf16.msra.mxu0 %v1742
    %1764 = vmatprep.subr.bf16.mxu0 0
    %1765 = vmatpush1.bf16.msra.mxu0 %v1743
    %1766 = vmatprep.subr.bf16.mxu0 0
    %1767 = vmatpush1.bf16.msra.mxu0 %v1744
    %1768 = vmatprep.subr.bf16.mxu0 0
    %1769 = vmatpush1.bf16.msra.mxu0 %v1745
    %1770 = vmatprep.subr.bf16.mxu0 0
    %1771 = vmatpush1.bf16.msra.mxu0 0
    %1772 = vmatprep.subr.bf16.mxu0 0
    %1773 = vmatpush1.bf16.msra.mxu0 0
    %1774 = vmatprep.subr.bf16.mxu0 0
    %1775 = vmatpush1.bf16.msra.mxu0 0
    %1776 = vmatprep.subr.bf16.mxu0 0
    %1777 = vmatpush1.bf16.msra.mxu0 0
    %1778 = vmatprep.subr.bf16.mxu0 0
    %1779 = vmatpush1.bf16.msra.mxu0 0
    %1780 = vmatprep.subr.bf16.mxu0 0
    %1781 = vmatpush1.bf16.msra.mxu0 0
    %1782 = vmatprep.subr.bf16.mxu0 0
    %1783 = vmatpush1.bf16.msra.mxu0 0
    %1784 = vmatprep.subr.bf16.mxu0 0
    %1785 = vmatpush1.bf16.msra.mxu0 0
    %1786 = vmatprep.mubr.bf16.mxu0 0
    %1787 = vmatmul.mubr.bf16.gmra.mrb[0].mxu0 %v1687
    %v1788 = vpop.f32.mrb[0].mxu0
    %v1789 = vadd.f32 0.0, %v1788
    %v1790 = vpop.f32.mrb[0].mxu0
    %v1791 = vpop.f32.mrb[0].mxu0
    %v1792 = vadd.f32 0.0, %v1791
    %v1793 = vpop.f32.mrb[0].mxu0
    %1794 = vmatprep.mubr.bf16.mxu0 0
    %1795 = vmatmul.mubr.bf16.gmra.mrb[0].mxu0 %v1688
    %v1796 = vpop.f32.mrb[0].mxu0
    %v1797 = vadd.f32 0.0, %v1796
    %v1798 = vpop.f32.mrb[0].mxu0
    %v1799 = vpop.f32.mrb[0].mxu0
    %v1800 = vadd.f32 0.0, %v1799
    %v1801 = vpop.f32.mrb[0].mxu0
    %1802 = vdwg.mxu0
    %v1803 = vadd.f32 %v1617, %v1789
    %v1804 = vadd.f32 %v1618, %v1792
    %v1805 = vadd.f32 %v1619, %v1797
    %v1806 = vadd.f32 %v1620, %v1800
    %s1807 = scalar_lea.vmem [#allocation7], 112
    %v1808 = vld [vmem:[%s1807] sm:$0xf]
    %v1809 = vld [vmem:[%s1807 + $0x4] sm:$0xf]
    %v1810 = vld [vmem:[%s1807 + $0x8] sm:$0xf]
    %v1811 = vld [vmem:[%s1807 + $0xc] sm:$0xf]
    %v1816 = vunpack.c.l.b16 %v1808
    %v1817 = vunpack.c.l.b16 %v1809
    %v1818 = vunpack.c.l.b16 %v1810
    %v1819 = vunpack.c.l.b16 %v1811
    %v1820 = vpack.c.b16 %v1817, %v1816
    %v1821 = vpack.c.b16 %v1819, %v1818
    %1824 = vmatprep.subr.bf16.mxu0 0
    %1825 = vmatpush1.bf16.msra.mxu0 %v507
    %1826 = vmatprep.subr.bf16.mxu0 0
    %1827 = vmatpush1.bf16.msra.mxu0 %v508
    %1828 = vmatprep.subr.bf16.mxu0 0
    %1829 = vmatpush1.bf16.msra.mxu0 %v509
    %1830 = vmatprep.subr.bf16.mxu0 0
    %1831 = vmatpush1.bf16.msra.mxu0 %v510
    %1832 = vmatprep.subr.bf16.mxu0 0
    %1833 = vmatpush1.bf16.msra.mxu0 %v511
    %1834 = vmatprep.subr.bf16.mxu0 0
    %1835 = vmatpush1.bf16.msra.mxu0 %v512
    %1836 = vmatprep.subr.bf16.mxu0 0
    %1837 = vmatpush1.bf16.msra.mxu0 %v513
    %1838 = vmatprep.subr.bf16.mxu0 0
    %1839 = vmatpush1.bf16.msra.mxu0 %v514
    %1840 = vmatprep.subr.bf16.mxu0 0
    %1841 = vmatpush1.bf16.msra.mxu0 0
    %1842 = vmatprep.subr.bf16.mxu0 0
    %1843 = vmatpush1.bf16.msra.mxu0 0
    %1844 = vmatprep.subr.bf16.mxu0 0
    %1845 = vmatpush1.bf16.msra.mxu0 0
    %1846 = vmatprep.subr.bf16.mxu0 0
    %1847 = vmatpush1.bf16.msra.mxu0 0
    %1848 = vmatprep.subr.bf16.mxu0 0
    %1849 = vmatpush1.bf16.msra.mxu0 0
    %1850 = vmatprep.subr.bf16.mxu0 0
    %1851 = vmatpush1.bf16.msra.mxu0 0
    %1852 = vmatprep.subr.bf16.mxu0 0
    %1853 = vmatpush1.bf16.msra.mxu0 0
    %1854 = vmatprep.subr.bf16.mxu0 0
    %1855 = vmatpush1.bf16.msra.mxu0 0
    %1856 = vmatprep.mubr.bf16.mxu0 0
    %1857 = vmatmul.mubr.bf16.gmra.mrb[0].mxu0 %v1820
    %v1858 = vpop.f32.mrb[0].mxu0
    %v1859 = vadd.f32 0.0, %v1858
    %v1860 = vpop.f32.mrb[0].mxu0
    %v1861 = vpop.f32.mrb[0].mxu0
    %v1862 = vadd.f32 0.0, %v1861
    %v1863 = vpop.f32.mrb[0].mxu0
    %1864 = vmatprep.mubr.bf16.mxu0 0
    %1865 = vmatmul.mubr.bf16.gmra.mrb[0].mxu0 %v1821
    %v1866 = vpop.f32.mrb[0].mxu0
    %v1867 = vadd.f32 0.0, %v1866
    %v1868 = vpop.f32.mrb[0].mxu0
    %v1869 = vpop.f32.mrb[0].mxu0
    %v1870 = vadd.f32 0.0, %v1869
    %v1871 = vpop.f32.mrb[0].mxu0
    %1872 = vdwg.mxu0
    %v1873 = vpack.c.bf16 %v1862, %v1859
    %v1874 = vpack.c.bf16 %v1870, %v1867
    %s1875 = scalar_lea.vmem [#allocation8], 448
    %v1876 = vld [vmem:[%s1875] sm:$0xf]
    %v1877 = vld [vmem:[%s1875 + $0x4] sm:$0xf]
    %v1878 = vld [vmem:[%s1875 + $0x8] sm:$0xf]
    %v1879 = vld [vmem:[%s1875 + $0xc] sm:$0xf]
    %v1880 = vld [vmem:[%s1875 + $0x10] sm:$0xf]
    %v1881 = vld [vmem:[%s1875 + $0x14] sm:$0xf]
    %v1882 = vld [vmem:[%s1875 + $0x18] sm:$0xf]
    %v1883 = vld [vmem:[%s1875 + $0x1c] sm:$0xf]
    %v1884 = vld [vmem:[%s1875 + $0x20] sm:$0xf]
    %v1885 = vld [vmem:[%s1875 + $0x24] sm:$0xf]
    %v1886 = vld [vmem:[%s1875 + $0x28] sm:$0xf]
    %v1887 = vld [vmem:[%s1875 + $0x2c] sm:$0xf]
    %v1888 = vld [vmem:[%s1875 + $0x30] sm:$0xf]
    %v1889 = vld [vmem:[%s1875 + $0x34] sm:$0xf]
    %v1890 = vld [vmem:[%s1875 + $0x38] sm:$0xf]
    %v1891 = vld [vmem:[%s1875 + $0x3c] sm:$0xf]
    %v1908 = vunpack.c.l.b16 %v1876
    %v1909 = vunpack.c.l.b16 %v1877
    %v1910 = vunpack.c.l.b16 %v1878
    %v1911 = vunpack.c.l.b16 %v1879
    %v1912 = vunpack.c.l.b16 %v1880
    %v1913 = vunpack.c.l.b16 %v1881
    %v1914 = vunpack.c.l.b16 %v1882
    %v1915 = vunpack.c.l.b16 %v1883
    %v1916 = vunpack.c.l.b16 %v1884
    %v1917 = vunpack.c.l.b16 %v1885
    %v1918 = vunpack.c.l.b16 %v1886
    %v1919 = vunpack.c.l.b16 %v1887
    %v1920 = vunpack.c.l.b16 %v1888
    %v1921 = vunpack.c.l.b16 %v1889
    %v1922 = vunpack.c.l.b16 %v1890
    %v1923 = vunpack.c.l.b16 %v1891
    %v1924 = vpack.c.b16 %v1909, %v1908
    %v1925 = vpack.c.b16 %v1911, %v1910
    %v1926 = vpack.c.b16 %v1913, %v1912
    %v1927 = vpack.c.b16 %v1915, %v1914
    %v1928 = vpack.c.b16 %v1917, %v1916
    %v1929 = vpack.c.b16 %v1919, %v1918
    %v1930 = vpack.c.b16 %v1921, %v1920
    %v1931 = vpack.c.b16 %v1923, %v1922
    %1940 = vmatprep.subr.bf16.mxu0 0
    %1941 = vmatpush1.bf16.msra.mxu0 %v1924
    %1942 = vmatprep.subr.bf16.mxu0 0
    %1943 = vmatpush1.bf16.msra.mxu0 %v1925
    %1944 = vmatprep.subr.bf16.mxu0 0
    %1945 = vmatpush1.bf16.msra.mxu0 %v1926
    %1946 = vmatprep.subr.bf16.mxu0 0
    %1947 = vmatpush1.bf16.msra.mxu0 %v1927
    %1948 = vmatprep.subr.bf16.mxu0 0
    %1949 = vmatpush1.bf16.msra.mxu0 %v1928
    %1950 = vmatprep.subr.bf16.mxu0 0
    %1951 = vmatpush1.bf16.msra.mxu0 %v1929
    %1952 = vmatprep.subr.bf16.mxu0 0
    %1953 = vmatpush1.bf16.msra.mxu0 %v1930
    %1954 = vmatprep.subr.bf16.mxu0 0
    %1955 = vmatpush1.bf16.msra.mxu0 %v1931
    %1956 = vmatprep.subr.bf16.mxu0 0
    %1957 = vmatpush1.bf16.msra.mxu0 0
    %1958 = vmatprep.subr.bf16.mxu0 0
    %1959 = vmatpush1.bf16.msra.mxu0 0
    %1960 = vmatprep.subr.bf16.mxu0 0
    %1961 = vmatpush1.bf16.msra.mxu0 0
    %1962 = vmatprep.subr.bf16.mxu0 0
    %1963 = vmatpush1.bf16.msra.mxu0 0
    %1964 = vmatprep.subr.bf16.mxu0 0
    %1965 = vmatpush1.bf16.msra.mxu0 0
    %1966 = vmatprep.subr.bf16.mxu0 0
    %1967 = vmatpush1.bf16.msra.mxu0 0
    %1968 = vmatprep.subr.bf16.mxu0 0
    %1969 = vmatpush1.bf16.msra.mxu0 0
    %1970 = vmatprep.subr.bf16.mxu0 0
    %1971 = vmatpush1.bf16.msra.mxu0 0
    %1972 = vmatprep.mubr.bf16.mxu0 0
    %1973 = vmatmul.mubr.bf16.gmra.mrb[0].mxu0 %v1873
    %v1974 = vpop.f32.mrb[0].mxu0
    %v1975 = vadd.f32 0.0, %v1974
    %v1976 = vpop.f32.mrb[0].mxu0
    %v1977 = vpop.f32.mrb[0].mxu0
    %v1978 = vadd.f32 0.0, %v1977
    %v1979 = vpop.f32.mrb[0].mxu0
    %1980 = vmatprep.mubr.bf16.mxu0 0
    %1981 = vmatmul.mubr.bf16.gmra.mrb[0].mxu0 %v1874
    %v1982 = vpop.f32.mrb[0].mxu0
    %v1983 = vadd.f32 0.0, %v1982
    %v1984 = vpop.f32.mrb[0].mxu0
    %v1985 = vpop.f32.mrb[0].mxu0
    %v1986 = vadd.f32 0.0, %v1985
    %v1987 = vpop.f32.mrb[0].mxu0
    %1988 = vdwg.mxu0
    %v1989 = vadd.f32 %v1803, %v1975
    %v1990 = vadd.f32 %v1804, %v1978
    %v1991 = vadd.f32 %v1805, %v1983
    %v1992 = vadd.f32 %v1806, %v1986
    %s1993 = scalar_lea.vmem [#allocation7], 128
    %v1994 = vld [vmem:[%s1993] sm:$0xf]
    %v1995 = vld [vmem:[%s1993 + $0x4] sm:$0xf]
    %v1996 = vld [vmem:[%s1993 + $0x8] sm:$0xf]
    %v1997 = vld [vmem:[%s1993 + $0xc] sm:$0xf]
    %v2002 = vunpack.c.l.b16 %v1994
    %v2003 = vunpack.c.l.b16 %v1995
    %v2004 = vunpack.c.l.b16 %v1996
    %v2005 = vunpack.c.l.b16 %v1997
    %v2006 = vpack.c.b16 %v2003, %v2002
    %v2007 = vpack.c.b16 %v2005, %v2004
    %2010 = vmatprep.subr.bf16.mxu0 0
    %2011 = vmatpush1.bf16.msra.mxu0 %v507
    %2012 = vmatprep.subr.bf16.mxu0 0
    %2013 = vmatpush1.bf16.msra.mxu0 %v508
    %2014 = vmatprep.subr.bf16.mxu0 0
    %2015 = vmatpush1.bf16.msra.mxu0 %v509
    %2016 = vmatprep.subr.bf16.mxu0 0
    %2017 = vmatpush1.bf16.msra.mxu0 %v510
    %2018 = vmatprep.subr.bf16.mxu0 0
    %2019 = vmatpush1.bf16.msra.mxu0 %v511
    %2020 = vmatprep.subr.bf16.mxu0 0
    %2021 = vmatpush1.bf16.msra.mxu0 %v512
    %2022 = vmatprep.subr.bf16.mxu0 0
    %2023 = vmatpush1.bf16.msra.mxu0 %v513
    %2024 = vmatprep.subr.bf16.mxu0 0
    %2025 = vmatpush1.bf16.msra.mxu0 %v514
    %2026 = vmatprep.subr.bf16.mxu0 0
    %2027 = vmatpush1.bf16.msra.mxu0 0
    %2028 = vmatprep.subr.bf16.mxu0 0
    %2029 = vmatpush1.bf16.msra.mxu0 0
    %2030 = vmatprep.subr.bf16.mxu0 0
    %2031 = vmatpush1.bf16.msra.mxu0 0
    %2032 = vmatprep.subr.bf16.mxu0 0
    %2033 = vmatpush1.bf16.msra.mxu0 0
    %2034 = vmatprep.subr.bf16.mxu0 0
    %2035 = vmatpush1.bf16.msra.mxu0 0
    %2036 = vmatprep.subr.bf16.mxu0 0
    %2037 = vmatpush1.bf16.msra.mxu0 0
    %2038 = vmatprep.subr.bf16.mxu0 0
    %2039 = vmatpush1.bf16.msra.mxu0 0
    %2040 = vmatprep.subr.bf16.mxu0 0
    %2041 = vmatpush1.bf16.msra.mxu0 0
    %2042 = vmatprep.mubr.bf16.mxu0 0
    %2043 = vmatmul.mubr.bf16.gmra.mrb[0].mxu0 %v2006
    %v2044 = vpop.f32.mrb[0].mxu0
    %v2045 = vadd.f32 0.0, %v2044
    %v2046 = vpop.f32.mrb[0].mxu0
    %v2047 = vpop.f32.mrb[0].mxu0
    %v2048 = vadd.f32 0.0, %v2047
    %v2049 = vpop.f32.mrb[0].mxu0
    %2050 = vmatprep.mubr.bf16.mxu0 0
    %2051 = vmatmul.mubr.bf16.gmra.mrb[0].mxu0 %v2007
    %v2052 = vpop.f32.mrb[0].mxu0
    %v2053 = vadd.f32 0.0, %v2052
    %v2054 = vpop.f32.mrb[0].mxu0
    %v2055 = vpop.f32.mrb[0].mxu0
    %v2056 = vadd.f32 0.0, %v2055
    %v2057 = vpop.f32.mrb[0].mxu0
    %2058 = vdwg.mxu0
    %v2059 = vpack.c.bf16 %v2048, %v2045
    %v2060 = vpack.c.bf16 %v2056, %v2053
    %s2061 = scalar_lea.vmem [#allocation8], 512
    %v2062 = vld [vmem:[%s2061] sm:$0xf]
    %v2063 = vld [vmem:[%s2061 + $0x4] sm:$0xf]
    %v2064 = vld [vmem:[%s2061 + $0x8] sm:$0xf]
    %v2065 = vld [vmem:[%s2061 + $0xc] sm:$0xf]
    %v2066 = vld [vmem:[%s2061 + $0x10] sm:$0xf]
    %v2067 = vld [vmem:[%s2061 + $0x14] sm:$0xf]
    %v2068 = vld [vmem:[%s2061 + $0x18] sm:$0xf]
    %v2069 = vld [vmem:[%s2061 + $0x1c] sm:$0xf]
    %v2070 = vld [vmem:[%s2061 + $0x20] sm:$0xf]
    %v2071 = vld [vmem:[%s2061 + $0x24] sm:$0xf]
    %v2072 = vld [vmem:[%s2061 + $0x28] sm:$0xf]
    %v2073 = vld [vmem:[%s2061 + $0x2c] sm:$0xf]
    %v2074 = vld [vmem:[%s2061 + $0x30] sm:$0xf]
    %v2075 = vld [vmem:[%s2061 + $0x34] sm:$0xf]
    %v2076 = vld [vmem:[%s2061 + $0x38] sm:$0xf]
    %v2077 = vld [vmem:[%s2061 + $0x3c] sm:$0xf]
    %v2094 = vunpack.c.l.b16 %v2062
    %v2095 = vunpack.c.l.b16 %v2063
    %v2096 = vunpack.c.l.b16 %v2064
    %v2097 = vunpack.c.l.b16 %v2065
    %v2098 = vunpack.c.l.b16 %v2066
    %v2099 = vunpack.c.l.b16 %v2067
    %v2100 = vunpack.c.l.b16 %v2068
    %v2101 = vunpack.c.l.b16 %v2069
    %v2102 = vunpack.c.l.b16 %v2070
    %v2103 = vunpack.c.l.b16 %v2071
    %v2104 = vunpack.c.l.b16 %v2072
    %v2105 = vunpack.c.l.b16 %v2073
    %v2106 = vunpack.c.l.b16 %v2074
    %v2107 = vunpack.c.l.b16 %v2075
    %v2108 = vunpack.c.l.b16 %v2076
    %v2109 = vunpack.c.l.b16 %v2077
    %v2110 = vpack.c.b16 %v2095, %v2094
    %v2111 = vpack.c.b16 %v2097, %v2096
    %v2112 = vpack.c.b16 %v2099, %v2098
    %v2113 = vpack.c.b16 %v2101, %v2100
    %v2114 = vpack.c.b16 %v2103, %v2102
    %v2115 = vpack.c.b16 %v2105, %v2104
    %v2116 = vpack.c.b16 %v2107, %v2106
    %v2117 = vpack.c.b16 %v2109, %v2108
    %2126 = vmatprep.subr.bf16.mxu0 0
    %2127 = vmatpush1.bf16.msra.mxu0 %v2110
    %2128 = vmatprep.subr.bf16.mxu0 0
    %2129 = vmatpush1.bf16.msra.mxu0 %v2111
    %2130 = vmatprep.subr.bf16.mxu0 0
    %2131 = vmatpush1.bf16.msra.mxu0 %v2112
    %2132 = vmatprep.subr.bf16.mxu0 0
    %2133 = vmatpush1.bf16.msra.mxu0 %v2113
    %2134 = vmatprep.subr.bf16.mxu0 0
    %2135 = vmatpush1.bf16.msra.mxu0 %v2114
    %2136 = vmatprep.subr.bf16.mxu0 0
    %2137 = vmatpush1.bf16.msra.mxu0 %v2115
    %2138 = vmatprep.subr.bf16.mxu0 0
    %2139 = vmatpush1.bf16.msra.mxu0 %v2116
    %2140 = vmatprep.subr.bf16.mxu0 0
    %2141 = vmatpush1.bf16.msra.mxu0 %v2117
    %2142 = vmatprep.subr.bf16.mxu0 0
    %2143 = vmatpush1.bf16.msra.mxu0 0
    %2144 = vmatprep.subr.bf16.mxu0 0
    %2145 = vmatpush1.bf16.msra.mxu0 0
    %2146 = vmatprep.subr.bf16.mxu0 0
    %2147 = vmatpush1.bf16.msra.mxu0 0
    %2148 = vmatprep.subr.bf16.mxu0 0
    %2149 = vmatpush1.bf16.msra.mxu0 0
    %2150 = vmatprep.subr.bf16.mxu0 0
    %2151 = vmatpush1.bf16.msra.mxu0 0
    %2152 = vmatprep.subr.bf16.mxu0 0
    %2153 = vmatpush1.bf16.msra.mxu0 0
    %2154 = vmatprep.subr.bf16.mxu0 0
    %2155 = vmatpush1.bf16.msra.mxu0 0
    %2156 = vmatprep.subr.bf16.mxu0 0
    %2157 = vmatpush1.bf16.msra.mxu0 0
    %2158 = vmatprep.mubr.bf16.mxu0 0
    %2159 = vmatmul.mubr.bf16.gmra.mrb[0].mxu0 %v2059
    %v2160 = vpop.f32.mrb[0].mxu0
    %v2161 = vadd.f32 0.0, %v2160
    %v2162 = vpop.f32.mrb[0].mxu0
    %v2163 = vpop.f32.mrb[0].mxu0
    %v2164 = vadd.f32 0.0, %v2163
    %v2165 = vpop.f32.mrb[0].mxu0
    %2166 = vmatprep.mubr.bf16.mxu0 0
    %2167 = vmatmul.mubr.bf16.gmra.mrb[0].mxu0 %v2060
    %v2168 = vpop.f32.mrb[0].mxu0
    %v2169 = vadd.f32 0.0, %v2168
    %v2170 = vpop.f32.mrb[0].mxu0
    %v2171 = vpop.f32.mrb[0].mxu0
    %v2172 = vadd.f32 0.0, %v2171
    %v2173 = vpop.f32.mrb[0].mxu0
    %2174 = vdwg.mxu0
    %v2175 = vadd.f32 %v1989, %v2161
    %v2176 = vadd.f32 %v1990, %v2164
    %v2177 = vadd.f32 %v1991, %v2169
    %v2178 = vadd.f32 %v1992, %v2172
    %v2179 = vld [vmem:[%s6 + $0x2] sm:$0x1]
    %v2180 = vld [vmem:[%s6 + $0x3] sm:$0x1]
    %v2181 = vadd.f32 %v2175, %v2176
    %v2182 = vadd.f32 %v2181, %v2177
    %v2183 = vadd.f32 %v2182, %v2178
    %v2184 = vrot.slane %v2183, 4
    %v2185 = vadd.f32 %v2183, %v2184
    %v2186 = vrot.slane %v2185, 2
    %v2187 = vadd.f32 %v2185, %v2186
    %v2188 = vrot.slane %v2187, 1
    %v2189 = vadd.f32 %v2187, %v2188
    %v2190 = vrcp.pop 32.0
    %v2191 = vmul.f32 %v2189, %v2190
    %v2192 = vsub.f32 %v2175, %v2191
    %v2193 = vsub.f32 %v2176, %v2191
    %v2194 = vsub.f32 %v2177, %v2191
    %v2195 = vsub.f32 %v2178, %v2191
    %v2196 = vmul.f32 %v2192, %v2192
    %v2197 = vmul.f32 %v2193, %v2193
    %v2198 = vmul.f32 %v2194, %v2194
    %v2199 = vmul.f32 %v2195, %v2195
    %v2200 = vadd.f32 %v2196, %v2197
    %v2201 = vadd.f32 %v2200, %v2198
    %v2202 = vadd.f32 %v2201, %v2199
    %v2203 = vrot.slane %v2202, 4
    %v2204 = vadd.f32 %v2202, %v2203
    %v2205 = vrot.slane %v2204, 2
    %v2206 = vadd.f32 %v2204, %v2205
    %v2207 = vrot.slane %v2206, 1
    %v2208 = vadd.f32 %v2206, %v2207
    %v2209 = vmul.f32 %v2208, %v2190
    %v2210 = vadd.f32 %v2209, 1e-05
    %v2211 = vrsqrt.pop %v2210
    %v2212 = vmul.f32 %v2179, %v2211
    %v2213 = vmul.f32 %v2191, %v2212
    %v2214 = vsub.f32 %v2180, %v2213
    %v2215 = vlaneseq
    %v2216 = vshrl.u32 %v2215, 7
    %v2217 = vsub.s32 0, %v2216
    %v2218 = vrot.slane %v2212, %v2217
    %v2219 = vmul.f32 %v2175, %v2218
    %v2220 = vmul.f32 %v2176, %v2218
    %v2221 = vmul.f32 %v2177, %v2218
    %v2222 = vmul.f32 %v2178, %v2218
    %v2223 = vlaneseq
    %v2224 = vshrl.u32 %v2223, 7
    %v2225 = vsub.s32 0, %v2224
    %v2226 = vrot.slane %v2214, %v2225
    %v2227 = vadd.f32 %v2219, %v2226
    %v2228 = vadd.f32 %v2220, %v2226
    %v2229 = vadd.f32 %v2221, %v2226
    %v2230 = vadd.f32 %v2222, %v2226
    %vm2231 = vcmp.gt.f32.partialorder %v2227, 0.0
    %vm2232 = vcmp.gt.f32.partialorder %v2228, 0.0
    %vm2233 = vcmp.gt.f32.partialorder %v2229, 0.0
    %vm2234 = vcmp.gt.f32.partialorder %v2230, 0.0
    %v2235 = vmul.f32 %v2227, 0.2
    %v2236 = vmul.f32 %v2228, 0.2
    %v2237 = vmul.f32 %v2229, 0.2
    %v2238 = vmul.f32 %v2230, 0.2
    %v2239 = vsel %vm2231, %v2227, %v2235
    %v2240 = vsel %vm2232, %v2228, %v2236
    %v2241 = vsel %vm2233, %v2229, %v2237
    %v2242 = vsel %vm2234, %v2230, %v2238
    %v2243 = vpack.c.bf16 %v2240, %v2239
    %v2244 = vpack.c.bf16 %v2242, %v2241
    %v2245 = vld [vmem:[#allocation10] sm:$0xf]
    %v2246 = vld [vmem:[#allocation10 + $0x4] sm:$0xf]
    %v2247 = vld [vmem:[#allocation10 + $0x8] sm:$0xf]
    %v2248 = vld [vmem:[#allocation10 + $0xc] sm:$0xf]
    %v2253 = vunpack.c.l.b16 %v2245
    %v2254 = vunpack.c.l.b16 %v2246
    %v2255 = vunpack.c.l.b16 %v2247
    %v2256 = vunpack.c.l.b16 %v2248
    %v2257 = vpack.c.b16 %v2254, %v2253
    %v2258 = vpack.c.b16 %v2256, %v2255
    %vm2259 = vcmask 261120
    %v2261 = vsel %vm2259, %v2257, 0
    %v2264 = vsel %vm2259, %v2258, 0
    %2266 = vmatprep.subr.bf16.mxu0 0
    %2267 = vmatpush1.bf16.msra.mxu0 %v2243
    %2268 = vmatprep.subr.bf16.mxu0 0
    %2269 = vmatpush1.bf16.msra.mxu0 %v2244
    %2270 = vmatprep.subr.bf16.mxu0 0
    %2271 = vmatpush1.bf16.msra.mxu0 0
    %2272 = vmatprep.subr.bf16.mxu0 0
    %2273 = vmatpush1.bf16.msra.mxu0 0
    %2274 = vmatprep.subr.bf16.mxu0 0
    %2275 = vmatpush1.bf16.msra.mxu0 0
    %2276 = vmatprep.subr.bf16.mxu0 0
    %2277 = vmatpush1.bf16.msra.mxu0 0
    %2278 = vmatprep.subr.bf16.mxu0 0
    %2279 = vmatpush1.bf16.msra.mxu0 0
    %2280 = vmatprep.subr.bf16.mxu0 0
    %2281 = vmatpush1.bf16.msra.mxu0 0
    %2282 = vmatprep.subr.bf16.mxu0 0
    %2283 = vmatpush1.bf16.msra.mxu0 0
    %2284 = vmatprep.subr.bf16.mxu0 0
    %2285 = vmatpush1.bf16.msra.mxu0 0
    %2286 = vmatprep.subr.bf16.mxu0 0
    %2287 = vmatpush1.bf16.msra.mxu0 0
    %2288 = vmatprep.subr.bf16.mxu0 0
    %2289 = vmatpush1.bf16.msra.mxu0 0
    %2290 = vmatprep.subr.bf16.mxu0 0
    %2291 = vmatpush1.bf16.msra.mxu0 0
    %2292 = vmatprep.subr.bf16.mxu0 0
    %2293 = vmatpush1.bf16.msra.mxu0 0
    %2294 = vmatprep.subr.bf16.mxu0 0
    %2295 = vmatpush1.bf16.msra.mxu0 0
    %2296 = vmatprep.subr.bf16.mxu0 0
    %2297 = vmatpush1.bf16.msra.mxu0 0
    %2298 = vmatprep.mubr.bf16.mxu0 0
    %2299 = vmatmul.mubr.bf16.gmra.mrb[0].mxu0 %v2261
    %v2300 = vpop.f32.mrb[0].mxu0
    %v2301 = vadd.f32 0.0, %v2300
    %v2302 = vpop.f32.mrb[0].mxu0
    %v2303 = vpop.f32.mrb[0].mxu0
    %v2304 = vadd.f32 0.0, %v2303
    %v2305 = vpop.f32.mrb[0].mxu0
    %2306 = vmatprep.mubr.bf16.mxu0 0
    %2307 = vmatmul.mubr.bf16.gmra.mrb[0].mxu0 %v2264
    %v2308 = vpop.f32.mrb[0].mxu0
    %v2309 = vadd.f32 0.0, %v2308
    %v2310 = vpop.f32.mrb[0].mxu0
    %v2311 = vpop.f32.mrb[0].mxu0
    %v2312 = vadd.f32 0.0, %v2311
    %v2313 = vpop.f32.mrb[0].mxu0
    %2314 = vdwg.mxu0
    %v2315 = vpack.c.bf16 %v2304, %v2301
    %v2316 = vpack.c.bf16 %v2312, %v2309
    %v2317 = vld [vmem:[#allocation11] sm:$0xf]
    %v2318 = vld [vmem:[#allocation11 + $0x4] sm:$0xf]
    %v2319 = vld [vmem:[#allocation11 + $0x8] sm:$0xf]
    %v2320 = vld [vmem:[#allocation11 + $0xc] sm:$0xf]
    %v2321 = vld [vmem:[#allocation11 + $0x10] sm:$0xf]
    %v2322 = vld [vmem:[#allocation11 + $0x14] sm:$0xf]
    %v2323 = vld [vmem:[#allocation11 + $0x18] sm:$0xf]
    %v2324 = vld [vmem:[#allocation11 + $0x1c] sm:$0xf]
    %v2325 = vld [vmem:[#allocation11 + $0x20] sm:$0xf]
    %v2326 = vld [vmem:[#allocation11 + $0x24] sm:$0xf]
    %v2327 = vld [vmem:[#allocation11 + $0x28] sm:$0xf]
    %v2328 = vld [vmem:[#allocation11 + $0x2c] sm:$0xf]
    %v2329 = vld [vmem:[#allocation11 + $0x30] sm:$0xf]
    %v2330 = vld [vmem:[#allocation11 + $0x34] sm:$0xf]
    %v2331 = vld [vmem:[#allocation11 + $0x38] sm:$0xf]
    %v2332 = vld [vmem:[#allocation11 + $0x3c] sm:$0xf]
    %s2333 = scalar_lea.vmem [#allocation10], 16
    %v2334 = vld [vmem:[%s2333] sm:$0xf]
    %v2335 = vld [vmem:[%s2333 + $0x4] sm:$0xf]
    %v2336 = vld [vmem:[%s2333 + $0x8] sm:$0xf]
    %v2337 = vld [vmem:[%s2333 + $0xc] sm:$0xf]
    %v2342 = vunpack.c.l.b16 %v2334
    %v2343 = vunpack.c.l.b16 %v2335
    %v2344 = vunpack.c.l.b16 %v2336
    %v2345 = vunpack.c.l.b16 %v2337
    %v2346 = vpack.c.b16 %v2343, %v2342
    %v2347 = vpack.c.b16 %v2345, %v2344
    %v2349 = vsel %vm2259, %v2346, 0
    %v2352 = vsel %vm2259, %v2347, 0
    %2354 = vmatprep.subr.bf16.mxu0 0
    %2355 = vmatpush1.bf16.msra.mxu0 %v2243
    %2356 = vmatprep.subr.bf16.mxu0 0
    %2357 = vmatpush1.bf16.msra.mxu0 %v2244
    %2358 = vmatprep.subr.bf16.mxu0 0
    %2359 = vmatpush1.bf16.msra.mxu0 0
    %2360 = vmatprep.subr.bf16.mxu0 0
    %2361 = vmatpush1.bf16.msra.mxu0 0
    %2362 = vmatprep.subr.bf16.mxu0 0
    %2363 = vmatpush1.bf16.msra.mxu0 0
    %2364 = vmatprep.subr.bf16.mxu0 0
    %2365 = vmatpush1.bf16.msra.mxu0 0
    %2366 = vmatprep.subr.bf16.mxu0 0
    %2367 = vmatpush1.bf16.msra.mxu0 0
    %2368 = vmatprep.subr.bf16.mxu0 0
    %2369 = vmatpush1.bf16.msra.mxu0 0
    %2370 = vmatprep.subr.bf16.mxu0 0
    %2371 = vmatpush1.bf16.msra.mxu0 0
    %2372 = vmatprep.subr.bf16.mxu0 0
    %2373 = vmatpush1.bf16.msra.mxu0 0
    %2374 = vmatprep.subr.bf16.mxu0 0
    %2375 = vmatpush1.bf16.msra.mxu0 0
    %2376 = vmatprep.subr.bf16.mxu0 0
    %2377 = vmatpush1.bf16.msra.mxu0 0
    %2378 = vmatprep.subr.bf16.mxu0 0
    %2379 = vmatpush1.bf16.msra.mxu0 0
    %2380 = vmatprep.subr.bf16.mxu0 0
    %2381 = vmatpush1.bf16.msra.mxu0 0
    %2382 = vmatprep.subr.bf16.mxu0 0
    %2383 = vmatpush1.bf16.msra.mxu0 0
    %2384 = vmatprep.subr.bf16.mxu0 0
    %2385 = vmatpush1.bf16.msra.mxu0 0
    %2386 = vmatprep.mubr.bf16.mxu0 0
    %2387 = vmatmul.mubr.bf16.gmra.mrb[0].mxu0 %v2349
    %v2388 = vpop.f32.mrb[0].mxu0
    %v2389 = vadd.f32 0.0, %v2388
    %v2390 = vpop.f32.mrb[0].mxu0
    %v2391 = vpop.f32.mrb[0].mxu0
    %v2392 = vadd.f32 0.0, %v2391
    %v2393 = vpop.f32.mrb[0].mxu0
    %2394 = vmatprep.mubr.bf16.mxu0 0
    %2395 = vmatmul.mubr.bf16.gmra.mrb[0].mxu0 %v2352
    %v2396 = vpop.f32.mrb[0].mxu0
    %v2397 = vadd.f32 0.0, %v2396
    %v2398 = vpop.f32.mrb[0].mxu0
    %v2399 = vpop.f32.mrb[0].mxu0
    %v2400 = vadd.f32 0.0, %v2399
    %v2401 = vpop.f32.mrb[0].mxu0
    %2402 = vdwg.mxu0
    %v2403 = vpack.c.bf16 %v2392, %v2389
    %v2404 = vpack.c.bf16 %v2400, %v2397
    %s2405 = scalar_lea.vmem [#allocation11], 64
    %v2406 = vld [vmem:[%s2405] sm:$0xf]
    %v2407 = vld [vmem:[%s2405 + $0x4] sm:$0xf]
    %v2408 = vld [vmem:[%s2405 + $0x8] sm:$0xf]
    %v2409 = vld [vmem:[%s2405 + $0xc] sm:$0xf]
    %v2410 = vld [vmem:[%s2405 + $0x10] sm:$0xf]
    %v2411 = vld [vmem:[%s2405 + $0x14] sm:$0xf]
    %v2412 = vld [vmem:[%s2405 + $0x18] sm:$0xf]
    %v2413 = vld [vmem:[%s2405 + $0x1c] sm:$0xf]
    %v2414 = vld [vmem:[%s2405 + $0x20] sm:$0xf]
    %v2415 = vld [vmem:[%s2405 + $0x24] sm:$0xf]
    %v2416 = vld [vmem:[%s2405 + $0x28] sm:$0xf]
    %v2417 = vld [vmem:[%s2405 + $0x2c] sm:$0xf]
    %v2418 = vld [vmem:[%s2405 + $0x30] sm:$0xf]
    %v2419 = vld [vmem:[%s2405 + $0x34] sm:$0xf]
    %v2420 = vld [vmem:[%s2405 + $0x38] sm:$0xf]
    %v2421 = vld [vmem:[%s2405 + $0x3c] sm:$0xf]
    %v2438 = vunpack.c.l.b16 %v2406
    %v2439 = vunpack.c.l.b16 %v2407
    %v2440 = vunpack.c.l.b16 %v2408
    %v2441 = vunpack.c.l.b16 %v2409
    %v2442 = vunpack.c.l.b16 %v2410
    %v2443 = vunpack.c.l.b16 %v2411
    %v2444 = vunpack.c.l.b16 %v2412
    %v2445 = vunpack.c.l.b16 %v2413
    %v2446 = vunpack.c.l.b16 %v2414
    %v2447 = vunpack.c.l.b16 %v2415
    %v2448 = vunpack.c.l.b16 %v2416
    %v2449 = vunpack.c.l.b16 %v2417
    %v2450 = vunpack.c.l.b16 %v2418
    %v2451 = vunpack.c.l.b16 %v2419
    %v2452 = vunpack.c.l.b16 %v2420
    %v2453 = vunpack.c.l.b16 %v2421
    %v2454 = vpack.c.b16 %v2439, %v2438
    %v2455 = vpack.c.b16 %v2441, %v2440
    %v2456 = vpack.c.b16 %v2443, %v2442
    %v2457 = vpack.c.b16 %v2445, %v2444
    %v2458 = vpack.c.b16 %v2447, %v2446
    %v2459 = vpack.c.b16 %v2449, %v2448
    %v2460 = vpack.c.b16 %v2451, %v2450
    %v2461 = vpack.c.b16 %v2453, %v2452
    %2470 = vmatprep.subr.bf16.mxu0 0
    %2471 = vmatpush1.bf16.msra.mxu0 %v2454
    %2472 = vmatprep.subr.bf16.mxu0 0
    %2473 = vmatpush1.bf16.msra.mxu0 %v2455
    %2474 = vmatprep.subr.bf16.mxu0 0
    %2475 = vmatpush1.bf16.msra.mxu0 %v2456
    %2476 = vmatprep.subr.bf16.mxu0 0
    %2477 = vmatpush1.bf16.msra.mxu0 %v2457
    %2478 = vmatprep.subr.bf16.mxu0 0
    %2479 = vmatpush1.bf16.msra.mxu0 %v2458
    %2480 = vmatprep.subr.bf16.mxu0 0
    %2481 = vmatpush1.bf16.msra.mxu0 %v2459
    %2482 = vmatprep.subr.bf16.mxu0 0
    %2483 = vmatpush1.bf16.msra.mxu0 %v2460
    %2484 = vmatprep.subr.bf16.mxu0 0
    %2485 = vmatpush1.bf16.msra.mxu0 %v2461
    %2486 = vmatprep.subr.bf16.mxu0 0
    %2487 = vmatpush1.bf16.msra.mxu0 0
    %2488 = vmatprep.subr.bf16.mxu0 0
    %2489 = vmatpush1.bf16.msra.mxu0 0
    %2490 = vmatprep.subr.bf16.mxu0 0
    %2491 = vmatpush1.bf16.msra.mxu0 0
    %2492 = vmatprep.subr.bf16.mxu0 0
    %2493 = vmatpush1.bf16.msra.mxu0 0
    %2494 = vmatprep.subr.bf16.mxu0 0
    %2495 = vmatpush1.bf16.msra.mxu0 0
    %2496 = vmatprep.subr.bf16.mxu0 0
    %2497 = vmatpush1.bf16.msra.mxu0 0
    %2498 = vmatprep.subr.bf16.mxu0 0
    %2499 = vmatpush1.bf16.msra.mxu0 0
    %2500 = vmatprep.subr.bf16.mxu0 0
    %2501 = vmatpush1.bf16.msra.mxu0 0
    %2502 = vmatprep.mubr.bf16.mxu0 0
    %2503 = vmatmul.mubr.bf16.gmra.mrb[0].mxu0 %v2403
    %v2504 = vpop.f32.mrb[0].mxu0
    %v2505 = vadd.f32 0.0, %v2504
    %v2506 = vpop.f32.mrb[0].mxu0
    %v2507 = vpop.f32.mrb[0].mxu0
    %v2508 = vadd.f32 0.0, %v2507
    %v2509 = vpop.f32.mrb[0].mxu0
    %2510 = vmatprep.mubr.bf16.mxu0 0
    %2511 = vmatmul.mubr.bf16.gmra.mrb[0].mxu0 %v2404
    %v2512 = vpop.f32.mrb[0].mxu0
    %v2513 = vadd.f32 0.0, %v2512
    %v2514 = vpop.f32.mrb[0].mxu0
    %v2515 = vpop.f32.mrb[0].mxu0
    %v2516 = vadd.f32 0.0, %v2515
    %v2517 = vpop.f32.mrb[0].mxu0
    %2518 = vdwg.mxu0
    %v2535 = vunpack.c.l.b16 %v2317
    %v2536 = vunpack.c.l.b16 %v2318
    %v2537 = vunpack.c.l.b16 %v2319
    %v2538 = vunpack.c.l.b16 %v2320
    %v2539 = vunpack.c.l.b16 %v2321
    %v2540 = vunpack.c.l.b16 %v2322
    %v2541 = vunpack.c.l.b16 %v2323
    %v2542 = vunpack.c.l.b16 %v2324
    %v2543 = vunpack.c.l.b16 %v2325
    %v2544 = vunpack.c.l.b16 %v2326
    %v2545 = vunpack.c.l.b16 %v2327
    %v2546 = vunpack.c.l.b16 %v2328
    %v2547 = vunpack.c.l.b16 %v2329
    %v2548 = vunpack.c.l.b16 %v2330
    %v2549 = vunpack.c.l.b16 %v2331
    %v2550 = vunpack.c.l.b16 %v2332
    %v2551 = vpack.c.b16 %v2536, %v2535
    %v2552 = vpack.c.b16 %v2538, %v2537
    %v2553 = vpack.c.b16 %v2540, %v2539
    %v2554 = vpack.c.b16 %v2542, %v2541
    %v2555 = vpack.c.b16 %v2544, %v2543
    %v2556 = vpack.c.b16 %v2546, %v2545
    %v2557 = vpack.c.b16 %v2548, %v2547
    %v2558 = vpack.c.b16 %v2550, %v2549
    %2567 = vmatprep.subr.bf16.mxu0 0
    %2568 = vmatpush1.bf16.msra.mxu0 %v2551
    %2569 = vmatprep.subr.bf16.mxu0 0
    %2570 = vmatpush1.bf16.msra.mxu0 %v2552
    %2571 = vmatprep.subr.bf16.mxu0 0
    %2572 = vmatpush1.bf16.msra.mxu0 %v2553
    %2573 = vmatprep.subr.bf16.mxu0 0
    %2574 = vmatpush1.bf16.msra.mxu0 %v2554
    %2575 = vmatprep.subr.bf16.mxu0 0
    %2576 = vmatpush1.bf16.msra.mxu0 %v2555
    %2577 = vmatprep.subr.bf16.mxu0 0
    %2578 = vmatpush1.bf16.msra.mxu0 %v2556
    %2579 = vmatprep.subr.bf16.mxu0 0
    %2580 = vmatpush1.bf16.msra.mxu0 %v2557
    %2581 = vmatprep.subr.bf16.mxu0 0
    %2582 = vmatpush1.bf16.msra.mxu0 %v2558
    %2583 = vmatprep.subr.bf16.mxu0 0
    %2584 = vmatpush1.bf16.msra.mxu0 0
    %2585 = vmatprep.subr.bf16.mxu0 0
    %2586 = vmatpush1.bf16.msra.mxu0 0
    %2587 = vmatprep.subr.bf16.mxu0 0
    %2588 = vmatpush1.bf16.msra.mxu0 0
    %2589 = vmatprep.subr.bf16.mxu0 0
    %2590 = vmatpush1.bf16.msra.mxu0 0
    %2591 = vmatprep.subr.bf16.mxu0 0
    %2592 = vmatpush1.bf16.msra.mxu0 0
    %2593 = vmatprep.subr.bf16.mxu0 0
    %2594 = vmatpush1.bf16.msra.mxu0 0
    %2595 = vmatprep.subr.bf16.mxu0 0
    %2596 = vmatpush1.bf16.msra.mxu0 0
    %2597 = vmatprep.subr.bf16.mxu0 0
    %2598 = vmatpush1.bf16.msra.mxu0 0
    %2599 = vmatprep.mubr.bf16.mxu0 0
    %2600 = vmatmul.mubr.bf16.gmra.mrb[0].mxu0 %v2315
    %v2601 = vpop.f32.mrb[0].mxu0
    %v2602 = vadd.f32 %v2505, %v2601
    %v2603 = vpop.f32.mrb[0].mxu0
    %v2604 = vpop.f32.mrb[0].mxu0
    %v2605 = vadd.f32 %v2508, %v2604
    %v2606 = vpop.f32.mrb[0].mxu0
    %2607 = vmatprep.mubr.bf16.mxu0 0
    %2608 = vmatmul.mubr.bf16.gmra.mrb[0].mxu0 %v2316
    %v2609 = vpop.f32.mrb[0].mxu0
    %v2610 = vadd.f32 %v2513, %v2609
    %v2611 = vpop.f32.mrb[0].mxu0
    %v2612 = vpop.f32.mrb[0].mxu0
    %v2613 = vadd.f32 %v2516, %v2612
    %v2614 = vpop.f32.mrb[0].mxu0
    %2615 = vdwg.mxu0
    %s2616 = scalar_lea.vmem [#allocation10], 32
    %v2617 = vld [vmem:[%s2616] sm:$0xf]
    %v2618 = vld [vmem:[%s2616 + $0x4] sm:$0xf]
    %v2619 = vld [vmem:[%s2616 + $0x8] sm:$0xf]
    %v2620 = vld [vmem:[%s2616 + $0xc] sm:$0xf]
    %v2625 = vunpack.c.l.b16 %v2617
    %v2626 = vunpack.c.l.b16 %v2618
    %v2627 = vunpack.c.l.b16 %v2619
    %v2628 = vunpack.c.l.b16 %v2620
    %v2629 = vpack.c.b16 %v2626, %v2625
    %v2630 = vpack.c.b16 %v2628, %v2627
    %v2632 = vsel %vm2259, %v2629, 0
    %v2635 = vsel %vm2259, %v2630, 0
    %2637 = vmatprep.subr.bf16.mxu0 0
    %2638 = vmatpush1.bf16.msra.mxu0 %v2243
    %2639 = vmatprep.subr.bf16.mxu0 0
    %2640 = vmatpush1.bf16.msra.mxu0 %v2244
    %2641 = vmatprep.subr.bf16.mxu0 0
    %2642 = vmatpush1.bf16.msra.mxu0 0
    %2643 = vmatprep.subr.bf16.mxu0 0
    %2644 = vmatpush1.bf16.msra.mxu0 0
    %2645 = vmatprep.subr.bf16.mxu0 0
    %2646 = vmatpush1.bf16.msra.mxu0 0
    %2647 = vmatprep.subr.bf16.mxu0 0
    %2648 = vmatpush1.bf16.msra.mxu0 0
    %2649 = vmatprep.subr.bf16.mxu0 0
    %2650 = vmatpush1.bf16.msra.mxu0 0
    %2651 = vmatprep.subr.bf16.mxu0 0
    %2652 = vmatpush1.bf16.msra.mxu0 0
    %2653 = vmatprep.subr.bf16.mxu0 0
    %2654 = vmatpush1.bf16.msra.mxu0 0
    %2655 = vmatprep.subr.bf16.mxu0 0
    %2656 = vmatpush1.bf16.msra.mxu0 0
    %2657 = vmatprep.subr.bf16.mxu0 0
    %2658 = vmatpush1.bf16.msra.mxu0 0
    %2659 = vmatprep.subr.bf16.mxu0 0
    %2660 = vmatpush1.bf16.msra.mxu0 0
    %2661 = vmatprep.subr.bf16.mxu0 0
    %2662 = vmatpush1.bf16.msra.mxu0 0
    %2663 = vmatprep.subr.bf16.mxu0 0
    %2664 = vmatpush1.bf16.msra.mxu0 0
    %2665 = vmatprep.subr.bf16.mxu0 0
    %2666 = vmatpush1.bf16.msra.mxu0 0
    %2667 = vmatprep.subr.bf16.mxu0 0
    %2668 = vmatpush1.bf16.msra.mxu0 0
    %2669 = vmatprep.mubr.bf16.mxu0 0
    %2670 = vmatmul.mubr.bf16.gmra.mrb[0].mxu0 %v2632
    %v2671 = vpop.f32.mrb[0].mxu0
    %v2672 = vadd.f32 0.0, %v2671
    %v2673 = vpop.f32.mrb[0].mxu0
    %v2674 = vpop.f32.mrb[0].mxu0
    %v2675 = vadd.f32 0.0, %v2674
    %v2676 = vpop.f32.mrb[0].mxu0
    %2677 = vmatprep.mubr.bf16.mxu0 0
    %2678 = vmatmul.mubr.bf16.gmra.mrb[0].mxu0 %v2635
    %v2679 = vpop.f32.mrb[0].mxu0
    %v2680 = vadd.f32 0.0, %v2679
    %v2681 = vpop.f32.mrb[0].mxu0
    %v2682 = vpop.f32.mrb[0].mxu0
    %v2683 = vadd.f32 0.0, %v2682
    %v2684 = vpop.f32.mrb[0].mxu0
    %2685 = vdwg.mxu0
    %v2686 = vpack.c.bf16 %v2675, %v2672
    %v2687 = vpack.c.bf16 %v2683, %v2680
    %s2688 = scalar_lea.vmem [#allocation11], 128
    %v2689 = vld [vmem:[%s2688] sm:$0xf]
    %v2690 = vld [vmem:[%s2688 + $0x4] sm:$0xf]
    %v2691 = vld [vmem:[%s2688 + $0x8] sm:$0xf]
    %v2692 = vld [vmem:[%s2688 + $0xc] sm:$0xf]
    %v2693 = vld [vmem:[%s2688 + $0x10] sm:$0xf]
    %v2694 = vld [vmem:[%s2688 + $0x14] sm:$0xf]
    %v2695 = vld [vmem:[%s2688 + $0x18] sm:$0xf]
    %v2696 = vld [vmem:[%s2688 + $0x1c] sm:$0xf]
    %v2697 = vld [vmem:[%s2688 + $0x20] sm:$0xf]
    %v2698 = vld [vmem:[%s2688 + $0x24] sm:$0xf]
    %v2699 = vld [vmem:[%s2688 + $0x28] sm:$0xf]
    %v2700 = vld [vmem:[%s2688 + $0x2c] sm:$0xf]
    %v2701 = vld [vmem:[%s2688 + $0x30] sm:$0xf]
    %v2702 = vld [vmem:[%s2688 + $0x34] sm:$0xf]
    %v2703 = vld [vmem:[%s2688 + $0x38] sm:$0xf]
    %v2704 = vld [vmem:[%s2688 + $0x3c] sm:$0xf]
    %v2721 = vunpack.c.l.b16 %v2689
    %v2722 = vunpack.c.l.b16 %v2690
    %v2723 = vunpack.c.l.b16 %v2691
    %v2724 = vunpack.c.l.b16 %v2692
    %v2725 = vunpack.c.l.b16 %v2693
    %v2726 = vunpack.c.l.b16 %v2694
    %v2727 = vunpack.c.l.b16 %v2695
    %v2728 = vunpack.c.l.b16 %v2696
    %v2729 = vunpack.c.l.b16 %v2697
    %v2730 = vunpack.c.l.b16 %v2698
    %v2731 = vunpack.c.l.b16 %v2699
    %v2732 = vunpack.c.l.b16 %v2700
    %v2733 = vunpack.c.l.b16 %v2701
    %v2734 = vunpack.c.l.b16 %v2702
    %v2735 = vunpack.c.l.b16 %v2703
    %v2736 = vunpack.c.l.b16 %v2704
    %v2737 = vpack.c.b16 %v2722, %v2721
    %v2738 = vpack.c.b16 %v2724, %v2723
    %v2739 = vpack.c.b16 %v2726, %v2725
    %v2740 = vpack.c.b16 %v2728, %v2727
    %v2741 = vpack.c.b16 %v2730, %v2729
    %v2742 = vpack.c.b16 %v2732, %v2731
    %v2743 = vpack.c.b16 %v2734, %v2733
    %v2744 = vpack.c.b16 %v2736, %v2735
    %2753 = vmatprep.subr.bf16.mxu0 0
    %2754 = vmatpush1.bf16.msra.mxu0 %v2737
    %2755 = vmatprep.subr.bf16.mxu0 0
    %2756 = vmatpush1.bf16.msra.mxu0 %v2738
    %2757 = vmatprep.subr.bf16.mxu0 0
    %2758 = vmatpush1.bf16.msra.mxu0 %v2739
    %2759 = vmatprep.subr.bf16.mxu0 0
    %2760 = vmatpush1.bf16.msra.mxu0 %v2740
    %2761 = vmatprep.subr.bf16.mxu0 0
    %2762 = vmatpush1.bf16.msra.mxu0 %v2741
    %2763 = vmatprep.subr.bf16.mxu0 0
    %2764 = vmatpush1.bf16.msra.mxu0 %v2742
    %2765 = vmatprep.subr.bf16.mxu0 0
    %2766 = vmatpush1.bf16.msra.mxu0 %v2743
    %2767 = vmatprep.subr.bf16.mxu0 0
    %2768 = vmatpush1.bf16.msra.mxu0 %v2744
    %2769 = vmatprep.subr.bf16.mxu0 0
    %2770 = vmatpush1.bf16.msra.mxu0 0
    %2771 = vmatprep.subr.bf16.mxu0 0
    %2772 = vmatpush1.bf16.msra.mxu0 0
    %2773 = vmatprep.subr.bf16.mxu0 0
    %2774 = vmatpush1.bf16.msra.mxu0 0
    %2775 = vmatprep.subr.bf16.mxu0 0
    %2776 = vmatpush1.bf16.msra.mxu0 0
    %2777 = vmatprep.subr.bf16.mxu0 0
    %2778 = vmatpush1.bf16.msra.mxu0 0
    %2779 = vmatprep.subr.bf16.mxu0 0
    %2780 = vmatpush1.bf16.msra.mxu0 0
    %2781 = vmatprep.subr.bf16.mxu0 0
    %2782 = vmatpush1.bf16.msra.mxu0 0
    %2783 = vmatprep.subr.bf16.mxu0 0
    %2784 = vmatpush1.bf16.msra.mxu0 0
    %2785 = vmatprep.mubr.bf16.mxu0 0
    %2786 = vmatmul.mubr.bf16.gmra.mrb[0].mxu0 %v2686
    %v2787 = vpop.f32.mrb[0].mxu0
    %v2788 = vadd.f32 0.0, %v2787
    %v2789 = vpop.f32.mrb[0].mxu0
    %v2790 = vpop.f32.mrb[0].mxu0
    %v2791 = vadd.f32 0.0, %v2790
    %v2792 = vpop.f32.mrb[0].mxu0
    %2793 = vmatprep.mubr.bf16.mxu0 0
    %2794 = vmatmul.mubr.bf16.gmra.mrb[0].mxu0 %v2687
    %v2795 = vpop.f32.mrb[0].mxu0
    %v2796 = vadd.f32 0.0, %v2795
    %v2797 = vpop.f32.mrb[0].mxu0
    %v2798 = vpop.f32.mrb[0].mxu0
    %v2799 = vadd.f32 0.0, %v2798
    %v2800 = vpop.f32.mrb[0].mxu0
    %2801 = vdwg.mxu0
    %v2802 = vadd.f32 %v2602, %v2788
    %v2803 = vadd.f32 %v2605, %v2791
    %v2804 = vadd.f32 %v2610, %v2796
    %v2805 = vadd.f32 %v2613, %v2799
    %s2806 = scalar_lea.vmem [#allocation10], 48
    %v2807 = vld [vmem:[%s2806] sm:$0xf]
    %v2808 = vld [vmem:[%s2806 + $0x4] sm:$0xf]
    %v2809 = vld [vmem:[%s2806 + $0x8] sm:$0xf]
    %v2810 = vld [vmem:[%s2806 + $0xc] sm:$0xf]
    %v2815 = vunpack.c.l.b16 %v2807
    %v2816 = vunpack.c.l.b16 %v2808
    %v2817 = vunpack.c.l.b16 %v2809
    %v2818 = vunpack.c.l.b16 %v2810
    %v2819 = vpack.c.b16 %v2816, %v2815
    %v2820 = vpack.c.b16 %v2818, %v2817
    %v2822 = vsel %vm2259, %v2819, 0
    %v2825 = vsel %vm2259, %v2820, 0
    %2827 = vmatprep.subr.bf16.mxu0 0
    %2828 = vmatpush1.bf16.msra.mxu0 %v2243
    %2829 = vmatprep.subr.bf16.mxu0 0
    %2830 = vmatpush1.bf16.msra.mxu0 %v2244
    %2831 = vmatprep.subr.bf16.mxu0 0
    %2832 = vmatpush1.bf16.msra.mxu0 0
    %2833 = vmatprep.subr.bf16.mxu0 0
    %2834 = vmatpush1.bf16.msra.mxu0 0
    %2835 = vmatprep.subr.bf16.mxu0 0
    %2836 = vmatpush1.bf16.msra.mxu0 0
    %2837 = vmatprep.subr.bf16.mxu0 0
    %2838 = vmatpush1.bf16.msra.mxu0 0
    %2839 = vmatprep.subr.bf16.mxu0 0
    %2840 = vmatpush1.bf16.msra.mxu0 0
    %2841 = vmatprep.subr.bf16.mxu0 0
    %2842 = vmatpush1.bf16.msra.mxu0 0
    %2843 = vmatprep.subr.bf16.mxu0 0
    %2844 = vmatpush1.bf16.msra.mxu0 0
    %2845 = vmatprep.subr.bf16.mxu0 0
    %2846 = vmatpush1.bf16.msra.mxu0 0
    %2847 = vmatprep.subr.bf16.mxu0 0
    %2848 = vmatpush1.bf16.msra.mxu0 0
    %2849 = vmatprep.subr.bf16.mxu0 0
    %2850 = vmatpush1.bf16.msra.mxu0 0
    %2851 = vmatprep.subr.bf16.mxu0 0
    %2852 = vmatpush1.bf16.msra.mxu0 0
    %2853 = vmatprep.subr.bf16.mxu0 0
    %2854 = vmatpush1.bf16.msra.mxu0 0
    %2855 = vmatprep.subr.bf16.mxu0 0
    %2856 = vmatpush1.bf16.msra.mxu0 0
    %2857 = vmatprep.subr.bf16.mxu0 0
    %2858 = vmatpush1.bf16.msra.mxu0 0
    %2859 = vmatprep.mubr.bf16.mxu0 0
    %2860 = vmatmul.mubr.bf16.gmra.mrb[0].mxu0 %v2822
    %v2861 = vpop.f32.mrb[0].mxu0
    %v2862 = vadd.f32 0.0, %v2861
    %v2863 = vpop.f32.mrb[0].mxu0
    %v2864 = vpop.f32.mrb[0].mxu0
    %v2865 = vadd.f32 0.0, %v2864
    %v2866 = vpop.f32.mrb[0].mxu0
    %2867 = vmatprep.mubr.bf16.mxu0 0
    %2868 = vmatmul.mubr.bf16.gmra.mrb[0].mxu0 %v2825
    %v2869 = vpop.f32.mrb[0].mxu0
    %v2870 = vadd.f32 0.0, %v2869
    %v2871 = vpop.f32.mrb[0].mxu0
    %v2872 = vpop.f32.mrb[0].mxu0
    %v2873 = vadd.f32 0.0, %v2872
    %v2874 = vpop.f32.mrb[0].mxu0
    %2875 = vdwg.mxu0
    %v2876 = vpack.c.bf16 %v2865, %v2862
    %v2877 = vpack.c.bf16 %v2873, %v2870
    %s2878 = scalar_lea.vmem [#allocation11], 192
    %v2879 = vld [vmem:[%s2878] sm:$0xf]
    %v2880 = vld [vmem:[%s2878 + $0x4] sm:$0xf]
    %v2881 = vld [vmem:[%s2878 + $0x8] sm:$0xf]
    %v2882 = vld [vmem:[%s2878 + $0xc] sm:$0xf]
    %v2883 = vld [vmem:[%s2878 + $0x10] sm:$0xf]
    %v2884 = vld [vmem:[%s2878 + $0x14] sm:$0xf]
    %v2885 = vld [vmem:[%s2878 + $0x18] sm:$0xf]
    %v2886 = vld [vmem:[%s2878 + $0x1c] sm:$0xf]
    %v2887 = vld [vmem:[%s2878 + $0x20] sm:$0xf]
    %v2888 = vld [vmem:[%s2878 + $0x24] sm:$0xf]
    %v2889 = vld [vmem:[%s2878 + $0x28] sm:$0xf]
    %v2890 = vld [vmem:[%s2878 + $0x2c] sm:$0xf]
    %v2891 = vld [vmem:[%s2878 + $0x30] sm:$0xf]
    %v2892 = vld [vmem:[%s2878 + $0x34] sm:$0xf]
    %v2893 = vld [vmem:[%s2878 + $0x38] sm:$0xf]
    %v2894 = vld [vmem:[%s2878 + $0x3c] sm:$0xf]
    %v2911 = vunpack.c.l.b16 %v2879
    %v2912 = vunpack.c.l.b16 %v2880
    %v2913 = vunpack.c.l.b16 %v2881
    %v2914 = vunpack.c.l.b16 %v2882
    %v2915 = vunpack.c.l.b16 %v2883
    %v2916 = vunpack.c.l.b16 %v2884
    %v2917 = vunpack.c.l.b16 %v2885
    %v2918 = vunpack.c.l.b16 %v2886
    %v2919 = vunpack.c.l.b16 %v2887
    %v2920 = vunpack.c.l.b16 %v2888
    %v2921 = vunpack.c.l.b16 %v2889
    %v2922 = vunpack.c.l.b16 %v2890
    %v2923 = vunpack.c.l.b16 %v2891
    %v2924 = vunpack.c.l.b16 %v2892
    %v2925 = vunpack.c.l.b16 %v2893
    %v2926 = vunpack.c.l.b16 %v2894
    %v2927 = vpack.c.b16 %v2912, %v2911
    %v2928 = vpack.c.b16 %v2914, %v2913
    %v2929 = vpack.c.b16 %v2916, %v2915
    %v2930 = vpack.c.b16 %v2918, %v2917
    %v2931 = vpack.c.b16 %v2920, %v2919
    %v2932 = vpack.c.b16 %v2922, %v2921
    %v2933 = vpack.c.b16 %v2924, %v2923
    %v2934 = vpack.c.b16 %v2926, %v2925
    %2943 = vmatprep.subr.bf16.mxu0 0
    %2944 = vmatpush1.bf16.msra.mxu0 %v2927
    %2945 = vmatprep.subr.bf16.mxu0 0
    %2946 = vmatpush1.bf16.msra.mxu0 %v2928
    %2947 = vmatprep.subr.bf16.mxu0 0
    %2948 = vmatpush1.bf16.msra.mxu0 %v2929
    %2949 = vmatprep.subr.bf16.mxu0 0
    %2950 = vmatpush1.bf16.msra.mxu0 %v2930
    %2951 = vmatprep.subr.bf16.mxu0 0
    %2952 = vmatpush1.bf16.msra.mxu0 %v2931
    %2953 = vmatprep.subr.bf16.mxu0 0
    %2954 = vmatpush1.bf16.msra.mxu0 %v2932
    %2955 = vmatprep.subr.bf16.mxu0 0
    %2956 = vmatpush1.bf16.msra.mxu0 %v2933
    %2957 = vmatprep.subr.bf16.mxu0 0
    %2958 = vmatpush1.bf16.msra.mxu0 %v2934
    %2959 = vmatprep.subr.bf16.mxu0 0
    %2960 = vmatpush1.bf16.msra.mxu0 0
    %2961 = vmatprep.subr.bf16.mxu0 0
    %2962 = vmatpush1.bf16.msra.mxu0 0
    %2963 = vmatprep.subr.bf16.mxu0 0
    %2964 = vmatpush1.bf16.msra.mxu0 0
    %2965 = vmatprep.subr.bf16.mxu0 0
    %2966 = vmatpush1.bf16.msra.mxu0 0
    %2967 = vmatprep.subr.bf16.mxu0 0
    %2968 = vmatpush1.bf16.msra.mxu0 0
    %2969 = vmatprep.subr.bf16.mxu0 0
    %2970 = vmatpush1.bf16.msra.mxu0 0
    %2971 = vmatprep.subr.bf16.mxu0 0
    %2972 = vmatpush1.bf16.msra.mxu0 0
    %2973 = vmatprep.subr.bf16.mxu0 0
    %2974 = vmatpush1.bf16.msra.mxu0 0
    %2975 = vmatprep.mubr.bf16.mxu0 0
    %2976 = vmatmul.mubr.bf16.gmra.mrb[0].mxu0 %v2876
    %v2977 = vpop.f32.mrb[0].mxu0
    %v2978 = vadd.f32 0.0, %v2977
    %v2979 = vpop.f32.mrb[0].mxu0
    %v2980 = vpop.f32.mrb[0].mxu0
    %v2981 = vadd.f32 0.0, %v2980
    %v2982 = vpop.f32.mrb[0].mxu0
    %2983 = vmatprep.mubr.bf16.mxu0 0
    %2984 = vmatmul.mubr.bf16.gmra.mrb[0].mxu0 %v2877
    %v2985 = vpop.f32.mrb[0].mxu0
    %v2986 = vadd.f32 0.0, %v2985
    %v2987 = vpop.f32.mrb[0].mxu0
    %v2988 = vpop.f32.mrb[0].mxu0
    %v2989 = vadd.f32 0.0, %v2988
    %v2990 = vpop.f32.mrb[0].mxu0
    %2991 = vdwg.mxu0
    %v2992 = vadd.f32 %v2802, %v2978
    %v2993 = vadd.f32 %v2803, %v2981
    %v2994 = vadd.f32 %v2804, %v2986
    %v2995 = vadd.f32 %v2805, %v2989
    %s2996 = scalar_lea.vmem [#allocation10], 64
    %v2997 = vld [vmem:[%s2996] sm:$0xf]
    %v2998 = vld [vmem:[%s2996 + $0x4] sm:$0xf]
    %v2999 = vld [vmem:[%s2996 + $0x8] sm:$0xf]
    %v3000 = vld [vmem:[%s2996 + $0xc] sm:$0xf]
    %v3005 = vunpack.c.l.b16 %v2997
    %v3006 = vunpack.c.l.b16 %v2998
    %v3007 = vunpack.c.l.b16 %v2999
    %v3008 = vunpack.c.l.b16 %v3000
    %v3009 = vpack.c.b16 %v3006, %v3005
    %v3010 = vpack.c.b16 %v3008, %v3007
    %v3012 = vsel %vm2259, %v3009, 0
    %v3015 = vsel %vm2259, %v3010, 0
    %3017 = vmatprep.subr.bf16.mxu0 0
    %3018 = vmatpush1.bf16.msra.mxu0 %v2243
    %3019 = vmatprep.subr.bf16.mxu0 0
    %3020 = vmatpush1.bf16.msra.mxu0 %v2244
    %3021 = vmatprep.subr.bf16.mxu0 0
    %3022 = vmatpush1.bf16.msra.mxu0 0
    %3023 = vmatprep.subr.bf16.mxu0 0
    %3024 = vmatpush1.bf16.msra.mxu0 0
    %3025 = vmatprep.subr.bf16.mxu0 0
    %3026 = vmatpush1.bf16.msra.mxu0 0
    %3027 = vmatprep.subr.bf16.mxu0 0
    %3028 = vmatpush1.bf16.msra.mxu0 0
    %3029 = vmatprep.subr.bf16.mxu0 0
    %3030 = vmatpush1.bf16.msra.mxu0 0
    %3031 = vmatprep.subr.bf16.mxu0 0
    %3032 = vmatpush1.bf16.msra.mxu0 0
    %3033 = vmatprep.subr.bf16.mxu0 0
    %3034 = vmatpush1.bf16.msra.mxu0 0
    %3035 = vmatprep.subr.bf16.mxu0 0
    %3036 = vmatpush1.bf16.msra.mxu0 0
    %3037 = vmatprep.subr.bf16.mxu0 0
    %3038 = vmatpush1.bf16.msra.mxu0 0
    %3039 = vmatprep.subr.bf16.mxu0 0
    %3040 = vmatpush1.bf16.msra.mxu0 0
    %3041 = vmatprep.subr.bf16.mxu0 0
    %3042 = vmatpush1.bf16.msra.mxu0 0
    %3043 = vmatprep.subr.bf16.mxu0 0
    %3044 = vmatpush1.bf16.msra.mxu0 0
    %3045 = vmatprep.subr.bf16.mxu0 0
    %3046 = vmatpush1.bf16.msra.mxu0 0
    %3047 = vmatprep.subr.bf16.mxu0 0
    %3048 = vmatpush1.bf16.msra.mxu0 0
    %3049 = vmatprep.mubr.bf16.mxu0 0
    %3050 = vmatmul.mubr.bf16.gmra.mrb[0].mxu0 %v3012
    %v3051 = vpop.f32.mrb[0].mxu0
    %v3052 = vadd.f32 0.0, %v3051
    %v3053 = vpop.f32.mrb[0].mxu0
    %v3054 = vpop.f32.mrb[0].mxu0
    %v3055 = vadd.f32 0.0, %v3054
    %v3056 = vpop.f32.mrb[0].mxu0
    %3057 = vmatprep.mubr.bf16.mxu0 0
    %3058 = vmatmul.mubr.bf16.gmra.mrb[0].mxu0 %v3015
    %v3059 = vpop.f32.mrb[0].mxu0
    %v3060 = vadd.f32 0.0, %v3059
    %v3061 = vpop.f32.mrb[0].mxu0
    %v3062 = vpop.f32.mrb[0].mxu0
    %v3063 = vadd.f32 0.0, %v3062
    %v3064 = vpop.f32.mrb[0].mxu0
    %3065 = vdwg.mxu0
    %v3066 = vpack.c.bf16 %v3055, %v3052
    %v3067 = vpack.c.bf16 %v3063, %v3060
    %s3068 = scalar_lea.vmem [#allocation11], 256
    %v3069 = vld [vmem:[%s3068] sm:$0xf]
    %v3070 = vld [vmem:[%s3068 + $0x4] sm:$0xf]
    %v3071 = vld [vmem:[%s3068 + $0x8] sm:$0xf]
    %v3072 = vld [vmem:[%s3068 + $0xc] sm:$0xf]
    %v3073 = vld [vmem:[%s3068 + $0x10] sm:$0xf]
    %v3074 = vld [vmem:[%s3068 + $0x14] sm:$0xf]
    %v3075 = vld [vmem:[%s3068 + $0x18] sm:$0xf]
    %v3076 = vld [vmem:[%s3068 + $0x1c] sm:$0xf]
    %v3077 = vld [vmem:[%s3068 + $0x20] sm:$0xf]
    %v3078 = vld [vmem:[%s3068 + $0x24] sm:$0xf]
    %v3079 = vld [vmem:[%s3068 + $0x28] sm:$0xf]
    %v3080 = vld [vmem:[%s3068 + $0x2c] sm:$0xf]
    %v3081 = vld [vmem:[%s3068 + $0x30] sm:$0xf]
    %v3082 = vld [vmem:[%s3068 + $0x34] sm:$0xf]
    %v3083 = vld [vmem:[%s3068 + $0x38] sm:$0xf]
    %v3084 = vld [vmem:[%s3068 + $0x3c] sm:$0xf]
    %v3101 = vunpack.c.l.b16 %v3069
    %v3102 = vunpack.c.l.b16 %v3070
    %v3103 = vunpack.c.l.b16 %v3071
    %v3104 = vunpack.c.l.b16 %v3072
    %v3105 = vunpack.c.l.b16 %v3073
    %v3106 = vunpack.c.l.b16 %v3074
    %v3107 = vunpack.c.l.b16 %v3075
    %v3108 = vunpack.c.l.b16 %v3076
    %v3109 = vunpack.c.l.b16 %v3077
    %v3110 = vunpack.c.l.b16 %v3078
    %v3111 = vunpack.c.l.b16 %v3079
    %v3112 = vunpack.c.l.b16 %v3080
    %v3113 = vunpack.c.l.b16 %v3081
    %v3114 = vunpack.c.l.b16 %v3082
    %v3115 = vunpack.c.l.b16 %v3083
    %v3116 = vunpack.c.l.b16 %v3084
    %v3117 = vpack.c.b16 %v3102, %v3101
    %v3118 = vpack.c.b16 %v3104, %v3103
    %v3119 = vpack.c.b16 %v3106, %v3105
    %v3120 = vpack.c.b16 %v3108, %v3107
    %v3121 = vpack.c.b16 %v3110, %v3109
    %v3122 = vpack.c.b16 %v3112, %v3111
    %v3123 = vpack.c.b16 %v3114, %v3113
    %v3124 = vpack.c.b16 %v3116, %v3115
    %3133 = vmatprep.subr.bf16.mxu0 0
    %3134 = vmatpush1.bf16.msra.mxu0 %v3117
    %3135 = vmatprep.subr.bf16.mxu0 0
    %3136 = vmatpush1.bf16.msra.mxu0 %v3118
    %3137 = vmatprep.subr.bf16.mxu0 0
    %3138 = vmatpush1.bf16.msra.mxu0 %v3119
    %3139 = vmatprep.subr.bf16.mxu0 0
    %3140 = vmatpush1.bf16.msra.mxu0 %v3120
    %3141 = vmatprep.subr.bf16.mxu0 0
    %3142 = vmatpush1.bf16.msra.mxu0 %v3121
    %3143 = vmatprep.subr.bf16.mxu0 0
    %3144 = vmatpush1.bf16.msra.mxu0 %v3122
    %3145 = vmatprep.subr.bf16.mxu0 0
    %3146 = vmatpush1.bf16.msra.mxu0 %v3123
    %3147 = vmatprep.subr.bf16.mxu0 0
    %3148 = vmatpush1.bf16.msra.mxu0 %v3124
    %3149 = vmatprep.subr.bf16.mxu0 0
    %3150 = vmatpush1.bf16.msra.mxu0 0
    %3151 = vmatprep.subr.bf16.mxu0 0
    %3152 = vmatpush1.bf16.msra.mxu0 0
    %3153 = vmatprep.subr.bf16.mxu0 0
    %3154 = vmatpush1.bf16.msra.mxu0 0
    %3155 = vmatprep.subr.bf16.mxu0 0
    %3156 = vmatpush1.bf16.msra.mxu0 0
    %3157 = vmatprep.subr.bf16.mxu0 0
    %3158 = vmatpush1.bf16.msra.mxu0 0
    %3159 = vmatprep.subr.bf16.mxu0 0
    %3160 = vmatpush1.bf16.msra.mxu0 0
    %3161 = vmatprep.subr.bf16.mxu0 0
    %3162 = vmatpush1.bf16.msra.mxu0 0
    %3163 = vmatprep.subr.bf16.mxu0 0
    %3164 = vmatpush1.bf16.msra.mxu0 0
    %3165 = vmatprep.mubr.bf16.mxu0 0
    %3166 = vmatmul.mubr.bf16.gmra.mrb[0].mxu0 %v3066
    %v3167 = vpop.f32.mrb[0].mxu0
    %v3168 = vadd.f32 0.0, %v3167
    %v3169 = vpop.f32.mrb[0].mxu0
    %v3170 = vpop.f32.mrb[0].mxu0
    %v3171 = vadd.f32 0.0, %v3170
    %v3172 = vpop.f32.mrb[0].mxu0
    %3173 = vmatprep.mubr.bf16.mxu0 0
    %3174 = vmatmul.mubr.bf16.gmra.mrb[0].mxu0 %v3067
    %v3175 = vpop.f32.mrb[0].mxu0
    %v3176 = vadd.f32 0.0, %v3175
    %v3177 = vpop.f32.mrb[0].mxu0
    %v3178 = vpop.f32.mrb[0].mxu0
    %v3179 = vadd.f32 0.0, %v3178
    %v3180 = vpop.f32.mrb[0].mxu0
    %3181 = vdwg.mxu0
    %v3182 = vadd.f32 %v2992, %v3168
    %v3183 = vadd.f32 %v2993, %v3171
    %v3184 = vadd.f32 %v2994, %v3176
    %v3185 = vadd.f32 %v2995, %v3179
    %s3186 = scalar_lea.vmem [#allocation10], 80
    %v3187 = vld [vmem:[%s3186] sm:$0xf]
    %v3188 = vld [vmem:[%s3186 + $0x4] sm:$0xf]
    %v3189 = vld [vmem:[%s3186 + $0x8] sm:$0xf]
    %v3190 = vld [vmem:[%s3186 + $0xc] sm:$0xf]
    %v3195 = vunpack.c.l.b16 %v3187
    %v3196 = vunpack.c.l.b16 %v3188
    %v3197 = vunpack.c.l.b16 %v3189
    %v3198 = vunpack.c.l.b16 %v3190
    %v3199 = vpack.c.b16 %v3196, %v3195
    %v3200 = vpack.c.b16 %v3198, %v3197
    %v3202 = vsel %vm2259, %v3199, 0
    %v3205 = vsel %vm2259, %v3200, 0
    %3207 = vmatprep.subr.bf16.mxu0 0
    %3208 = vmatpush1.bf16.msra.mxu0 %v2243
    %3209 = vmatprep.subr.bf16.mxu0 0
    %3210 = vmatpush1.bf16.msra.mxu0 %v2244
    %3211 = vmatprep.subr.bf16.mxu0 0
    %3212 = vmatpush1.bf16.msra.mxu0 0
    %3213 = vmatprep.subr.bf16.mxu0 0
    %3214 = vmatpush1.bf16.msra.mxu0 0
    %3215 = vmatprep.subr.bf16.mxu0 0
    %3216 = vmatpush1.bf16.msra.mxu0 0
    %3217 = vmatprep.subr.bf16.mxu0 0
    %3218 = vmatpush1.bf16.msra.mxu0 0
    %3219 = vmatprep.subr.bf16.mxu0 0
    %3220 = vmatpush1.bf16.msra.mxu0 0
    %3221 = vmatprep.subr.bf16.mxu0 0
    %3222 = vmatpush1.bf16.msra.mxu0 0
    %3223 = vmatprep.subr.bf16.mxu0 0
    %3224 = vmatpush1.bf16.msra.mxu0 0
    %3225 = vmatprep.subr.bf16.mxu0 0
    %3226 = vmatpush1.bf16.msra.mxu0 0
    %3227 = vmatprep.subr.bf16.mxu0 0
    %3228 = vmatpush1.bf16.msra.mxu0 0
    %3229 = vmatprep.subr.bf16.mxu0 0
    %3230 = vmatpush1.bf16.msra.mxu0 0
    %3231 = vmatprep.subr.bf16.mxu0 0
    %3232 = vmatpush1.bf16.msra.mxu0 0
    %3233 = vmatprep.subr.bf16.mxu0 0
    %3234 = vmatpush1.bf16.msra.mxu0 0
    %3235 = vmatprep.subr.bf16.mxu0 0
    %3236 = vmatpush1.bf16.msra.mxu0 0
    %3237 = vmatprep.subr.bf16.mxu0 0
    %3238 = vmatpush1.bf16.msra.mxu0 0
    %3239 = vmatprep.mubr.bf16.mxu0 0
    %3240 = vmatmul.mubr.bf16.gmra.mrb[0].mxu0 %v3202
    %v3241 = vpop.f32.mrb[0].mxu0
    %v3242 = vadd.f32 0.0, %v3241
    %v3243 = vpop.f32.mrb[0].mxu0
    %v3244 = vpop.f32.mrb[0].mxu0
    %v3245 = vadd.f32 0.0, %v3244
    %v3246 = vpop.f32.mrb[0].mxu0
    %3247 = vmatprep.mubr.bf16.mxu0 0
    %3248 = vmatmul.mubr.bf16.gmra.mrb[0].mxu0 %v3205
    %v3249 = vpop.f32.mrb[0].mxu0
    %v3250 = vadd.f32 0.0, %v3249
    %v3251 = vpop.f32.mrb[0].mxu0
    %v3252 = vpop.f32.mrb[0].mxu0
    %v3253 = vadd.f32 0.0, %v3252
    %v3254 = vpop.f32.mrb[0].mxu0
    %3255 = vdwg.mxu0
    %v3256 = vpack.c.bf16 %v3245, %v3242
    %v3257 = vpack.c.bf16 %v3253, %v3250
    %s3258 = scalar_lea.vmem [#allocation11], 320
    %v3259 = vld [vmem:[%s3258] sm:$0xf]
    %v3260 = vld [vmem:[%s3258 + $0x4] sm:$0xf]
    %v3261 = vld [vmem:[%s3258 + $0x8] sm:$0xf]
    %v3262 = vld [vmem:[%s3258 + $0xc] sm:$0xf]
    %v3263 = vld [vmem:[%s3258 + $0x10] sm:$0xf]
    %v3264 = vld [vmem:[%s3258 + $0x14] sm:$0xf]
    %v3265 = vld [vmem:[%s3258 + $0x18] sm:$0xf]
    %v3266 = vld [vmem:[%s3258 + $0x1c] sm:$0xf]
    %v3267 = vld [vmem:[%s3258 + $0x20] sm:$0xf]
    %v3268 = vld [vmem:[%s3258 + $0x24] sm:$0xf]
    %v3269 = vld [vmem:[%s3258 + $0x28] sm:$0xf]
    %v3270 = vld [vmem:[%s3258 + $0x2c] sm:$0xf]
    %v3271 = vld [vmem:[%s3258 + $0x30] sm:$0xf]
    %v3272 = vld [vmem:[%s3258 + $0x34] sm:$0xf]
    %v3273 = vld [vmem:[%s3258 + $0x38] sm:$0xf]
    %v3274 = vld [vmem:[%s3258 + $0x3c] sm:$0xf]
    %v3291 = vunpack.c.l.b16 %v3259
    %v3292 = vunpack.c.l.b16 %v3260
    %v3293 = vunpack.c.l.b16 %v3261
    %v3294 = vunpack.c.l.b16 %v3262
    %v3295 = vunpack.c.l.b16 %v3263
    %v3296 = vunpack.c.l.b16 %v3264
    %v3297 = vunpack.c.l.b16 %v3265
    %v3298 = vunpack.c.l.b16 %v3266
    %v3299 = vunpack.c.l.b16 %v3267
    %v3300 = vunpack.c.l.b16 %v3268
    %v3301 = vunpack.c.l.b16 %v3269
    %v3302 = vunpack.c.l.b16 %v3270
    %v3303 = vunpack.c.l.b16 %v3271
    %v3304 = vunpack.c.l.b16 %v3272
    %v3305 = vunpack.c.l.b16 %v3273
    %v3306 = vunpack.c.l.b16 %v3274
    %v3307 = vpack.c.b16 %v3292, %v3291
    %v3308 = vpack.c.b16 %v3294, %v3293
    %v3309 = vpack.c.b16 %v3296, %v3295
    %v3310 = vpack.c.b16 %v3298, %v3297
    %v3311 = vpack.c.b16 %v3300, %v3299
    %v3312 = vpack.c.b16 %v3302, %v3301
    %v3313 = vpack.c.b16 %v3304, %v3303
    %v3314 = vpack.c.b16 %v3306, %v3305
    %3323 = vmatprep.subr.bf16.mxu0 0
    %3324 = vmatpush1.bf16.msra.mxu0 %v3307
    %3325 = vmatprep.subr.bf16.mxu0 0
    %3326 = vmatpush1.bf16.msra.mxu0 %v3308
    %3327 = vmatprep.subr.bf16.mxu0 0
    %3328 = vmatpush1.bf16.msra.mxu0 %v3309
    %3329 = vmatprep.subr.bf16.mxu0 0
    %3330 = vmatpush1.bf16.msra.mxu0 %v3310
    %3331 = vmatprep.subr.bf16.mxu0 0
    %3332 = vmatpush1.bf16.msra.mxu0 %v3311
    %3333 = vmatprep.subr.bf16.mxu0 0
    %3334 = vmatpush1.bf16.msra.mxu0 %v3312
    %3335 = vmatprep.subr.bf16.mxu0 0
    %3336 = vmatpush1.bf16.msra.mxu0 %v3313
    %3337 = vmatprep.subr.bf16.mxu0 0
    %3338 = vmatpush1.bf16.msra.mxu0 %v3314
    %3339 = vmatprep.subr.bf16.mxu0 0
    %3340 = vmatpush1.bf16.msra.mxu0 0
    %3341 = vmatprep.subr.bf16.mxu0 0
    %3342 = vmatpush1.bf16.msra.mxu0 0
    %3343 = vmatprep.subr.bf16.mxu0 0
    %3344 = vmatpush1.bf16.msra.mxu0 0
    %3345 = vmatprep.subr.bf16.mxu0 0
    %3346 = vmatpush1.bf16.msra.mxu0 0
    %3347 = vmatprep.subr.bf16.mxu0 0
    %3348 = vmatpush1.bf16.msra.mxu0 0
    %3349 = vmatprep.subr.bf16.mxu0 0
    %3350 = vmatpush1.bf16.msra.mxu0 0
    %3351 = vmatprep.subr.bf16.mxu0 0
    %3352 = vmatpush1.bf16.msra.mxu0 0
    %3353 = vmatprep.subr.bf16.mxu0 0
    %3354 = vmatpush1.bf16.msra.mxu0 0
    %3355 = vmatprep.mubr.bf16.mxu0 0
    %3356 = vmatmul.mubr.bf16.gmra.mrb[0].mxu0 %v3256
    %v3357 = vpop.f32.mrb[0].mxu0
    %v3358 = vadd.f32 0.0, %v3357
    %v3359 = vpop.f32.mrb[0].mxu0
    %v3360 = vpop.f32.mrb[0].mxu0
    %v3361 = vadd.f32 0.0, %v3360
    %v3362 = vpop.f32.mrb[0].mxu0
    %3363 = vmatprep.mubr.bf16.mxu0 0
    %3364 = vmatmul.mubr.bf16.gmra.mrb[0].mxu0 %v3257
    %v3365 = vpop.f32.mrb[0].mxu0
    %v3366 = vadd.f32 0.0, %v3365
    %v3367 = vpop.f32.mrb[0].mxu0
    %v3368 = vpop.f32.mrb[0].mxu0
    %v3369 = vadd.f32 0.0, %v3368
    %v3370 = vpop.f32.mrb[0].mxu0
    %3371 = vdwg.mxu0
    %v3372 = vadd.f32 %v3182, %v3358
    %v3373 = vadd.f32 %v3183, %v3361
    %v3374 = vadd.f32 %v3184, %v3366
    %v3375 = vadd.f32 %v3185, %v3369
    %s3376 = scalar_lea.vmem [#allocation10], 96
    %v3377 = vld [vmem:[%s3376] sm:$0xf]
    %v3378 = vld [vmem:[%s3376 + $0x4] sm:$0xf]
    %v3379 = vld [vmem:[%s3376 + $0x8] sm:$0xf]
    %v3380 = vld [vmem:[%s3376 + $0xc] sm:$0xf]
    %v3385 = vunpack.c.l.b16 %v3377
    %v3386 = vunpack.c.l.b16 %v3378
    %v3387 = vunpack.c.l.b16 %v3379
    %v3388 = vunpack.c.l.b16 %v3380
    %v3389 = vpack.c.b16 %v3386, %v3385
    %v3390 = vpack.c.b16 %v3388, %v3387
    %v3392 = vsel %vm2259, %v3389, 0
    %v3395 = vsel %vm2259, %v3390, 0
    %3397 = vmatprep.subr.bf16.mxu0 0
    %3398 = vmatpush1.bf16.msra.mxu0 %v2243
    %3399 = vmatprep.subr.bf16.mxu0 0
    %3400 = vmatpush1.bf16.msra.mxu0 %v2244
    %3401 = vmatprep.subr.bf16.mxu0 0
    %3402 = vmatpush1.bf16.msra.mxu0 0
    %3403 = vmatprep.subr.bf16.mxu0 0
    %3404 = vmatpush1.bf16.msra.mxu0 0
    %3405 = vmatprep.subr.bf16.mxu0 0
    %3406 = vmatpush1.bf16.msra.mxu0 0
    %3407 = vmatprep.subr.bf16.mxu0 0
    %3408 = vmatpush1.bf16.msra.mxu0 0
    %3409 = vmatprep.subr.bf16.mxu0 0
    %3410 = vmatpush1.bf16.msra.mxu0 0
    %3411 = vmatprep.subr.bf16.mxu0 0
    %3412 = vmatpush1.bf16.msra.mxu0 0
    %3413 = vmatprep.subr.bf16.mxu0 0
    %3414 = vmatpush1.bf16.msra.mxu0 0
    %3415 = vmatprep.subr.bf16.mxu0 0
    %3416 = vmatpush1.bf16.msra.mxu0 0
    %3417 = vmatprep.subr.bf16.mxu0 0
    %3418 = vmatpush1.bf16.msra.mxu0 0
    %3419 = vmatprep.subr.bf16.mxu0 0
    %3420 = vmatpush1.bf16.msra.mxu0 0
    %3421 = vmatprep.subr.bf16.mxu0 0
    %3422 = vmatpush1.bf16.msra.mxu0 0
    %3423 = vmatprep.subr.bf16.mxu0 0
    %3424 = vmatpush1.bf16.msra.mxu0 0
    %3425 = vmatprep.subr.bf16.mxu0 0
    %3426 = vmatpush1.bf16.msra.mxu0 0
    %3427 = vmatprep.subr.bf16.mxu0 0
    %3428 = vmatpush1.bf16.msra.mxu0 0
    %3429 = vmatprep.mubr.bf16.mxu0 0
    %3430 = vmatmul.mubr.bf16.gmra.mrb[0].mxu0 %v3392
    %v3431 = vpop.f32.mrb[0].mxu0
    %v3432 = vadd.f32 0.0, %v3431
    %v3433 = vpop.f32.mrb[0].mxu0
    %v3434 = vpop.f32.mrb[0].mxu0
    %v3435 = vadd.f32 0.0, %v3434
    %v3436 = vpop.f32.mrb[0].mxu0
    %3437 = vmatprep.mubr.bf16.mxu0 0
    %3438 = vmatmul.mubr.bf16.gmra.mrb[0].mxu0 %v3395
    %v3439 = vpop.f32.mrb[0].mxu0
    %v3440 = vadd.f32 0.0, %v3439
    %v3441 = vpop.f32.mrb[0].mxu0
    %v3442 = vpop.f32.mrb[0].mxu0
    %v3443 = vadd.f32 0.0, %v3442
    %v3444 = vpop.f32.mrb[0].mxu0
    %3445 = vdwg.mxu0
    %v3446 = vpack.c.bf16 %v3435, %v3432
    %v3447 = vpack.c.bf16 %v3443, %v3440
    %s3448 = scalar_lea.vmem [#allocation11], 384
    %v3449 = vld [vmem:[%s3448] sm:$0xf]
    %v3450 = vld [vmem:[%s3448 + $0x4] sm:$0xf]
    %v3451 = vld [vmem:[%s3448 + $0x8] sm:$0xf]
    %v3452 = vld [vmem:[%s3448 + $0xc] sm:$0xf]
    %v3453 = vld [vmem:[%s3448 + $0x10] sm:$0xf]
    %v3454 = vld [vmem:[%s3448 + $0x14] sm:$0xf]
    %v3455 = vld [vmem:[%s3448 + $0x18] sm:$0xf]
    %v3456 = vld [vmem:[%s3448 + $0x1c] sm:$0xf]
    %v3457 = vld [vmem:[%s3448 + $0x20] sm:$0xf]
    %v3458 = vld [vmem:[%s3448 + $0x24] sm:$0xf]
    %v3459 = vld [vmem:[%s3448 + $0x28] sm:$0xf]
    %v3460 = vld [vmem:[%s3448 + $0x2c] sm:$0xf]
    %v3461 = vld [vmem:[%s3448 + $0x30] sm:$0xf]
    %v3462 = vld [vmem:[%s3448 + $0x34] sm:$0xf]
    %v3463 = vld [vmem:[%s3448 + $0x38] sm:$0xf]
    %v3464 = vld [vmem:[%s3448 + $0x3c] sm:$0xf]
    %v3481 = vunpack.c.l.b16 %v3449
    %v3482 = vunpack.c.l.b16 %v3450
    %v3483 = vunpack.c.l.b16 %v3451
    %v3484 = vunpack.c.l.b16 %v3452
    %v3485 = vunpack.c.l.b16 %v3453
    %v3486 = vunpack.c.l.b16 %v3454
    %v3487 = vunpack.c.l.b16 %v3455
    %v3488 = vunpack.c.l.b16 %v3456
    %v3489 = vunpack.c.l.b16 %v3457
    %v3490 = vunpack.c.l.b16 %v3458
    %v3491 = vunpack.c.l.b16 %v3459
    %v3492 = vunpack.c.l.b16 %v3460
    %v3493 = vunpack.c.l.b16 %v3461
    %v3494 = vunpack.c.l.b16 %v3462
    %v3495 = vunpack.c.l.b16 %v3463
    %v3496 = vunpack.c.l.b16 %v3464
    %v3497 = vpack.c.b16 %v3482, %v3481
    %v3498 = vpack.c.b16 %v3484, %v3483
    %v3499 = vpack.c.b16 %v3486, %v3485
    %v3500 = vpack.c.b16 %v3488, %v3487
    %v3501 = vpack.c.b16 %v3490, %v3489
    %v3502 = vpack.c.b16 %v3492, %v3491
    %v3503 = vpack.c.b16 %v3494, %v3493
    %v3504 = vpack.c.b16 %v3496, %v3495
    %3513 = vmatprep.subr.bf16.mxu0 0
    %3514 = vmatpush1.bf16.msra.mxu0 %v3497
    %3515 = vmatprep.subr.bf16.mxu0 0
    %3516 = vmatpush1.bf16.msra.mxu0 %v3498
    %3517 = vmatprep.subr.bf16.mxu0 0
    %3518 = vmatpush1.bf16.msra.mxu0 %v3499
    %3519 = vmatprep.subr.bf16.mxu0 0
    %3520 = vmatpush1.bf16.msra.mxu0 %v3500
    %3521 = vmatprep.subr.bf16.mxu0 0
    %3522 = vmatpush1.bf16.msra.mxu0 %v3501
    %3523 = vmatprep.subr.bf16.mxu0 0
    %3524 = vmatpush1.bf16.msra.mxu0 %v3502
    %3525 = vmatprep.subr.bf16.mxu0 0
    %3526 = vmatpush1.bf16.msra.mxu0 %v3503
    %3527 = vmatprep.subr.bf16.mxu0 0
    %3528 = vmatpush1.bf16.msra.mxu0 %v3504
    %3529 = vmatprep.subr.bf16.mxu0 0
    %3530 = vmatpush1.bf16.msra.mxu0 0
    %3531 = vmatprep.subr.bf16.mxu0 0
    %3532 = vmatpush1.bf16.msra.mxu0 0
    %3533 = vmatprep.subr.bf16.mxu0 0
    %3534 = vmatpush1.bf16.msra.mxu0 0
    %3535 = vmatprep.subr.bf16.mxu0 0
    %3536 = vmatpush1.bf16.msra.mxu0 0
    %3537 = vmatprep.subr.bf16.mxu0 0
    %3538 = vmatpush1.bf16.msra.mxu0 0
    %3539 = vmatprep.subr.bf16.mxu0 0
    %3540 = vmatpush1.bf16.msra.mxu0 0
    %3541 = vmatprep.subr.bf16.mxu0 0
    %3542 = vmatpush1.bf16.msra.mxu0 0
    %3543 = vmatprep.subr.bf16.mxu0 0
    %3544 = vmatpush1.bf16.msra.mxu0 0
    %3545 = vmatprep.mubr.bf16.mxu0 0
    %3546 = vmatmul.mubr.bf16.gmra.mrb[0].mxu0 %v3446
    %v3547 = vpop.f32.mrb[0].mxu0
    %v3548 = vadd.f32 0.0, %v3547
    %v3549 = vpop.f32.mrb[0].mxu0
    %v3550 = vpop.f32.mrb[0].mxu0
    %v3551 = vadd.f32 0.0, %v3550
    %v3552 = vpop.f32.mrb[0].mxu0
    %3553 = vmatprep.mubr.bf16.mxu0 0
    %3554 = vmatmul.mubr.bf16.gmra.mrb[0].mxu0 %v3447
    %v3555 = vpop.f32.mrb[0].mxu0
    %v3556 = vadd.f32 0.0, %v3555
    %v3557 = vpop.f32.mrb[0].mxu0
    %v3558 = vpop.f32.mrb[0].mxu0
    %v3559 = vadd.f32 0.0, %v3558
    %v3560 = vpop.f32.mrb[0].mxu0
    %3561 = vdwg.mxu0
    %v3562 = vadd.f32 %v3372, %v3548
    %v3563 = vadd.f32 %v3373, %v3551
    %v3564 = vadd.f32 %v3374, %v3556
    %v3565 = vadd.f32 %v3375, %v3559
    %s3566 = scalar_lea.vmem [#allocation10], 112
    %v3567 = vld [vmem:[%s3566] sm:$0xf]
    %v3568 = vld [vmem:[%s3566 + $0x4] sm:$0xf]
    %v3569 = vld [vmem:[%s3566 + $0x8] sm:$0xf]
    %v3570 = vld [vmem:[%s3566 + $0xc] sm:$0xf]
    %v3575 = vunpack.c.l.b16 %v3567
    %v3576 = vunpack.c.l.b16 %v3568
    %v3577 = vunpack.c.l.b16 %v3569
    %v3578 = vunpack.c.l.b16 %v3570
    %v3579 = vpack.c.b16 %v3576, %v3575
    %v3580 = vpack.c.b16 %v3578, %v3577
    %v3582 = vsel %vm2259, %v3579, 0
    %v3585 = vsel %vm2259, %v3580, 0
    %3587 = vmatprep.subr.bf16.mxu0 0
    %3588 = vmatpush1.bf16.msra.mxu0 %v2243
    %3589 = vmatprep.subr.bf16.mxu0 0
    %3590 = vmatpush1.bf16.msra.mxu0 %v2244
    %3591 = vmatprep.subr.bf16.mxu0 0
    %3592 = vmatpush1.bf16.msra.mxu0 0
    %3593 = vmatprep.subr.bf16.mxu0 0
    %3594 = vmatpush1.bf16.msra.mxu0 0
    %3595 = vmatprep.subr.bf16.mxu0 0
    %3596 = vmatpush1.bf16.msra.mxu0 0
    %3597 = vmatprep.subr.bf16.mxu0 0
    %3598 = vmatpush1.bf16.msra.mxu0 0
    %3599 = vmatprep.subr.bf16.mxu0 0
    %3600 = vmatpush1.bf16.msra.mxu0 0
    %3601 = vmatprep.subr.bf16.mxu0 0
    %3602 = vmatpush1.bf16.msra.mxu0 0
    %3603 = vmatprep.subr.bf16.mxu0 0
    %3604 = vmatpush1.bf16.msra.mxu0 0
    %3605 = vmatprep.subr.bf16.mxu0 0
    %3606 = vmatpush1.bf16.msra.mxu0 0
    %3607 = vmatprep.subr.bf16.mxu0 0
    %3608 = vmatpush1.bf16.msra.mxu0 0
    %3609 = vmatprep.subr.bf16.mxu0 0
    %3610 = vmatpush1.bf16.msra.mxu0 0
    %3611 = vmatprep.subr.bf16.mxu0 0
    %3612 = vmatpush1.bf16.msra.mxu0 0
    %3613 = vmatprep.subr.bf16.mxu0 0
    %3614 = vmatpush1.bf16.msra.mxu0 0
    %3615 = vmatprep.subr.bf16.mxu0 0
    %3616 = vmatpush1.bf16.msra.mxu0 0
    %3617 = vmatprep.subr.bf16.mxu0 0
    %3618 = vmatpush1.bf16.msra.mxu0 0
    %3619 = vmatprep.mubr.bf16.mxu0 0
    %3620 = vmatmul.mubr.bf16.gmra.mrb[0].mxu0 %v3582
    %v3621 = vpop.f32.mrb[0].mxu0
    %v3622 = vadd.f32 0.0, %v3621
    %v3623 = vpop.f32.mrb[0].mxu0
    %v3624 = vpop.f32.mrb[0].mxu0
    %v3625 = vadd.f32 0.0, %v3624
    %v3626 = vpop.f32.mrb[0].mxu0
    %3627 = vmatprep.mubr.bf16.mxu0 0
    %3628 = vmatmul.mubr.bf16.gmra.mrb[0].mxu0 %v3585
    %v3629 = vpop.f32.mrb[0].mxu0
    %v3630 = vadd.f32 0.0, %v3629
    %v3631 = vpop.f32.mrb[0].mxu0
    %v3632 = vpop.f32.mrb[0].mxu0
    %v3633 = vadd.f32 0.0, %v3632
    %v3634 = vpop.f32.mrb[0].mxu0
    %3635 = vdwg.mxu0
    %v3636 = vpack.c.bf16 %v3625, %v3622
    %v3637 = vpack.c.bf16 %v3633, %v3630
    %s3638 = scalar_lea.vmem [#allocation11], 448
    %v3639 = vld [vmem:[%s3638] sm:$0xf]
    %v3640 = vld [vmem:[%s3638 + $0x4] sm:$0xf]
    %v3641 = vld [vmem:[%s3638 + $0x8] sm:$0xf]
    %v3642 = vld [vmem:[%s3638 + $0xc] sm:$0xf]
    %v3643 = vld [vmem:[%s3638 + $0x10] sm:$0xf]
    %v3644 = vld [vmem:[%s3638 + $0x14] sm:$0xf]
    %v3645 = vld [vmem:[%s3638 + $0x18] sm:$0xf]
    %v3646 = vld [vmem:[%s3638 + $0x1c] sm:$0xf]
    %v3647 = vld [vmem:[%s3638 + $0x20] sm:$0xf]
    %v3648 = vld [vmem:[%s3638 + $0x24] sm:$0xf]
    %v3649 = vld [vmem:[%s3638 + $0x28] sm:$0xf]
    %v3650 = vld [vmem:[%s3638 + $0x2c] sm:$0xf]
    %v3651 = vld [vmem:[%s3638 + $0x30] sm:$0xf]
    %v3652 = vld [vmem:[%s3638 + $0x34] sm:$0xf]
    %v3653 = vld [vmem:[%s3638 + $0x38] sm:$0xf]
    %v3654 = vld [vmem:[%s3638 + $0x3c] sm:$0xf]
    %v3671 = vunpack.c.l.b16 %v3639
    %v3672 = vunpack.c.l.b16 %v3640
    %v3673 = vunpack.c.l.b16 %v3641
    %v3674 = vunpack.c.l.b16 %v3642
    %v3675 = vunpack.c.l.b16 %v3643
    %v3676 = vunpack.c.l.b16 %v3644
    %v3677 = vunpack.c.l.b16 %v3645
    %v3678 = vunpack.c.l.b16 %v3646
    %v3679 = vunpack.c.l.b16 %v3647
    %v3680 = vunpack.c.l.b16 %v3648
    %v3681 = vunpack.c.l.b16 %v3649
    %v3682 = vunpack.c.l.b16 %v3650
    %v3683 = vunpack.c.l.b16 %v3651
    %v3684 = vunpack.c.l.b16 %v3652
    %v3685 = vunpack.c.l.b16 %v3653
    %v3686 = vunpack.c.l.b16 %v3654
    %v3687 = vpack.c.b16 %v3672, %v3671
    %v3688 = vpack.c.b16 %v3674, %v3673
    %v3689 = vpack.c.b16 %v3676, %v3675
    %v3690 = vpack.c.b16 %v3678, %v3677
    %v3691 = vpack.c.b16 %v3680, %v3679
    %v3692 = vpack.c.b16 %v3682, %v3681
    %v3693 = vpack.c.b16 %v3684, %v3683
    %v3694 = vpack.c.b16 %v3686, %v3685
    %3703 = vmatprep.subr.bf16.mxu0 0
    %3704 = vmatpush1.bf16.msra.mxu0 %v3687
    %3705 = vmatprep.subr.bf16.mxu0 0
    %3706 = vmatpush1.bf16.msra.mxu0 %v3688
    %3707 = vmatprep.subr.bf16.mxu0 0
    %3708 = vmatpush1.bf16.msra.mxu0 %v3689
    %3709 = vmatprep.subr.bf16.mxu0 0
    %3710 = vmatpush1.bf16.msra.mxu0 %v3690
    %3711 = vmatprep.subr.bf16.mxu0 0
    %3712 = vmatpush1.bf16.msra.mxu0 %v3691
    %3713 = vmatprep.subr.bf16.mxu0 0
    %3714 = vmatpush1.bf16.msra.mxu0 %v3692
    %3715 = vmatprep.subr.bf16.mxu0 0
    %3716 = vmatpush1.bf16.msra.mxu0 %v3693
    %3717 = vmatprep.subr.bf16.mxu0 0
    %3718 = vmatpush1.bf16.msra.mxu0 %v3694
    %3719 = vmatprep.subr.bf16.mxu0 0
    %3720 = vmatpush1.bf16.msra.mxu0 0
    %3721 = vmatprep.subr.bf16.mxu0 0
    %3722 = vmatpush1.bf16.msra.mxu0 0
    %3723 = vmatprep.subr.bf16.mxu0 0
    %3724 = vmatpush1.bf16.msra.mxu0 0
    %3725 = vmatprep.subr.bf16.mxu0 0
    %3726 = vmatpush1.bf16.msra.mxu0 0
    %3727 = vmatprep.subr.bf16.mxu0 0
    %3728 = vmatpush1.bf16.msra.mxu0 0
    %3729 = vmatprep.subr.bf16.mxu0 0
    %3730 = vmatpush1.bf16.msra.mxu0 0
    %3731 = vmatprep.subr.bf16.mxu0 0
    %3732 = vmatpush1.bf16.msra.mxu0 0
    %3733 = vmatprep.subr.bf16.mxu0 0
    %3734 = vmatpush1.bf16.msra.mxu0 0
    %3735 = vmatprep.mubr.bf16.mxu0 0
    %3736 = vmatmul.mubr.bf16.gmra.mrb[0].mxu0 %v3636
    %v3737 = vpop.f32.mrb[0].mxu0
    %v3738 = vadd.f32 0.0, %v3737
    %v3739 = vpop.f32.mrb[0].mxu0
    %v3740 = vpop.f32.mrb[0].mxu0
    %v3741 = vadd.f32 0.0, %v3740
    %v3742 = vpop.f32.mrb[0].mxu0
    %3743 = vmatprep.mubr.bf16.mxu0 0
    %3744 = vmatmul.mubr.bf16.gmra.mrb[0].mxu0 %v3637
    %v3745 = vpop.f32.mrb[0].mxu0
    %v3746 = vadd.f32 0.0, %v3745
    %v3747 = vpop.f32.mrb[0].mxu0
    %v3748 = vpop.f32.mrb[0].mxu0
    %v3749 = vadd.f32 0.0, %v3748
    %v3750 = vpop.f32.mrb[0].mxu0
    %3751 = vdwg.mxu0
    %v3752 = vadd.f32 %v3562, %v3738
    %v3753 = vadd.f32 %v3563, %v3741
    %v3754 = vadd.f32 %v3564, %v3746
    %v3755 = vadd.f32 %v3565, %v3749
    %s3756 = scalar_lea.vmem [#allocation10], 128
    %v3757 = vld [vmem:[%s3756] sm:$0xf]
    %v3758 = vld [vmem:[%s3756 + $0x4] sm:$0xf]
    %v3759 = vld [vmem:[%s3756 + $0x8] sm:$0xf]
    %v3760 = vld [vmem:[%s3756 + $0xc] sm:$0xf]
    %v3765 = vunpack.c.l.b16 %v3757
    %v3766 = vunpack.c.l.b16 %v3758
    %v3767 = vunpack.c.l.b16 %v3759
    %v3768 = vunpack.c.l.b16 %v3760
    %v3769 = vpack.c.b16 %v3766, %v3765
    %v3770 = vpack.c.b16 %v3768, %v3767
    %v3772 = vsel %vm2259, %v3769, 0
    %v3775 = vsel %vm2259, %v3770, 0
    %3777 = vmatprep.subr.bf16.mxu0 0
    %3778 = vmatpush1.bf16.msra.mxu0 %v2243
    %3779 = vmatprep.subr.bf16.mxu0 0
    %3780 = vmatpush1.bf16.msra.mxu0 %v2244
    %3781 = vmatprep.subr.bf16.mxu0 0
    %3782 = vmatpush1.bf16.msra.mxu0 0
    %3783 = vmatprep.subr.bf16.mxu0 0
    %3784 = vmatpush1.bf16.msra.mxu0 0
    %3785 = vmatprep.subr.bf16.mxu0 0
    %3786 = vmatpush1.bf16.msra.mxu0 0
    %3787 = vmatprep.subr.bf16.mxu0 0
    %3788 = vmatpush1.bf16.msra.mxu0 0
    %3789 = vmatprep.subr.bf16.mxu0 0
    %3790 = vmatpush1.bf16.msra.mxu0 0
    %3791 = vmatprep.subr.bf16.mxu0 0
    %3792 = vmatpush1.bf16.msra.mxu0 0
    %3793 = vmatprep.subr.bf16.mxu0 0
    %3794 = vmatpush1.bf16.msra.mxu0 0
    %3795 = vmatprep.subr.bf16.mxu0 0
    %3796 = vmatpush1.bf16.msra.mxu0 0
    %3797 = vmatprep.subr.bf16.mxu0 0
    %3798 = vmatpush1.bf16.msra.mxu0 0
    %3799 = vmatprep.subr.bf16.mxu0 0
    %3800 = vmatpush1.bf16.msra.mxu0 0
    %3801 = vmatprep.subr.bf16.mxu0 0
    %3802 = vmatpush1.bf16.msra.mxu0 0
    %3803 = vmatprep.subr.bf16.mxu0 0
    %3804 = vmatpush1.bf16.msra.mxu0 0
    %3805 = vmatprep.subr.bf16.mxu0 0
    %3806 = vmatpush1.bf16.msra.mxu0 0
    %3807 = vmatprep.subr.bf16.mxu0 0
    %3808 = vmatpush1.bf16.msra.mxu0 0
    %3809 = vmatprep.mubr.bf16.mxu0 0
    %3810 = vmatmul.mubr.bf16.gmra.mrb[0].mxu0 %v3772
    %v3811 = vpop.f32.mrb[0].mxu0
    %v3812 = vadd.f32 0.0, %v3811
    %v3813 = vpop.f32.mrb[0].mxu0
    %v3814 = vpop.f32.mrb[0].mxu0
    %v3815 = vadd.f32 0.0, %v3814
    %v3816 = vpop.f32.mrb[0].mxu0
    %3817 = vmatprep.mubr.bf16.mxu0 0
    %3818 = vmatmul.mubr.bf16.gmra.mrb[0].mxu0 %v3775
    %v3819 = vpop.f32.mrb[0].mxu0
    %v3820 = vadd.f32 0.0, %v3819
    %v3821 = vpop.f32.mrb[0].mxu0
    %v3822 = vpop.f32.mrb[0].mxu0
    %v3823 = vadd.f32 0.0, %v3822
    %v3824 = vpop.f32.mrb[0].mxu0
    %3825 = vdwg.mxu0
    %v3826 = vpack.c.bf16 %v3815, %v3812
    %v3827 = vpack.c.bf16 %v3823, %v3820
    %s3828 = scalar_lea.vmem [#allocation11], 512
    %v3829 = vld [vmem:[%s3828] sm:$0xf]
    %v3830 = vld [vmem:[%s3828 + $0x4] sm:$0xf]
    %v3831 = vld [vmem:[%s3828 + $0x8] sm:$0xf]
    %v3832 = vld [vmem:[%s3828 + $0xc] sm:$0xf]
    %v3833 = vld [vmem:[%s3828 + $0x10] sm:$0xf]
    %v3834 = vld [vmem:[%s3828 + $0x14] sm:$0xf]
    %v3835 = vld [vmem:[%s3828 + $0x18] sm:$0xf]
    %v3836 = vld [vmem:[%s3828 + $0x1c] sm:$0xf]
    %v3837 = vld [vmem:[%s3828 + $0x20] sm:$0xf]
    %v3838 = vld [vmem:[%s3828 + $0x24] sm:$0xf]
    %v3839 = vld [vmem:[%s3828 + $0x28] sm:$0xf]
    %v3840 = vld [vmem:[%s3828 + $0x2c] sm:$0xf]
    %v3841 = vld [vmem:[%s3828 + $0x30] sm:$0xf]
    %v3842 = vld [vmem:[%s3828 + $0x34] sm:$0xf]
    %v3843 = vld [vmem:[%s3828 + $0x38] sm:$0xf]
    %v3844 = vld [vmem:[%s3828 + $0x3c] sm:$0xf]
    %v3861 = vunpack.c.l.b16 %v3829
    %v3862 = vunpack.c.l.b16 %v3830
    %v3863 = vunpack.c.l.b16 %v3831
    %v3864 = vunpack.c.l.b16 %v3832
    %v3865 = vunpack.c.l.b16 %v3833
    %v3866 = vunpack.c.l.b16 %v3834
    %v3867 = vunpack.c.l.b16 %v3835
    %v3868 = vunpack.c.l.b16 %v3836
    %v3869 = vunpack.c.l.b16 %v3837
    %v3870 = vunpack.c.l.b16 %v3838
    %v3871 = vunpack.c.l.b16 %v3839
    %v3872 = vunpack.c.l.b16 %v3840
    %v3873 = vunpack.c.l.b16 %v3841
    %v3874 = vunpack.c.l.b16 %v3842
    %v3875 = vunpack.c.l.b16 %v3843
    %v3876 = vunpack.c.l.b16 %v3844
    %v3877 = vpack.c.b16 %v3862, %v3861
    %v3878 = vpack.c.b16 %v3864, %v3863
    %v3879 = vpack.c.b16 %v3866, %v3865
    %v3880 = vpack.c.b16 %v3868, %v3867
    %v3881 = vpack.c.b16 %v3870, %v3869
    %v3882 = vpack.c.b16 %v3872, %v3871
    %v3883 = vpack.c.b16 %v3874, %v3873
    %v3884 = vpack.c.b16 %v3876, %v3875
    %3893 = vmatprep.subr.bf16.mxu0 0
    %3894 = vmatpush1.bf16.msra.mxu0 %v3877
    %3895 = vmatprep.subr.bf16.mxu0 0
    %3896 = vmatpush1.bf16.msra.mxu0 %v3878
    %3897 = vmatprep.subr.bf16.mxu0 0
    %3898 = vmatpush1.bf16.msra.mxu0 %v3879
    %3899 = vmatprep.subr.bf16.mxu0 0
    %3900 = vmatpush1.bf16.msra.mxu0 %v3880
    %3901 = vmatprep.subr.bf16.mxu0 0
    %3902 = vmatpush1.bf16.msra.mxu0 %v3881
    %3903 = vmatprep.subr.bf16.mxu0 0
    %3904 = vmatpush1.bf16.msra.mxu0 %v3882
    %3905 = vmatprep.subr.bf16.mxu0 0
    %3906 = vmatpush1.bf16.msra.mxu0 %v3883
    %3907 = vmatprep.subr.bf16.mxu0 0
    %3908 = vmatpush1.bf16.msra.mxu0 %v3884
    %3909 = vmatprep.subr.bf16.mxu0 0
    %3910 = vmatpush1.bf16.msra.mxu0 0
    %3911 = vmatprep.subr.bf16.mxu0 0
    %3912 = vmatpush1.bf16.msra.mxu0 0
    %3913 = vmatprep.subr.bf16.mxu0 0
    %3914 = vmatpush1.bf16.msra.mxu0 0
    %3915 = vmatprep.subr.bf16.mxu0 0
    %3916 = vmatpush1.bf16.msra.mxu0 0
    %3917 = vmatprep.subr.bf16.mxu0 0
    %3918 = vmatpush1.bf16.msra.mxu0 0
    %3919 = vmatprep.subr.bf16.mxu0 0
    %3920 = vmatpush1.bf16.msra.mxu0 0
    %3921 = vmatprep.subr.bf16.mxu0 0
    %3922 = vmatpush1.bf16.msra.mxu0 0
    %3923 = vmatprep.subr.bf16.mxu0 0
    %3924 = vmatpush1.bf16.msra.mxu0 0
    %3925 = vmatprep.mubr.bf16.mxu0 0
    %3926 = vmatmul.mubr.bf16.gmra.mrb[0].mxu0 %v3826
    %v3927 = vpop.f32.mrb[0].mxu0
    %v3928 = vadd.f32 0.0, %v3927
    %v3929 = vpop.f32.mrb[0].mxu0
    %v3930 = vpop.f32.mrb[0].mxu0
    %v3931 = vadd.f32 0.0, %v3930
    %v3932 = vpop.f32.mrb[0].mxu0
    %3933 = vmatprep.mubr.bf16.mxu0 0
    %3934 = vmatmul.mubr.bf16.gmra.mrb[0].mxu0 %v3827
    %v3935 = vpop.f32.mrb[0].mxu0
    %v3936 = vadd.f32 0.0, %v3935
    %v3937 = vpop.f32.mrb[0].mxu0
    %v3938 = vpop.f32.mrb[0].mxu0
    %v3939 = vadd.f32 0.0, %v3938
    %v3940 = vpop.f32.mrb[0].mxu0
    %3941 = vdwg.mxu0
    %v3942 = vadd.f32 %v3752, %v3928
    %v3943 = vadd.f32 %v3753, %v3931
    %v3944 = vadd.f32 %v3754, %v3936
    %v3945 = vadd.f32 %v3755, %v3939
    %v3946 = vld [vmem:[%s6 + $0x4] sm:$0x1]
    %v3947 = vlaneseq
    %v3948 = vshrl.u32 %v3947, 7
    %v3949 = vsub.s32 0, %v3948
    %v3950 = vrot.slane %v3946, %v3949
    %v3951 = vadd.f32 %v3942, %v3950
    %v3952 = vadd.f32 %v3943, %v3950
    %v3953 = vadd.f32 %v3944, %v3950
    %v3954 = vadd.f32 %v3945, %v3950
    %v3955 = vxor.u32 %v3951, 2147483648
    %v3956 = vxor.u32 %v3952, 2147483648
    %v3957 = vxor.u32 %v3953, 2147483648
    %v3958 = vxor.u32 %v3954, 2147483648
    %v3959 = vmul.f32 %v3955, 1.442695
    %v3960 = vpow.pop %v3959
    %v3961 = vmul.f32 %v3956, 1.442695
    %v3962 = vpow.pop %v3961
    %v3963 = vmul.f32 %v3957, 1.442695
    %v3964 = vpow.pop %v3963
    %v3965 = vmul.f32 %v3958, 1.442695
    %v3966 = vpow.pop %v3965
    %v3967 = vadd.f32 %v3960, 1.0
    %v3968 = vadd.f32 %v3962, 1.0
    %v3969 = vadd.f32 %v3964, 1.0
    %v3970 = vadd.f32 %v3966, 1.0
    %v3971 = vrcp.pop %v3967
    %v3972 = vmul.f32 1.0, %v3971
    %v3973 = vrcp.pop %v3968
    %v3974 = vmul.f32 1.0, %v3973
    %v3975 = vrcp.pop %v3969
    %v3976 = vmul.f32 1.0, %v3975
    %v3977 = vrcp.pop %v3970
    %v3978 = vmul.f32 1.0, %v3977
    %3979 = vst [vmem:[#allocation13] sm:$0xff] %v3972
    %3980 = vst [vmem:[#allocation13 + $0x8] sm:$0xff] %v3974
    %3981 = vst [vmem:[#allocation13 + $0x10] sm:$0xff] %v3976
    %3982 = vst [vmem:[#allocation13 + $0x18] sm:$0xff] %v3978
    // Predicated region
    $region54: #{tpu_custom_call.1} parent=1 // pred_check
      _
    $region55: #{tpu_custom_call.1} parent=1 // pred_check_branch
      %3984 = sbr.rel (0) target = $region57
    $region56: #{tpu_custom_call.1} parent=1 // pred_region
      %s3986 = ssub.s32 512, 512
      %3987 = vsyncadd [#allocation4], %s3986
      %s3988 = sshll.u32 [#allocation13], 4
      %s3989 = int_to_ptr.vmem [resolvable:$true] %s3988
      %3994 = dma.vmem_to_hbm [thread:$0]  %s3989, 512, %s7, [#allocation4], 128, 128, 8
    $region57: #{tpu_custom_call.1} parent=1 // pred_fallthru
      _
    // Predicated region
    $region58: #{tpu_custom_call.1} parent=1 // pred_check
      _
    $region59: #{tpu_custom_call.1} parent=1 // pred_check_branch
      %3996 = sbr.rel (0) target = $region61
    $region60: #{tpu_custom_call.1} parent=1 // pred_region
      %3997 = dma.done [#allocation4], 512
    $region61: #{tpu_custom_call.1} parent=1 // pred_fallthru
      _
    %3998 = vsyncpa [#allocation3], 1
    %3999 = vsyncpa [#allocation6], 1
    %4000 = vsyncpa [#allocation9], 1
    %4001 = vsyncpa [#allocation12], 1
    %4002 = vsyncpa [#allocation4], 1

</llo_original>
